<compile_context>
chip_gen: v7x
topology: tpu7x:2x2x1
jax: 0.10.0
libtpu: 0.0.40
codegen_flags: <defaults>
</compile_context>

<pallas_src>
import math
import functools

import jax
import jax.numpy as jnp
from jax.experimental import pallas as pl
from jax.experimental.pallas import tpu as pltpu

EPS = 1e-6
NEG_INF = -1e9


def _vmem_limit_bytes():
    # Generation-aware scoped-VMEM limit: ~100 MiB on v5e/v6e (128 MiB physical),
    # ~54 MiB on v7x (64 MiB per TC).  Conservative fallback if the query fails.
    try:
        cap = int(pltpu.get_tpu_info().vmem_capacity_bytes)
        return int(min(cap * 0.85, 100 * 1024 * 1024))
    except Exception:
        return 48 * 1024 * 1024


# ---------------------------------------------------------------------------
# in-kernel helpers
# ---------------------------------------------------------------------------
def _layer_norm(x, gamma, beta, d_model):
    # matches normallayer: gamma * (x - mean) / (std + eps) + beta, std unbiased
    mean = jnp.mean(x, axis=-1, keepdims=True)
    xc = x - mean
    var = jnp.sum(xc * xc, axis=-1, keepdims=True) * (1.0 / (d_model - 1))
    inv = pl.reciprocal(jnp.sqrt(var) + EPS, approx=True)   # divide -> EUP
    return gamma * (xc * inv) + beta


# ---------------------------------------------------------------------------
# fused encoder stack: grid=(batch_blocks, layers), x resident in VMEM per block
# ---------------------------------------------------------------------------
def encoder_stack_kernel(x_ref, bias_ref,
                         g1_ref, be1_ref, g2_ref, be2_ref,
                         wqkv_ref, bqkv_ref, wo_ref, bo_ref,
                         w1_ref, b1_ref, w2_ref, b2_ref,
                         o_ref, *, block_b, seq, heads, head_dim, d_model):
    layer = pl.program_id(1)

    @pl.when(layer == 0)
    def _init():
        # o_ref is the resident activation buffer across all layers of this block
        o_ref[...] = x_ref[...]

    x = o_ref[...]                                          # (block_b*S, D) f32

    # ---- sublayer 1: norm1 -> multi-head attention -> residual ---------------
    x2 = _layer_norm(x, g1_ref[0], be1_ref[0], d_model)
    qkv = jnp.dot(x2.astype(jnp.bfloat16), wqkv_ref[0],
                  preferred_element_type=jnp.float32) + bqkv_ref[0]   # (BS, 3D)

    q = qkv[:, :d_model]             # 1/sqrt(head_dim) already folded into Wq/bq
    k = qkv[:, d_model:2 * d_model]
    v = qkv[:, 2 * d_model:]

    bias = bias_ref[...]             # (block_b, 1, S) additive mask bias, hoisted

    # Per-head attention.  Each head's context is consumed immediately by its
    # row-block of Wo, accumulating into one (BS, D) f32 buffer: no lane-axis
    # concat and no head output stays live past its iteration.
    attn = jnp.zeros((block_b * seq, d_model), jnp.float32)
    for h in range(heads):                                  # static head loop
        lo = h * head_dim
        qh = q[:, lo:lo + head_dim].reshape(block_b, seq, head_dim).astype(jnp.bfloat16)
        kh = k[:, lo:lo + head_dim].reshape(block_b, seq, head_dim).astype(jnp.bfloat16)
        vh = v[:, lo:lo + head_dim].reshape(block_b, seq, head_dim).astype(jnp.bfloat16)
        s = jnp.einsum('bqd,bkd->bqk', qh, kh,
                       preferred_element_type=jnp.float32)  # (block_b, S, S) f32
        s = s + bias                                         # masked_fill as add
        m = jnp.max(s, axis=-1, keepdims=True)
        e = jnp.exp(s - m)
        p = e * pl.reciprocal(jnp.sum(e, axis=-1, keepdims=True), approx=True)
        ctx = jnp.einsum('bqk,bkd->bqd', p.astype(jnp.bfloat16), vh,
                         preferred_element_type=jnp.float32)  # (block_b, S, hd)
        attn = attn + jnp.dot(
            ctx.reshape(block_b * seq, head_dim).astype(jnp.bfloat16),
            wo_ref[0, h], preferred_element_type=jnp.float32)
    attn = attn + bo_ref[0]

    x = x2 + attn       # NOTE: reference adds attn to the normed x2, not x

    # ---- sublayer 2: norm2 -> FFN -> residual ---------------------------------
    x2 = _layer_norm(x, g2_ref[0], be2_ref[0], d_model)
    h1 = jnp.dot(x2.astype(jnp.bfloat16), w1_ref[0],
                 preferred_element_type=jnp.float32) + b1_ref[0]
    h1 = jnp.maximum(h1, 0.0)
    ff = jnp.dot(h1.astype(jnp.bfloat16), w2_ref[0],
                 preferred_element_type=jnp.float32) + b2_ref[0]

    o_ref[...] = x + ff


# ---------------------------------------------------------------------------
# final norm + classifier + softmax (exact divide so rows sum to 1)
# ---------------------------------------------------------------------------
def classify_kernel(x_ref, g_ref, b_ref, wc_ref, bc_ref, o_ref, *, d_model):
    xn = _layer_norm(x_ref[...], g_ref[...], b_ref[...], d_model)
    logits = jnp.dot(xn.astype(jnp.bfloat16), wc_ref[...],
                     preferred_element_type=jnp.float32) + bc_ref[...]
    m = jnp.max(logits, axis=-1, keepdims=True)
    e = jnp.exp(logits - m)
    o_ref[...] = e / jnp.sum(e, axis=-1, keepdims=True)


# ---------------------------------------------------------------------------
# wrappers
# ---------------------------------------------------------------------------
def run_encoder_stack(x_flat, bias, stacked, *, batch, seq, heads, batch_blocks):
    BS, D = x_flat.shape
    L = stacked["wqkv"].shape[0]
    block_b = batch // batch_blocks
    block_rows = block_b * seq

    weights = [stacked["g1"], stacked["be1"], stacked["g2"], stacked["be2"],
               stacked["wqkv"], stacked["bqkv"], stacked["wo"], stacked["bo"],
               stacked["w1"], stacked["b1"], stacked["w2"], stacked["b2"]]

    def stacked_spec(arr):
        nd = arr.ndim
        return pl.BlockSpec((1,) + arr.shape[1:],
                            lambda b, l, _nd=nd: (l,) + (0,) * (_nd - 1))

    in_specs = [pl.BlockSpec((block_rows, D), lambda b, l: (b, 0)),       # act
                pl.BlockSpec((block_b, 1, seq), lambda b, l: (b, 0, 0))]  # bias
    in_specs += [stacked_spec(w) for w in weights]

    kernel = functools.partial(encoder_stack_kernel,
                               block_b=block_b, seq=seq, heads=heads,
                               head_dim=D // heads, d_model=D)
    return pl.pallas_call(
        kernel,
        out_shape=jax.ShapeDtypeStruct((BS, D), jnp.float32),
        grid=(batch_blocks, L),                  # (parallel batch, sequential layers)
        in_specs=in_specs,
        out_specs=pl.BlockSpec((block_rows, D), lambda b, l: (b, 0)),  # resident
        compiler_params=pltpu.CompilerParams(
            dimension_semantics=("parallel", "arbitrary"),
            vmem_limit_bytes=_vmem_limit_bytes()),
    )(x_flat, bias, *weights)


def run_classify(x_flat, final_p, *, row_block=None):
    BS, D = x_flat.shape
    wc = final_p["wc"].astype(jnp.bfloat16)
    V = wc.shape[1]
    weights = [final_p["gf"], final_p["bf"], wc, final_p["bc"]]

    if row_block is None:
        row_block = BS if BS <= 256 else 256
    if BS % row_block != 0:
        row_block = BS
    n_row_blocks = BS // row_block

    def const_spec(arr):
        nd = arr.ndim
        return pl.BlockSpec(arr.shape, lambda i, _nd=nd: (0,) * _nd)

    in_specs = [pl.BlockSpec((row_block, D), lambda i: (i, 0))]
    in_specs += [const_spec(w) for w in weights]

    kernel = functools.partial(classify_kernel, d_model=D)
    return pl.pallas_call(
        kernel,
        out_shape=jax.ShapeDtypeStruct((BS, V), jnp.float32),
        grid=(n_row_blocks,),
        in_specs=in_specs,
        out_specs=pl.BlockSpec((row_block, V), lambda i: (i, 0)),
        compiler_params=pltpu.CompilerParams(
            dimension_semantics=("parallel",),
            vmem_limit_bytes=_vmem_limit_bytes()),
    )(x_flat, *weights)


def positional_encoding(max_seq, d_model):
    position = jnp.arange(max_seq, dtype=jnp.float32)[:, None]
    div_term = jnp.exp(jnp.arange(0, d_model, 2, dtype=jnp.float32)
                       * (-math.log(10000.0) / d_model))
    pe = jnp.zeros((max_seq, d_model), dtype=jnp.float32)
    pe = pe.at[:, 0::2].set(jnp.sin(position * div_term))
    pe = pe.at[:, 1::2].set(jnp.cos(position * div_term))
    return pe


def init_params(key, vocab, d_model, n_layers, d_ff):
    keys = iter(jax.random.split(key, 8 + 20 * n_layers))
    w = lambda shape: (jax.random.normal(next(keys), shape, jnp.float32) * 0.02)

    params = {"embed": w((vocab, d_model))}
    layers = []
    for _ in range(n_layers):
        layers.append({
            "g1": jnp.ones((1, d_model), jnp.float32),
            "be1": jnp.zeros((1, d_model), jnp.float32),
            "g2": jnp.ones((1, d_model), jnp.float32),
            "be2": jnp.zeros((1, d_model), jnp.float32),
            "wq": w((d_model, d_model)), "bq": w((1, d_model)),
            "wk": w((d_model, d_model)), "bk": w((1, d_model)),
            "wv": w((d_model, d_model)), "bv": w((1, d_model)),
            "wo": w((d_model, d_model)), "bo": w((1, d_model)),
            "w1": w((d_model, d_ff)), "bf1": w((1, d_ff)),
            "w2": w((d_ff, d_model)), "bf2": w((1, d_model)),
        })
    params["layers"] = layers
    params["final"] = {
        "gf": jnp.ones((1, d_model), jnp.float32),
        "bf": jnp.zeros((1, d_model), jnp.float32),
        "wc": w((d_model, vocab)), "bc": w((1, vocab)),
    }
    return params


def pack_layer_params(layers, *, heads):
    """Stack per-layer params along L; fuse Wq|Wk|Wv (scale folded into Wq/bq);
    split Wo rows per head; bf16 matmul weights, f32 biases/norm params."""
    d_model = layers[0]["wq"].shape[0]
    head_dim = d_model // heads
    scale = 1.0 / math.sqrt(head_dim)

    def stack(key, dtype=jnp.float32):
        return jnp.stack([lp[key] for lp in layers]).astype(dtype)

    wqkv = jnp.stack([jnp.concatenate([lp["wq"] * scale, lp["wk"], lp["wv"]], axis=1)
                      for lp in layers]).astype(jnp.bfloat16)            # (L, D, 3D)
    bqkv = jnp.stack([jnp.concatenate([lp["bq"] * scale, lp["bk"], lp["bv"]], axis=1)
                      for lp in layers])                                  # (L, 1, 3D)
    wo = jnp.stack([lp["wo"].reshape(heads, head_dim, d_model)
                    for lp in layers]).astype(jnp.bfloat16)               # (L, H, hd, D)
    return {
        "g1": stack("g1"), "be1": stack("be1"),
        "g2": stack("g2"), "be2": stack("be2"),
        "wqkv": wqkv, "bqkv": bqkv,
        "wo": wo, "bo": stack("bo"),
        "w1": stack("w1", jnp.bfloat16), "b1": stack("bf1"),
        "w2": stack("w2", jnp.bfloat16), "b2": stack("bf2"),
    }


def encoder_forward(src, mask_f, params, *, heads, batch_blocks=None):
    # glue: embedding gather + positional encoding (not the hot path)
    B, S = src.shape
    d_model = params["embed"].shape[1]
    x = jnp.take(params["embed"], src, axis=0)               # (B, S, D)
    x = x + positional_encoding(512, d_model)[None, :S, :]
    x_flat = x.reshape(B * S, d_model).astype(jnp.float32)   # fold B into GEMM rows

    # masked_fill(mask==0, -1e9) expressed as an additive bias, computed once here
    bias = jnp.where(mask_f == 0, NEG_INF, 0.0).astype(jnp.float32)   # (B, 1, S)

    if batch_blocks is None:
        batch_blocks = 2 if (B % 2 == 0 and B >= 2) else 1   # feeds 2 TCs on v7x

    stacked = pack_layer_params(params["layers"], heads=heads)
    x_flat = run_encoder_stack(x_flat, bias, stacked, batch=B, seq=S,
                               heads=heads, batch_blocks=batch_blocks)
    probs = run_classify(x_flat, params["final"])             # (B*S, V)
    return probs.reshape(B, S, -1)


if __name__ == "__main__":
    # NOTE: toy shapes; for production pick d_model / head_dim / d_ff / B*S as
    # multiples of 128 (256 on v6e/v7x) so every block is lane-dense.
    B, S, D, HEADS, N_LAYERS, VOCAB, D_FF = 2, 8, 32, 4, 2, 128, 2048

    key = jax.random.PRNGKey(0)
    k_param, k_src = jax.random.split(key)
    params = init_params(k_param, VOCAB, D, N_LAYERS, D_FF)

    src = jax.random.randint(k_src, (B, S), 0, VOCAB, dtype=jnp.int32)
    lengths = jnp.array([8, 6], dtype=jnp.int32)
    mask_f = (jnp.arange(S)[None, None, :] < lengths[:, None, None]).astype(jnp.float32)

    probs = encoder_forward(src, mask_f, params, heads=HEADS)
    probs = jax.block_until_ready(probs)

    assert probs.shape == (B, S, VOCAB)
    assert bool(jnp.all(jnp.isfinite(probs)))
    assert bool(jnp.allclose(jnp.sum(probs, axis=-1), 1.0, atol=1e-4))
    print("KERNEL_OK")
</pallas_src>

<mosaic_0001>
module attributes {stable_mosaic.version = 11 : i64} {
  func.func @encoder_stack_kernel(%arg0: i32, %arg1: i32, %arg2: memref<8x32xf32, #tpu.memory_space<vmem>>, %arg3: memref<1x1x8xf32, #tpu.memory_space<vmem>>, %arg4: memref<1x1x32xf32, #tpu.memory_space<vmem>>, %arg5: memref<1x1x32xf32, #tpu.memory_space<vmem>>, %arg6: memref<1x1x32xf32, #tpu.memory_space<vmem>>, %arg7: memref<1x1x32xf32, #tpu.memory_space<vmem>>, %arg8: memref<1x32x96xbf16, #tpu.memory_space<vmem>>, %arg9: memref<1x1x96xf32, #tpu.memory_space<vmem>>, %arg10: memref<1x4x8x32xbf16, #tpu.memory_space<vmem>>, %arg11: memref<1x1x32xf32, #tpu.memory_space<vmem>>, %arg12: memref<1x32x2048xbf16, #tpu.memory_space<vmem>>, %arg13: memref<1x1x2048xf32, #tpu.memory_space<vmem>>, %arg14: memref<1x2048x32xbf16, #tpu.memory_space<vmem>>, %arg15: memref<1x1x32xf32, #tpu.memory_space<vmem>>, %arg16: memref<8x32xf32, #tpu.memory_space<vmem>>) attributes {dimension_semantics = [#tpu.dimension_semantics<parallel>, #tpu.dimension_semantics<arbitrary>], iteration_bounds = array<i64: 2, 2>, scalar_prefetch = 0 : i64, scratch_operands = 0 : i64, tpu.core_type = #tpu.core_type<tc>, window_params = [{transform_indices = @transform_0, window_bounds = array<i64: 8, 32>}, {transform_indices = @transform_1, window_bounds = array<i64: 1, 1, 8>}, {transform_indices = @transform_2, window_bounds = array<i64: 1, 1, 32>}, {transform_indices = @transform_3, window_bounds = array<i64: 1, 1, 32>}, {transform_indices = @transform_4, window_bounds = array<i64: 1, 1, 32>}, {transform_indices = @transform_5, window_bounds = array<i64: 1, 1, 32>}, {transform_indices = @transform_6, window_bounds = array<i64: 1, 32, 96>}, {transform_indices = @transform_7, window_bounds = array<i64: 1, 1, 96>}, {transform_indices = @transform_8, window_bounds = array<i64: 1, 4, 8, 32>}, {transform_indices = @transform_9, window_bounds = array<i64: 1, 1, 32>}, {transform_indices = @transform_10, window_bounds = array<i64: 1, 32, 2048>}, {transform_indices = @transform_11, window_bounds = array<i64: 1, 1, 2048>}, {transform_indices = @transform_12, window_bounds = array<i64: 1, 2048, 32>}, {transform_indices = @transform_13, window_bounds = array<i64: 1, 1, 32>}, {transform_indices = @transform_14, window_bounds = array<i64: 8, 32>}]} {
    %c0_i32 = arith.constant 0 : i32
    %0 = arith.cmpi eq, %arg1, %c0_i32 : i32
    %1 = arith.extui %0 : i1 to i32
    %c0_i32_0 = arith.constant 0 : i32
    %2 = arith.cmpi ne, %1, %c0_i32_0 : i32
    scf.if %2 {
      %c0_87 = arith.constant 0 : index
      %c0_88 = arith.constant 0 : index
      %212 = vector.load %arg2[%c0_87, %c0_88] : memref<8x32xf32, #tpu.memory_space<vmem>>, vector<8x32xf32>
      %c0_89 = arith.constant 0 : index
      %c0_90 = arith.constant 0 : index
      %213 = vector.load %arg16[%c0_89, %c0_90] : memref<8x32xf32, #tpu.memory_space<vmem>>, vector<8x32xf32>
      tpu.vector_store %arg16[%c0_89, %c0_90], %212 {strides = array<i32>} : memref<8x32xf32, #tpu.memory_space<vmem>>, vector<8x32xf32>,
    } else {
    }
    %c0 = arith.constant 0 : index
    %c0_1 = arith.constant 0 : index
    %3 = vector.load %arg16[%c0, %c0_1] : memref<8x32xf32, #tpu.memory_space<vmem>>, vector<8x32xf32>
    %c0_2 = arith.constant 0 : index
    %c0_3 = arith.constant 0 : index
    %c0_4 = arith.constant 0 : index
    %4 = vector.load %arg4[%c0_2, %c0_3, %c0_4] : memref<1x1x32xf32, #tpu.memory_space<vmem>>, vector<1x1x32xf32>
    %5 = vector.shape_cast %4 : vector<1x1x32xf32> to vector<1x32xf32>
    %c0_5 = arith.constant 0 : index
    %c0_6 = arith.constant 0 : index
    %c0_7 = arith.constant 0 : index
    %6 = vector.load %arg5[%c0_5, %c0_6, %c0_7] : memref<1x1x32xf32, #tpu.memory_space<vmem>>, vector<1x1x32xf32>
    %7 = vector.shape_cast %6 : vector<1x1x32xf32> to vector<1x32xf32>
    %cst = arith.constant dense<0.000000e+00> : vector<8xf32>
    %8 = vector.multi_reduction <add>, %3, %cst [1] : vector<8x32xf32> to vector<8xf32>
    %9 = vector.shape_cast %8 : vector<8xf32> to vector<8x1xf32>
    %cst_8 = arith.constant 3.200000e+01 : f32
    %10 = vector.broadcast %cst_8 : f32 to vector<8x1xf32>
    %11 = arith.divf %9, %10 : vector<8x1xf32>
    %12 = vector.broadcast %11 : vector<8x1xf32> to vector<8x32xf32>
    %13 = arith.subf %3, %12 : vector<8x32xf32>
    %14 = arith.mulf %13, %13 : vector<8x32xf32>
    %cst_9 = arith.constant dense<0.000000e+00> : vector<8xf32>
    %15 = vector.multi_reduction <add>, %14, %cst_9 [1] : vector<8x32xf32> to vector<8xf32>
    %16 = vector.shape_cast %15 : vector<8xf32> to vector<8x1xf32>
    %cst_10 = arith.constant 0.0322580636 : f32
    %17 = vector.broadcast %cst_10 : f32 to vector<8x1xf32>
    %18 = arith.mulf %16, %17 : vector<8x1xf32>
    %19 = math.sqrt %18 : vector<8x1xf32>
    %cst_11 = arith.constant 9.99999997E-7 : f32
    %20 = vector.broadcast %cst_11 : f32 to vector<8x1xf32>
    %21 = arith.addf %19, %20 : vector<8x1xf32>
    %22 = tpu.reciprocal %21 {approx = true} : vector<8x1xf32> -> vector<8x1xf32>
    %23 = vector.broadcast %22 : vector<8x1xf32> to vector<8x32xf32>
    %24 = arith.mulf %13, %23 : vector<8x32xf32>
    %25 = vector.broadcast %5 : vector<1x32xf32> to vector<8x32xf32>
    %26 = arith.mulf %25, %24 : vector<8x32xf32>
    %27 = vector.broadcast %7 : vector<1x32xf32> to vector<8x32xf32>
    %28 = arith.addf %26, %27 : vector<8x32xf32>
    %29 = arith.truncf %28 : vector<8x32xf32> to vector<8x32xbf16>
    %c0_12 = arith.constant 0 : index
    %c0_13 = arith.constant 0 : index
    %c0_14 = arith.constant 0 : index
    %30 = vector.load %arg8[%c0_12, %c0_13, %c0_14] : memref<1x32x96xbf16, #tpu.memory_space<vmem>>, vector<1x32x96xbf16>
    %31 = vector.shape_cast %30 : vector<1x32x96xbf16> to vector<32x96xbf16>
    %cst_15 = arith.constant dense<0.000000e+00> : vector<8x96xf32>
    %32 = tpu.matmul %29, %31, %cst_15 {dimension_numbers = #tpu.dot_dimension_numbers<[1], [0], [0], [1], [0, 0, 1, 1], [], []>} : vector<8x32xbf16>, vector<32x96xbf16>, vector<8x96xf32> -> vector<8x96xf32>
    %c0_16 = arith.constant 0 : index
    %c0_17 = arith.constant 0 : index
    %c0_18 = arith.constant 0 : index
    %33 = vector.load %arg9[%c0_16, %c0_17, %c0_18] : memref<1x1x96xf32, #tpu.memory_space<vmem>>, vector<1x1x96xf32>
    %34 = vector.shape_cast %33 : vector<1x1x96xf32> to vector<1x96xf32>
    %35 = vector.broadcast %34 : vector<1x96xf32> to vector<8x96xf32>
    %36 = arith.addf %32, %35 : vector<8x96xf32>
    %37 = vector.extract_strided_slice %36 {offsets = [0, 0], sizes = [8, 32], strides = [1, 1]} : vector<8x96xf32> to vector<8x32xf32>
    %38 = vector.extract_strided_slice %36 {offsets = [0, 32], sizes = [8, 32], strides = [1, 1]} : vector<8x96xf32> to vector<8x32xf32>
    %39 = vector.extract_strided_slice %36 {offsets = [0, 64], sizes = [8, 32], strides = [1, 1]} : vector<8x96xf32> to vector<8x32xf32>
    %c0_19 = arith.constant 0 : index
    %c0_20 = arith.constant 0 : index
    %c0_21 = arith.constant 0 : index
    %40 = vector.load %arg3[%c0_19, %c0_20, %c0_21] : memref<1x1x8xf32, #tpu.memory_space<vmem>>, vector<1x1x8xf32>
    %cst_22 = arith.constant 0.000000e+00 : f32
    %41 = vector.broadcast %cst_22 : f32 to vector<8x32xf32>
    %42 = vector.extract_strided_slice %37 {offsets = [0, 0], sizes = [8, 8], strides = [1, 1]} : vector<8x32xf32> to vector<8x8xf32>
    %43 = vector.shape_cast %42 : vector<8x8xf32> to vector<1x8x8xf32>
    %44 = arith.truncf %43 : vector<1x8x8xf32> to vector<1x8x8xbf16>
    %45 = vector.extract_strided_slice %38 {offsets = [0, 0], sizes = [8, 8], strides = [1, 1]} : vector<8x32xf32> to vector<8x8xf32>
    %46 = vector.shape_cast %45 : vector<8x8xf32> to vector<1x8x8xf32>
    %47 = arith.truncf %46 : vector<1x8x8xf32> to vector<1x8x8xbf16>
    %48 = vector.extract_strided_slice %39 {offsets = [0, 0], sizes = [8, 8], strides = [1, 1]} : vector<8x32xf32> to vector<8x8xf32>
    %49 = vector.shape_cast %48 : vector<8x8xf32> to vector<1x8x8xf32>
    %50 = arith.truncf %49 : vector<1x8x8xf32> to vector<1x8x8xbf16>
    "tpu.trace_start"() <{level = 10 : i32, message = "bqd,bkd->bqk"}> : () -> ()
    %cst_23 = arith.constant dense<0.000000e+00> : vector<1x8x8xf32>
    %51 = tpu.matmul %44, %47, %cst_23 {dimension_numbers = #tpu.dot_dimension_numbers<[2], [2], [1], [1], [0, 0, 0, 1, 1, 1], [0], [0]>} : vector<1x8x8xbf16>, vector<1x8x8xbf16>, vector<1x8x8xf32> -> vector<1x8x8xf32>
    "tpu.trace_stop"() : () -> ()
    %52 = vector.broadcast %40 : vector<1x1x8xf32> to vector<1x8x8xf32>
    %53 = arith.addf %51, %52 : vector<1x8x8xf32>
    %cst_24 = arith.constant dense<0xFF800000> : vector<1x8xf32>
    %54 = vector.multi_reduction <maximumf>, %53, %cst_24 [2] : vector<1x8x8xf32> to vector<1x8xf32>
    %55 = vector.shape_cast %54 : vector<1x8xf32> to vector<1x8x1xf32>
    %56 = vector.broadcast %55 : vector<1x8x1xf32> to vector<1x8x8xf32>
    %57 = arith.subf %53, %56 : vector<1x8x8xf32>
    %58 = math.exp %57 : vector<1x8x8xf32>
    %cst_25 = arith.constant dense<0.000000e+00> : vector<1x8xf32>
    %59 = vector.multi_reduction <add>, %58, %cst_25 [2] : vector<1x8x8xf32> to vector<1x8xf32>
    %60 = vector.shape_cast %59 : vector<1x8xf32> to vector<1x8x1xf32>
    %61 = tpu.reciprocal %60 {approx = true} : vector<1x8x1xf32> -> vector<1x8x1xf32>
    %62 = vector.broadcast %61 : vector<1x8x1xf32> to vector<1x8x8xf32>
    %63 = arith.mulf %58, %62 : vector<1x8x8xf32>
    %64 = arith.truncf %63 : vector<1x8x8xf32> to vector<1x8x8xbf16>
    "tpu.trace_start"() <{level = 10 : i32, message = "bqk,bkd->bqd"}> : () -> ()
    %cst_26 = arith.constant dense<0.000000e+00> : vector<1x8x8xf32>
    %65 = tpu.matmul %64, %50, %cst_26 {dimension_numbers = #tpu.dot_dimension_numbers<[2], [1], [1], [2], [0, 0, 0, 1, 1, 2], [0], [0]>} : vector<1x8x8xbf16>, vector<1x8x8xbf16>, vector<1x8x8xf32> -> vector<1x8x8xf32>
    "tpu.trace_stop"() : () -> ()
    %66 = vector.shape_cast %65 : vector<1x8x8xf32> to vector<8x8xf32>
    %67 = arith.truncf %66 : vector<8x8xf32> to vector<8x8xbf16>
    %c0_27 = arith.constant 0 : index
    %c0_28 = arith.constant 0 : index
    %c0_29 = arith.constant 0 : index
    %c0_30 = arith.constant 0 : index
    %68 = vector.load %arg10[%c0_27, %c0_28, %c0_29, %c0_30] : memref<1x4x8x32xbf16, #tpu.memory_space<vmem>>, vector<1x1x8x32xbf16>
    %69 = vector.shape_cast %68 : vector<1x1x8x32xbf16> to vector<8x32xbf16>
    %cst_31 = arith.constant dense<0.000000e+00> : vector<8x32xf32>
    %70 = tpu.matmul %67, %69, %cst_31 {dimension_numbers = #tpu.dot_dimension_numbers<[1], [0], [0], [1], [0, 0, 1, 1], [], []>} : vector<8x8xbf16>, vector<8x32xbf16>, vector<8x32xf32> -> vector<8x32xf32>
    %71 = arith.addf %41, %70 : vector<8x32xf32>
    %72 = vector.extract_strided_slice %37 {offsets = [0, 8], sizes = [8, 8], strides = [1, 1]} : vector<8x32xf32> to vector<8x8xf32>
    %73 = vector.shape_cast %72 : vector<8x8xf32> to vector<1x8x8xf32>
    %74 = arith.truncf %73 : vector<1x8x8xf32> to vector<1x8x8xbf16>
    %75 = vector.extract_strided_slice %38 {offsets = [0, 8], sizes = [8, 8], strides = [1, 1]} : vector<8x32xf32> to vector<8x8xf32>
    %76 = vector.shape_cast %75 : vector<8x8xf32> to vector<1x8x8xf32>
    %77 = arith.truncf %76 : vector<1x8x8xf32> to vector<1x8x8xbf16>
    %78 = vector.extract_strided_slice %39 {offsets = [0, 8], sizes = [8, 8], strides = [1, 1]} : vector<8x32xf32> to vector<8x8xf32>
    %79 = vector.shape_cast %78 : vector<8x8xf32> to vector<1x8x8xf32>
    %80 = arith.truncf %79 : vector<1x8x8xf32> to vector<1x8x8xbf16>
    "tpu.trace_start"() <{level = 10 : i32, message = "bqd,bkd->bqk"}> : () -> ()
    %cst_32 = arith.constant dense<0.000000e+00> : vector<1x8x8xf32>
    %81 = tpu.matmul %74, %77, %cst_32 {dimension_numbers = #tpu.dot_dimension_numbers<[2], [2], [1], [1], [0, 0, 0, 1, 1, 1], [0], [0]>} : vector<1x8x8xbf16>, vector<1x8x8xbf16>, vector<1x8x8xf32> -> vector<1x8x8xf32>
    "tpu.trace_stop"() : () -> ()
    %82 = vector.broadcast %40 : vector<1x1x8xf32> to vector<1x8x8xf32>
    %83 = arith.addf %81, %82 : vector<1x8x8xf32>
    %cst_33 = arith.constant dense<0xFF800000> : vector<1x8xf32>
    %84 = vector.multi_reduction <maximumf>, %83, %cst_33 [2] : vector<1x8x8xf32> to vector<1x8xf32>
    %85 = vector.shape_cast %84 : vector<1x8xf32> to vector<1x8x1xf32>
    %86 = vector.broadcast %85 : vector<1x8x1xf32> to vector<1x8x8xf32>
    %87 = arith.subf %83, %86 : vector<1x8x8xf32>
    %88 = math.exp %87 : vector<1x8x8xf32>
    %cst_34 = arith.constant dense<0.000000e+00> : vector<1x8xf32>
    %89 = vector.multi_reduction <add>, %88, %cst_34 [2] : vector<1x8x8xf32> to vector<1x8xf32>
    %90 = vector.shape_cast %89 : vector<1x8xf32> to vector<1x8x1xf32>
    %91 = tpu.reciprocal %90 {approx = true} : vector<1x8x1xf32> -> vector<1x8x1xf32>
    %92 = vector.broadcast %91 : vector<1x8x1xf32> to vector<1x8x8xf32>
    %93 = arith.mulf %88, %92 : vector<1x8x8xf32>
    %94 = arith.truncf %93 : vector<1x8x8xf32> to vector<1x8x8xbf16>
    "tpu.trace_start"() <{level = 10 : i32, message = "bqk,bkd->bqd"}> : () -> ()
    %cst_35 = arith.constant dense<0.000000e+00> : vector<1x8x8xf32>
    %95 = tpu.matmul %94, %80, %cst_35 {dimension_numbers = #tpu.dot_dimension_numbers<[2], [1], [1], [2], [0, 0, 0, 1, 1, 2], [0], [0]>} : vector<1x8x8xbf16>, vector<1x8x8xbf16>, vector<1x8x8xf32> -> vector<1x8x8xf32>
    "tpu.trace_stop"() : () -> ()
    %96 = vector.shape_cast %95 : vector<1x8x8xf32> to vector<8x8xf32>
    %97 = arith.truncf %96 : vector<8x8xf32> to vector<8x8xbf16>
    %c0_36 = arith.constant 0 : index
    %c1 = arith.constant 1 : index
    %c0_37 = arith.constant 0 : index
    %c0_38 = arith.constant 0 : index
    %98 = vector.load %arg10[%c0_36, %c1, %c0_37, %c0_38] : memref<1x4x8x32xbf16, #tpu.memory_space<vmem>>, vector<1x1x8x32xbf16>
    %99 = vector.shape_cast %98 : vector<1x1x8x32xbf16> to vector<8x32xbf16>
    %cst_39 = arith.constant dense<0.000000e+00> : vector<8x32xf32>
    %100 = tpu.matmul %97, %99, %cst_39 {dimension_numbers = #tpu.dot_dimension_numbers<[1], [0], [0], [1], [0, 0, 1, 1], [], []>} : vector<8x8xbf16>, vector<8x32xbf16>, vector<8x32xf32> -> vector<8x32xf32>
    %101 = arith.addf %71, %100 : vector<8x32xf32>
    %102 = vector.extract_strided_slice %37 {offsets = [0, 16], sizes = [8, 8], strides = [1, 1]} : vector<8x32xf32> to vector<8x8xf32>
    %103 = vector.shape_cast %102 : vector<8x8xf32> to vector<1x8x8xf32>
    %104 = arith.truncf %103 : vector<1x8x8xf32> to vector<1x8x8xbf16>
    %105 = vector.extract_strided_slice %38 {offsets = [0, 16], sizes = [8, 8], strides = [1, 1]} : vector<8x32xf32> to vector<8x8xf32>
    %106 = vector.shape_cast %105 : vector<8x8xf32> to vector<1x8x8xf32>
    %107 = arith.truncf %106 : vector<1x8x8xf32> to vector<1x8x8xbf16>
    %108 = vector.extract_strided_slice %39 {offsets = [0, 16], sizes = [8, 8], strides = [1, 1]} : vector<8x32xf32> to vector<8x8xf32>
    %109 = vector.shape_cast %108 : vector<8x8xf32> to vector<1x8x8xf32>
    %110 = arith.truncf %109 : vector<1x8x8xf32> to vector<1x8x8xbf16>
    "tpu.trace_start"() <{level = 10 : i32, message = "bqd,bkd->bqk"}> : () -> ()
    %cst_40 = arith.constant dense<0.000000e+00> : vector<1x8x8xf32>
    %111 = tpu.matmul %104, %107, %cst_40 {dimension_numbers = #tpu.dot_dimension_numbers<[2], [2], [1], [1], [0, 0, 0, 1, 1, 1], [0], [0]>} : vector<1x8x8xbf16>, vector<1x8x8xbf16>, vector<1x8x8xf32> -> vector<1x8x8xf32>
    "tpu.trace_stop"() : () -> ()
    %112 = vector.broadcast %40 : vector<1x1x8xf32> to vector<1x8x8xf32>
    %113 = arith.addf %111, %112 : vector<1x8x8xf32>
    %cst_41 = arith.constant dense<0xFF800000> : vector<1x8xf32>
    %114 = vector.multi_reduction <maximumf>, %113, %cst_41 [2] : vector<1x8x8xf32> to vector<1x8xf32>
    %115 = vector.shape_cast %114 : vector<1x8xf32> to vector<1x8x1xf32>
    %116 = vector.broadcast %115 : vector<1x8x1xf32> to vector<1x8x8xf32>
    %117 = arith.subf %113, %116 : vector<1x8x8xf32>
    %118 = math.exp %117 : vector<1x8x8xf32>
    %cst_42 = arith.constant dense<0.000000e+00> : vector<1x8xf32>
    %119 = vector.multi_reduction <add>, %118, %cst_42 [2] : vector<1x8x8xf32> to vector<1x8xf32>
    %120 = vector.shape_cast %119 : vector<1x8xf32> to vector<1x8x1xf32>
    %121 = tpu.reciprocal %120 {approx = true} : vector<1x8x1xf32> -> vector<1x8x1xf32>
    %122 = vector.broadcast %121 : vector<1x8x1xf32> to vector<1x8x8xf32>
    %123 = arith.mulf %118, %122 : vector<1x8x8xf32>
    %124 = arith.truncf %123 : vector<1x8x8xf32> to vector<1x8x8xbf16>
    "tpu.trace_start"() <{level = 10 : i32, message = "bqk,bkd->bqd"}> : () -> ()
    %cst_43 = arith.constant dense<0.000000e+00> : vector<1x8x8xf32>
    %125 = tpu.matmul %124, %110, %cst_43 {dimension_numbers = #tpu.dot_dimension_numbers<[2], [1], [1], [2], [0, 0, 0, 1, 1, 2], [0], [0]>} : vector<1x8x8xbf16>, vector<1x8x8xbf16>, vector<1x8x8xf32> -> vector<1x8x8xf32>
    "tpu.trace_stop"() : () -> ()
    %126 = vector.shape_cast %125 : vector<1x8x8xf32> to vector<8x8xf32>
    %127 = arith.truncf %126 : vector<8x8xf32> to vector<8x8xbf16>
    %c0_44 = arith.constant 0 : index
    %c2 = arith.constant 2 : index
    %c0_45 = arith.constant 0 : index
    %c0_46 = arith.constant 0 : index
    %128 = vector.load %arg10[%c0_44, %c2, %c0_45, %c0_46] : memref<1x4x8x32xbf16, #tpu.memory_space<vmem>>, vector<1x1x8x32xbf16>
    %129 = vector.shape_cast %128 : vector<1x1x8x32xbf16> to vector<8x32xbf16>
    %cst_47 = arith.constant dense<0.000000e+00> : vector<8x32xf32>
    %130 = tpu.matmul %127, %129, %cst_47 {dimension_numbers = #tpu.dot_dimension_numbers<[1], [0], [0], [1], [0, 0, 1, 1], [], []>} : vector<8x8xbf16>, vector<8x32xbf16>, vector<8x32xf32> -> vector<8x32xf32>
    %131 = arith.addf %101, %130 : vector<8x32xf32>
    %132 = vector.extract_strided_slice %37 {offsets = [0, 24], sizes = [8, 8], strides = [1, 1]} : vector<8x32xf32> to vector<8x8xf32>
    %133 = vector.shape_cast %132 : vector<8x8xf32> to vector<1x8x8xf32>
    %134 = arith.truncf %133 : vector<1x8x8xf32> to vector<1x8x8xbf16>
    %135 = vector.extract_strided_slice %38 {offsets = [0, 24], sizes = [8, 8], strides = [1, 1]} : vector<8x32xf32> to vector<8x8xf32>
    %136 = vector.shape_cast %135 : vector<8x8xf32> to vector<1x8x8xf32>
    %137 = arith.truncf %136 : vector<1x8x8xf32> to vector<1x8x8xbf16>
    %138 = vector.extract_strided_slice %39 {offsets = [0, 24], sizes = [8, 8], strides = [1, 1]} : vector<8x32xf32> to vector<8x8xf32>
    %139 = vector.shape_cast %138 : vector<8x8xf32> to vector<1x8x8xf32>
    %140 = arith.truncf %139 : vector<1x8x8xf32> to vector<1x8x8xbf16>
    "tpu.trace_start"() <{level = 10 : i32, message = "bqd,bkd->bqk"}> : () -> ()
    %cst_48 = arith.constant dense<0.000000e+00> : vector<1x8x8xf32>
    %141 = tpu.matmul %134, %137, %cst_48 {dimension_numbers = #tpu.dot_dimension_numbers<[2], [2], [1], [1], [0, 0, 0, 1, 1, 1], [0], [0]>} : vector<1x8x8xbf16>, vector<1x8x8xbf16>, vector<1x8x8xf32> -> vector<1x8x8xf32>
    "tpu.trace_stop"() : () -> ()
    %142 = vector.broadcast %40 : vector<1x1x8xf32> to vector<1x8x8xf32>
    %143 = arith.addf %141, %142 : vector<1x8x8xf32>
    %cst_49 = arith.constant dense<0xFF800000> : vector<1x8xf32>
    %144 = vector.multi_reduction <maximumf>, %143, %cst_49 [2] : vector<1x8x8xf32> to vector<1x8xf32>
    %145 = vector.shape_cast %144 : vector<1x8xf32> to vector<1x8x1xf32>
    %146 = vector.broadcast %145 : vector<1x8x1xf32> to vector<1x8x8xf32>
    %147 = arith.subf %143, %146 : vector<1x8x8xf32>
    %148 = math.exp %147 : vector<1x8x8xf32>
    %cst_50 = arith.constant dense<0.000000e+00> : vector<1x8xf32>
    %149 = vector.multi_reduction <add>, %148, %cst_50 [2] : vector<1x8x8xf32> to vector<1x8xf32>
    %150 = vector.shape_cast %149 : vector<1x8xf32> to vector<1x8x1xf32>
    %151 = tpu.reciprocal %150 {approx = true} : vector<1x8x1xf32> -> vector<1x8x1xf32>
    %152 = vector.broadcast %151 : vector<1x8x1xf32> to vector<1x8x8xf32>
    %153 = arith.mulf %148, %152 : vector<1x8x8xf32>
    %154 = arith.truncf %153 : vector<1x8x8xf32> to vector<1x8x8xbf16>
    "tpu.trace_start"() <{level = 10 : i32, message = "bqk,bkd->bqd"}> : () -> ()
    %cst_51 = arith.constant dense<0.000000e+00> : vector<1x8x8xf32>
    %155 = tpu.matmul %154, %140, %cst_51 {dimension_numbers = #tpu.dot_dimension_numbers<[2], [1], [1], [2], [0, 0, 0, 1, 1, 2], [0], [0]>} : vector<1x8x8xbf16>, vector<1x8x8xbf16>, vector<1x8x8xf32> -> vector<1x8x8xf32>
    "tpu.trace_stop"() : () -> ()
    %156 = vector.shape_cast %155 : vector<1x8x8xf32> to vector<8x8xf32>
    %157 = arith.truncf %156 : vector<8x8xf32> to vector<8x8xbf16>
    %c0_52 = arith.constant 0 : index
    %c3 = arith.constant 3 : index
    %c0_53 = arith.constant 0 : index
    %c0_54 = arith.constant 0 : index
    %158 = vector.load %arg10[%c0_52, %c3, %c0_53, %c0_54] : memref<1x4x8x32xbf16, #tpu.memory_space<vmem>>, vector<1x1x8x32xbf16>
    %159 = vector.shape_cast %158 : vector<1x1x8x32xbf16> to vector<8x32xbf16>
    %cst_55 = arith.constant dense<0.000000e+00> : vector<8x32xf32>
    %160 = tpu.matmul %157, %159, %cst_55 {dimension_numbers = #tpu.dot_dimension_numbers<[1], [0], [0], [1], [0, 0, 1, 1], [], []>} : vector<8x8xbf16>, vector<8x32xbf16>, vector<8x32xf32> -> vector<8x32xf32>
    %161 = arith.addf %131, %160 : vector<8x32xf32>
    %c0_56 = arith.constant 0 : index
    %c0_57 = arith.constant 0 : index
    %c0_58 = arith.constant 0 : index
    %162 = vector.load %arg11[%c0_56, %c0_57, %c0_58] : memref<1x1x32xf32, #tpu.memory_space<vmem>>, vector<1x1x32xf32>
    %163 = vector.shape_cast %162 : vector<1x1x32xf32> to vector<1x32xf32>
    %164 = vector.broadcast %163 : vector<1x32xf32> to vector<8x32xf32>
    %165 = arith.addf %161, %164 : vector<8x32xf32>
    %166 = arith.addf %28, %165 : vector<8x32xf32>
    %c0_59 = arith.constant 0 : index
    %c0_60 = arith.constant 0 : index
    %c0_61 = arith.constant 0 : index
    %167 = vector.load %arg6[%c0_59, %c0_60, %c0_61] : memref<1x1x32xf32, #tpu.memory_space<vmem>>, vector<1x1x32xf32>
    %168 = vector.shape_cast %167 : vector<1x1x32xf32> to vector<1x32xf32>
    %c0_62 = arith.constant 0 : index
    %c0_63 = arith.constant 0 : index
    %c0_64 = arith.constant 0 : index
    %169 = vector.load %arg7[%c0_62, %c0_63, %c0_64] : memref<1x1x32xf32, #tpu.memory_space<vmem>>, vector<1x1x32xf32>
    %170 = vector.shape_cast %169 : vector<1x1x32xf32> to vector<1x32xf32>
    %cst_65 = arith.constant dense<0.000000e+00> : vector<8xf32>
    %171 = vector.multi_reduction <add>, %166, %cst_65 [1] : vector<8x32xf32> to vector<8xf32>
    %172 = vector.shape_cast %171 : vector<8xf32> to vector<8x1xf32>
    %cst_66 = arith.constant 3.200000e+01 : f32
    %173 = vector.broadcast %cst_66 : f32 to vector<8x1xf32>
    %174 = arith.divf %172, %173 : vector<8x1xf32>
    %175 = vector.broadcast %174 : vector<8x1xf32> to vector<8x32xf32>
    %176 = arith.subf %166, %175 : vector<8x32xf32>
    %177 = arith.mulf %176, %176 : vector<8x32xf32>
    %cst_67 = arith.constant dense<0.000000e+00> : vector<8xf32>
    %178 = vector.multi_reduction <add>, %177, %cst_67 [1] : vector<8x32xf32> to vector<8xf32>
    %179 = vector.shape_cast %178 : vector<8xf32> to vector<8x1xf32>
    %cst_68 = arith.constant 0.0322580636 : f32
    %180 = vector.broadcast %cst_68 : f32 to vector<8x1xf32>
    %181 = arith.mulf %179, %180 : vector<8x1xf32>
    %182 = math.sqrt %181 : vector<8x1xf32>
    %cst_69 = arith.constant 9.99999997E-7 : f32
    %183 = vector.broadcast %cst_69 : f32 to vector<8x1xf32>
    %184 = arith.addf %182, %183 : vector<8x1xf32>
    %185 = tpu.reciprocal %184 {approx = true} : vector<8x1xf32> -> vector<8x1xf32>
    %186 = vector.broadcast %185 : vector<8x1xf32> to vector<8x32xf32>
    %187 = arith.mulf %176, %186 : vector<8x32xf32>
    %188 = vector.broadcast %168 : vector<1x32xf32> to vector<8x32xf32>
    %189 = arith.mulf %188, %187 : vector<8x32xf32>
    %190 = vector.broadcast %170 : vector<1x32xf32> to vector<8x32xf32>
    %191 = arith.addf %189, %190 : vector<8x32xf32>
    %192 = arith.truncf %191 : vector<8x32xf32> to vector<8x32xbf16>
    %c0_70 = arith.constant 0 : index
    %c0_71 = arith.constant 0 : index
    %c0_72 = arith.constant 0 : index
    %193 = vector.load %arg12[%c0_70, %c0_71, %c0_72] : memref<1x32x2048xbf16, #tpu.memory_space<vmem>>, vector<1x32x2048xbf16>
    %194 = vector.shape_cast %193 : vector<1x32x2048xbf16> to vector<32x2048xbf16>
    %cst_73 = arith.constant dense<0.000000e+00> : vector<8x2048xf32>
    %195 = tpu.matmul %192, %194, %cst_73 {dimension_numbers = #tpu.dot_dimension_numbers<[1], [0], [0], [1], [0, 0, 1, 1], [], []>} : vector<8x32xbf16>, vector<32x2048xbf16>, vector<8x2048xf32> -> vector<8x2048xf32>
    %c0_74 = arith.constant 0 : index
    %c0_75 = arith.constant 0 : index
    %c0_76 = arith.constant 0 : index
    %196 = vector.load %arg13[%c0_74, %c0_75, %c0_76] : memref<1x1x2048xf32, #tpu.memory_space<vmem>>, vector<1x1x2048xf32>
    %197 = vector.shape_cast %196 : vector<1x1x2048xf32> to vector<1x2048xf32>
    %198 = vector.broadcast %197 : vector<1x2048xf32> to vector<8x2048xf32>
    %199 = arith.addf %195, %198 : vector<8x2048xf32>
    %cst_77 = arith.constant 0.000000e+00 : f32
    %200 = vector.broadcast %cst_77 : f32 to vector<8x2048xf32>
    %201 = arith.maximumf %199, %200 : vector<8x2048xf32>
    %202 = arith.truncf %201 : vector<8x2048xf32> to vector<8x2048xbf16>
    %c0_78 = arith.constant 0 : index
    %c0_79 = arith.constant 0 : index
    %c0_80 = arith.constant 0 : index
    %203 = vector.load %arg14[%c0_78, %c0_79, %c0_80] : memref<1x2048x32xbf16, #tpu.memory_space<vmem>>, vector<1x2048x32xbf16>
    %204 = vector.shape_cast %203 : vector<1x2048x32xbf16> to vector<2048x32xbf16>
    %cst_81 = arith.constant dense<0.000000e+00> : vector<8x32xf32>
    %205 = tpu.matmul %202, %204, %cst_81 {dimension_numbers = #tpu.dot_dimension_numbers<[1], [0], [0], [1], [0, 0, 1, 1], [], []>} : vector<8x2048xbf16>, vector<2048x32xbf16>, vector<8x32xf32> -> vector<8x32xf32>
    %c0_82 = arith.constant 0 : index
    %c0_83 = arith.constant 0 : index
    %c0_84 = arith.constant 0 : index
    %206 = vector.load %arg15[%c0_82, %c0_83, %c0_84] : memref<1x1x32xf32, #tpu.memory_space<vmem>>, vector<1x1x32xf32>
    %207 = vector.shape_cast %206 : vector<1x1x32xf32> to vector<1x32xf32>
    %208 = vector.broadcast %207 : vector<1x32xf32> to vector<8x32xf32>
    %209 = arith.addf %205, %208 : vector<8x32xf32>
    %210 = arith.addf %166, %209 : vector<8x32xf32>
    %c0_85 = arith.constant 0 : index
    %c0_86 = arith.constant 0 : index
    %211 = vector.load %arg16[%c0_85, %c0_86] : memref<8x32xf32, #tpu.memory_space<vmem>>, vector<8x32xf32>
    tpu.vector_store %arg16[%c0_85, %c0_86], %210 {strides = array<i32>} : memref<8x32xf32, #tpu.memory_space<vmem>>, vector<8x32xf32>,
    return
  }
  func.func @transform_0(%arg0: i32, %arg1: i32) -> (i32, i32) {
    %c0_i32 = arith.constant 0 : i32
    %c0_i32_0 = arith.constant 0 : i32
    return %arg0, %c0_i32 : i32, i32
  }
  func.func @transform_1(%arg0: i32, %arg1: i32) -> (i32, i32, i32) {
    %c0_i32 = arith.constant 0 : i32
    %c0_i32_0 = arith.constant 0 : i32
    %c0_i32_1 = arith.constant 0 : i32
    return %arg0, %c0_i32, %c0_i32_0 : i32, i32, i32
  }
  func.func @transform_2(%arg0: i32, %arg1: i32) -> (i32, i32, i32) {
    %c0_i32 = arith.constant 0 : i32
    %c0_i32_0 = arith.constant 0 : i32
    %c0_i32_1 = arith.constant 0 : i32
    return %arg1, %c0_i32, %c0_i32_0 : i32, i32, i32
  }
  func.func @transform_3(%arg0: i32, %arg1: i32) -> (i32, i32, i32) {
    %c0_i32 = arith.constant 0 : i32
    %c0_i32_0 = arith.constant 0 : i32
    %c0_i32_1 = arith.constant 0 : i32
    return %arg1, %c0_i32, %c0_i32_0 : i32, i32, i32
  }
  func.func @transform_4(%arg0: i32, %arg1: i32) -> (i32, i32, i32) {
    %c0_i32 = arith.constant 0 : i32
    %c0_i32_0 = arith.constant 0 : i32
    %c0_i32_1 = arith.constant 0 : i32
    return %arg1, %c0_i32, %c0_i32_0 : i32, i32, i32
  }
  func.func @transform_5(%arg0: i32, %arg1: i32) -> (i32, i32, i32) {
    %c0_i32 = arith.constant 0 : i32
    %c0_i32_0 = arith.constant 0 : i32
    %c0_i32_1 = arith.constant 0 : i32
    return %arg1, %c0_i32, %c0_i32_0 : i32, i32, i32
  }
  func.func @transform_6(%arg0: i32, %arg1: i32) -> (i32, i32, i32) {
    %c0_i32 = arith.constant 0 : i32
    %c0_i32_0 = arith.constant 0 : i32
    %c0_i32_1 = arith.constant 0 : i32
    return %arg1, %c0_i32, %c0_i32_0 : i32, i32, i32
  }
  func.func @transform_7(%arg0: i32, %arg1: i32) -> (i32, i32, i32) {
    %c0_i32 = arith.constant 0 : i32
    %c0_i32_0 = arith.constant 0 : i32
    %c0_i32_1 = arith.constant 0 : i32
    return %arg1, %c0_i32, %c0_i32_0 : i32, i32, i32
  }
  func.func @transform_8(%arg0: i32, %arg1: i32) -> (i32, i32, i32, i32) {
    %c0_i32 = arith.constant 0 : i32
    %c0_i32_0 = arith.constant 0 : i32
    %c0_i32_1 = arith.constant 0 : i32
    %c0_i32_2 = arith.constant 0 : i32
    return %arg1, %c0_i32, %c0_i32_0, %c0_i32_1 : i32, i32, i32, i32
  }
  func.func @transform_9(%arg0: i32, %arg1: i32) -> (i32, i32, i32) {
    %c0_i32 = arith.constant 0 : i32
    %c0_i32_0 = arith.constant 0 : i32
    %c0_i32_1 = arith.constant 0 : i32
    return %arg1, %c0_i32, %c0_i32_0 : i32, i32, i32
  }
  func.func @transform_10(%arg0: i32, %arg1: i32) -> (i32, i32, i32) {
    %c0_i32 = arith.constant 0 : i32
    %c0_i32_0 = arith.constant 0 : i32
    %c0_i32_1 = arith.constant 0 : i32
    return %arg1, %c0_i32, %c0_i32_0 : i32, i32, i32
  }
  func.func @transform_11(%arg0: i32, %arg1: i32) -> (i32, i32, i32) {
    %c0_i32 = arith.constant 0 : i32
    %c0_i32_0 = arith.constant 0 : i32
    %c0_i32_1 = arith.constant 0 : i32
    return %arg1, %c0_i32, %c0_i32_0 : i32, i32, i32
  }
  func.func @transform_12(%arg0: i32, %arg1: i32) -> (i32, i32, i32) {
    %c0_i32 = arith.constant 0 : i32
    %c0_i32_0 = arith.constant 0 : i32
    %c0_i32_1 = arith.constant 0 : i32
    return %arg1, %c0_i32, %c0_i32_0 : i32, i32, i32
  }
  func.func @transform_13(%arg0: i32, %arg1: i32) -> (i32, i32, i32) {
    %c0_i32 = arith.constant 0 : i32
    %c0_i32_0 = arith.constant 0 : i32
    %c0_i32_1 = arith.constant 0 : i32
    return %arg1, %c0_i32, %c0_i32_0 : i32, i32, i32
  }
  func.func @transform_14(%arg0: i32, %arg1: i32) -> (i32, i32) {
    %c0_i32 = arith.constant 0 : i32
    %c0_i32_0 = arith.constant 0 : i32
    return %arg0, %c0_i32 : i32, i32
  }
}

</mosaic_0001>

<llo_original>
// kernel: tpu_custom_call.1
$region0: #{tpu_custom_call.1}
  #allocation0 [shape = 'u32[]', space=smem, size = 0x4, offset = 0x4, fixed_abs, tag = 'smem constant byte address 0x4 - core index']
  #allocation1 [shape = 'u32[144,128]{1,0:T(1,128)}', space=vmem, size = 0x12000, scoped, tag = 'internal scratch']
  %s0 = inlined_call_operand.vmem [shape: f32[16,32], index: 0, kind: input, shape index: {}]
  %s1 = inlined_call_operand.vmem [shape: f32[2,1,8], index: 1, kind: input, shape index: {}]
  %s2 = inlined_call_operand.vmem [shape: f32[2,1,32], index: 2, kind: input, shape index: {}]
  %s3 = inlined_call_operand.vmem [shape: f32[2,1,32], index: 3, kind: input, shape index: {}]
  %s4 = inlined_call_operand.vmem [shape: f32[2,1,32], index: 4, kind: input, shape index: {}]
  %s5 = inlined_call_operand.vmem [shape: f32[2,1,32], index: 5, kind: input, shape index: {}]
  %s6 = inlined_call_operand.vmem [shape: bf16[2,32,96], index: 6, kind: input, shape index: {}]
  %s7 = inlined_call_operand.vmem [shape: f32[2,1,96], index: 7, kind: input, shape index: {}]
  %s8 = inlined_call_operand.vmem [shape: bf16[2,4,8,32], index: 8, kind: input, shape index: {}]
  %s9 = inlined_call_operand.vmem [shape: f32[2,1,32], index: 9, kind: input, shape index: {}]
  %s10 = inlined_call_operand.vmem [shape: bf16[2,32,2048], index: 10, kind: input, shape index: {}]
  %s11 = inlined_call_operand.vmem [shape: f32[2,1,2048], index: 11, kind: input, shape index: {}]
  %s12 = inlined_call_operand.vmem [shape: bf16[2,2048,32], index: 12, kind: input, shape index: {}]
  %s13 = inlined_call_operand.vmem [shape: f32[2,1,32], index: 13, kind: input, shape index: {}]
  %s14 = inlined_call_operand.hbm [shape: f32[16,32], index: 14, kind: output, shape index: {}]
  %s15 = sld [smem:[#allocation0]]
  $region93: #{tpu_custom_call.1} parent=0
    _
  %s17 = ssub.s32 1, %s15
  %s18 = scalar_select 0, %s17, %s15
  $region1: #{tpu_custom_call.1} parent=0
    #allocation2 [shape = 'u8[8192]{0}', space=vmem, size = 0x2000, scoped, tag = 'output window, operand 0']
    #allocation3 [shape = 's32[2]{0}', space=sflag, size = 0x8, scoped, tag = 'scoped memory for tpu_custom_call.1']
    %19 = vsyncpa [#allocation3], 0
    %s20 = scalar_lea.sflag [#allocation3], 1
    %21 = vsyncpa %s20, 0
    loop: start=0, step=1, limit=6
    $region2: #{tpu_custom_call.1} parent=1 // loop_pre_header
      _
    $region3: #{tpu_custom_call.1} parent=1 // loop_header
      %s23 = sphi 0, %s27
      %p24 = scmp.ge.s32.totalorder %s23, 6
      %s30 = sphi 0, %s42
      %s31 = sphi 0, %s38
      %s32 = sphi 0, %s30
      %s33 = sphi 0, %s31
      %s34 = sphi 0, %s32
      %s35 = sphi 0, %s33
      %s45 = sphi 0, %s47
      %s48 = sphi 0, %s45
      %s49 = sphi 0, %s48
      %s65 = sphi 0, %s49
      %s71 = sphi 0, %s73
      %s74 = sphi 0, %s71
      %s75 = sphi 0, %s74
      %s91 = sphi 0, %s75
      %s97 = sphi 0, %s99
      %s100 = sphi 0, %s97
      %s101 = sphi 0, %s100
      %s117 = sphi 0, %s101
      %s123 = sphi 0, %s125
      %s126 = sphi 0, %s123
      %s127 = sphi 0, %s126
      %s143 = sphi 0, %s127
      %s149 = sphi 0, %s151
      %s152 = sphi 0, %s149
      %s153 = sphi 0, %s152
      %s169 = sphi 0, %s153
      %s175 = sphi 0, %s177
      %s178 = sphi 0, %s175
      %s179 = sphi 0, %s178
      %s195 = sphi 0, %s179
      %s201 = sphi 0, %s203
      %s204 = sphi 0, %s201
      %s205 = sphi 0, %s204
      %s221 = sphi 0, %s205
      %s227 = sphi 0, %s229
      %s230 = sphi 0, %s227
      %s231 = sphi 0, %s230
      %s247 = sphi 0, %s231
      %s253 = sphi 0, %s255
      %s256 = sphi 0, %s253
      %s257 = sphi 0, %s256
      %s273 = sphi 0, %s257
      %s279 = sphi 0, %s281
      %s282 = sphi 0, %s279
      %s283 = sphi 0, %s282
      %s299 = sphi 0, %s283
      %s305 = sphi 0, %s307
      %s308 = sphi 0, %s305
      %s309 = sphi 0, %s308
      %s325 = sphi 0, %s309
      %s331 = sphi 0, %s333
      %s334 = sphi 0, %s331
      %s335 = sphi 0, %s334
      %s351 = sphi 0, %s335
      %s357 = sphi 0, %s359
      %s360 = sphi 0, %s357
      %s361 = sphi 0, %s360
      %s377 = sphi 0, %s361
      %s383 = sphi 0, %s385
      %s386 = sphi 0, %s383
      %s387 = sphi 0, %s386
      %s403 = sphi 0, %s387
      %s409 = sphi 0, %s411
      %s412 = sphi 0, %s409
      %s413 = sphi 0, %s412
      %s429 = sphi 0, %s413
    $region4: #{tpu_custom_call.1} parent=1 // loop_header_branch
      %26 = sbr.rel (%p24) target = $region8
    $region5: #{tpu_custom_call.1} parent=1 // loop_body
      %s28 = ssub.s32 %s23, 1
      %s29 = ssub.s32 %s23, 2
      %s36 = sadd.s32 1, %s31
      %p37 = scmp.ge.s32.totalorder %s36, 2
      %s38 = scalar_select %p37, 0, %s36
      %s39 = sadd.s32 1, %s30
      %s40 = scalar_select %p37, %s39, %s30
      %p41 = scmp.ge.s32.totalorder %s40, 2
      %s42 = scalar_select %p41, 0, %s40
      %s43 = ssub.s32 %s30, %s42
      %p44 = scmp.eq.s32.totalorder %s43, 0
      %s46 = sadd.s32 %s45, 1
      %s47 = scalar_select %p44, %s45, %s46
      %p50 = pneg %p44
      %p51 = scmp.eq.s32.totalorder %s23, 3
      %p52 = por %p50, %p51
      %p53 = scmp.ne.s32.totalorder %s45, %s48
      %p54 = scmp.eq.s32.totalorder %s23, 0
      %p55 = por %p53, %p54
      %p56 = scmp.ne.s32.totalorder %s45, %s48
      %p57 = scmp.eq.s32.totalorder %s28, 3
      %p58 = por %p56, %p57
      %p59 = scmp.ne.s32.totalorder %s48, %s49
      %p60 = scmp.eq.s32.totalorder %s28, 0
      %p61 = por %p59, %p60
      %p62 = scmp.ne.s32.totalorder %s48, %s49
      %p63 = scmp.eq.s32.totalorder %s29, 3
      %p64 = por %p62, %p63
      %p66 = scmp.ne.s32.totalorder %s49, %s65
      %p67 = scmp.eq.s32.totalorder %s29, 0
      %p68 = por %p66, %p67
      %s69 = ssub.s32 %s30, %s42
      %p70 = scmp.eq.s32.totalorder %s69, 0
      %s72 = sadd.s32 %s71, 1
      %s73 = scalar_select %p70, %s71, %s72
      %p76 = pneg %p70
      %p77 = scmp.eq.s32.totalorder %s23, 3
      %p78 = por %p76, %p77
      %p79 = scmp.ne.s32.totalorder %s71, %s74
      %p80 = scmp.eq.s32.totalorder %s23, 0
      %p81 = por %p79, %p80
      %p82 = scmp.ne.s32.totalorder %s71, %s74
      %p83 = scmp.eq.s32.totalorder %s28, 3
      %p84 = por %p82, %p83
      %p85 = scmp.ne.s32.totalorder %s74, %s75
      %p86 = scmp.eq.s32.totalorder %s28, 0
      %p87 = por %p85, %p86
      %p88 = scmp.ne.s32.totalorder %s74, %s75
      %p89 = scmp.eq.s32.totalorder %s29, 3
      %p90 = por %p88, %p89
      %p92 = scmp.ne.s32.totalorder %s75, %s91
      %p93 = scmp.eq.s32.totalorder %s29, 0
      %p94 = por %p92, %p93
      %s95 = ssub.s32 %s31, %s38
      %p96 = scmp.eq.s32.totalorder %s95, 0
      %s98 = sadd.s32 %s97, 1
      %s99 = scalar_select %p96, %s97, %s98
      %p102 = pneg %p96
      %p103 = scmp.eq.s32.totalorder %s23, 3
      %p104 = por %p102, %p103
      %p105 = scmp.ne.s32.totalorder %s97, %s100
      %p106 = scmp.eq.s32.totalorder %s23, 0
      %p107 = por %p105, %p106
      %p108 = scmp.ne.s32.totalorder %s97, %s100
      %p109 = scmp.eq.s32.totalorder %s28, 3
      %p110 = por %p108, %p109
      %p111 = scmp.ne.s32.totalorder %s100, %s101
      %p112 = scmp.eq.s32.totalorder %s28, 0
      %p113 = por %p111, %p112
      %p114 = scmp.ne.s32.totalorder %s100, %s101
      %p115 = scmp.eq.s32.totalorder %s29, 3
      %p116 = por %p114, %p115
      %p118 = scmp.ne.s32.totalorder %s101, %s117
      %p119 = scmp.eq.s32.totalorder %s29, 0
      %p120 = por %p118, %p119
      %s121 = ssub.s32 %s31, %s38
      %p122 = scmp.eq.s32.totalorder %s121, 0
      %s124 = sadd.s32 %s123, 1
      %s125 = scalar_select %p122, %s123, %s124
      %p128 = pneg %p122
      %p129 = scmp.eq.s32.totalorder %s23, 3
      %p130 = por %p128, %p129
      %p131 = scmp.ne.s32.totalorder %s123, %s126
      %p132 = scmp.eq.s32.totalorder %s23, 0
      %p133 = por %p131, %p132
      %p134 = scmp.ne.s32.totalorder %s123, %s126
      %p135 = scmp.eq.s32.totalorder %s28, 3
      %p136 = por %p134, %p135
      %p137 = scmp.ne.s32.totalorder %s126, %s127
      %p138 = scmp.eq.s32.totalorder %s28, 0
      %p139 = por %p137, %p138
      %p140 = scmp.ne.s32.totalorder %s126, %s127
      %p141 = scmp.eq.s32.totalorder %s29, 3
      %p142 = por %p140, %p141
      %p144 = scmp.ne.s32.totalorder %s127, %s143
      %p145 = scmp.eq.s32.totalorder %s29, 0
      %p146 = por %p144, %p145
      %s147 = ssub.s32 %s31, %s38
      %p148 = scmp.eq.s32.totalorder %s147, 0
      %s150 = sadd.s32 %s149, 1
      %s151 = scalar_select %p148, %s149, %s150
      %p154 = pneg %p148
      %p155 = scmp.eq.s32.totalorder %s23, 3
      %p156 = por %p154, %p155
      %p157 = scmp.ne.s32.totalorder %s149, %s152
      %p158 = scmp.eq.s32.totalorder %s23, 0
      %p159 = por %p157, %p158
      %p160 = scmp.ne.s32.totalorder %s149, %s152
      %p161 = scmp.eq.s32.totalorder %s28, 3
      %p162 = por %p160, %p161
      %p163 = scmp.ne.s32.totalorder %s152, %s153
      %p164 = scmp.eq.s32.totalorder %s28, 0
      %p165 = por %p163, %p164
      %p166 = scmp.ne.s32.totalorder %s152, %s153
      %p167 = scmp.eq.s32.totalorder %s29, 3
      %p168 = por %p166, %p167
      %p170 = scmp.ne.s32.totalorder %s153, %s169
      %p171 = scmp.eq.s32.totalorder %s29, 0
      %p172 = por %p170, %p171
      %s173 = ssub.s32 %s31, %s38
      %p174 = scmp.eq.s32.totalorder %s173, 0
      %s176 = sadd.s32 %s175, 1
      %s177 = scalar_select %p174, %s175, %s176
      %p180 = pneg %p174
      %p181 = scmp.eq.s32.totalorder %s23, 3
      %p182 = por %p180, %p181
      %p183 = scmp.ne.s32.totalorder %s175, %s178
      %p184 = scmp.eq.s32.totalorder %s23, 0
      %p185 = por %p183, %p184
      %p186 = scmp.ne.s32.totalorder %s175, %s178
      %p187 = scmp.eq.s32.totalorder %s28, 3
      %p188 = por %p186, %p187
      %p189 = scmp.ne.s32.totalorder %s178, %s179
      %p190 = scmp.eq.s32.totalorder %s28, 0
      %p191 = por %p189, %p190
      %p192 = scmp.ne.s32.totalorder %s178, %s179
      %p193 = scmp.eq.s32.totalorder %s29, 3
      %p194 = por %p192, %p193
      %p196 = scmp.ne.s32.totalorder %s179, %s195
      %p197 = scmp.eq.s32.totalorder %s29, 0
      %p198 = por %p196, %p197
      %s199 = ssub.s32 %s31, %s38
      %p200 = scmp.eq.s32.totalorder %s199, 0
      %s202 = sadd.s32 %s201, 1
      %s203 = scalar_select %p200, %s201, %s202
      %p206 = pneg %p200
      %p207 = scmp.eq.s32.totalorder %s23, 3
      %p208 = por %p206, %p207
      %p209 = scmp.ne.s32.totalorder %s201, %s204
      %p210 = scmp.eq.s32.totalorder %s23, 0
      %p211 = por %p209, %p210
      %p212 = scmp.ne.s32.totalorder %s201, %s204
      %p213 = scmp.eq.s32.totalorder %s28, 3
      %p214 = por %p212, %p213
      %p215 = scmp.ne.s32.totalorder %s204, %s205
      %p216 = scmp.eq.s32.totalorder %s28, 0
      %p217 = por %p215, %p216
      %p218 = scmp.ne.s32.totalorder %s204, %s205
      %p219 = scmp.eq.s32.totalorder %s29, 3
      %p220 = por %p218, %p219
      %p222 = scmp.ne.s32.totalorder %s205, %s221
      %p223 = scmp.eq.s32.totalorder %s29, 0
      %p224 = por %p222, %p223
      %s225 = ssub.s32 %s31, %s38
      %p226 = scmp.eq.s32.totalorder %s225, 0
      %s228 = sadd.s32 %s227, 1
      %s229 = scalar_select %p226, %s227, %s228
      %p232 = pneg %p226
      %p233 = scmp.eq.s32.totalorder %s23, 3
      %p234 = por %p232, %p233
      %p235 = scmp.ne.s32.totalorder %s227, %s230
      %p236 = scmp.eq.s32.totalorder %s23, 0
      %p237 = por %p235, %p236
      %p238 = scmp.ne.s32.totalorder %s227, %s230
      %p239 = scmp.eq.s32.totalorder %s28, 3
      %p240 = por %p238, %p239
      %p241 = scmp.ne.s32.totalorder %s230, %s231
      %p242 = scmp.eq.s32.totalorder %s28, 0
      %p243 = por %p241, %p242
      %p244 = scmp.ne.s32.totalorder %s230, %s231
      %p245 = scmp.eq.s32.totalorder %s29, 3
      %p246 = por %p244, %p245
      %p248 = scmp.ne.s32.totalorder %s231, %s247
      %p249 = scmp.eq.s32.totalorder %s29, 0
      %p250 = por %p248, %p249
      %s251 = ssub.s32 %s31, %s38
      %p252 = scmp.eq.s32.totalorder %s251, 0
      %s254 = sadd.s32 %s253, 1
      %s255 = scalar_select %p252, %s253, %s254
      %p258 = pneg %p252
      %p259 = scmp.eq.s32.totalorder %s23, 3
      %p260 = por %p258, %p259
      %p261 = scmp.ne.s32.totalorder %s253, %s256
      %p262 = scmp.eq.s32.totalorder %s23, 0
      %p263 = por %p261, %p262
      %p264 = scmp.ne.s32.totalorder %s253, %s256
      %p265 = scmp.eq.s32.totalorder %s28, 3
      %p266 = por %p264, %p265
      %p267 = scmp.ne.s32.totalorder %s256, %s257
      %p268 = scmp.eq.s32.totalorder %s28, 0
      %p269 = por %p267, %p268
      %p270 = scmp.ne.s32.totalorder %s256, %s257
      %p271 = scmp.eq.s32.totalorder %s29, 3
      %p272 = por %p270, %p271
      %p274 = scmp.ne.s32.totalorder %s257, %s273
      %p275 = scmp.eq.s32.totalorder %s29, 0
      %p276 = por %p274, %p275
      %s277 = ssub.s32 %s31, %s38
      %p278 = scmp.eq.s32.totalorder %s277, 0
      %s280 = sadd.s32 %s279, 1
      %s281 = scalar_select %p278, %s279, %s280
      %p284 = pneg %p278
      %p285 = scmp.eq.s32.totalorder %s23, 3
      %p286 = por %p284, %p285
      %p287 = scmp.ne.s32.totalorder %s279, %s282
      %p288 = scmp.eq.s32.totalorder %s23, 0
      %p289 = por %p287, %p288
      %p290 = scmp.ne.s32.totalorder %s279, %s282
      %p291 = scmp.eq.s32.totalorder %s28, 3
      %p292 = por %p290, %p291
      %p293 = scmp.ne.s32.totalorder %s282, %s283
      %p294 = scmp.eq.s32.totalorder %s28, 0
      %p295 = por %p293, %p294
      %p296 = scmp.ne.s32.totalorder %s282, %s283
      %p297 = scmp.eq.s32.totalorder %s29, 3
      %p298 = por %p296, %p297
      %p300 = scmp.ne.s32.totalorder %s283, %s299
      %p301 = scmp.eq.s32.totalorder %s29, 0
      %p302 = por %p300, %p301
      %s303 = ssub.s32 %s31, %s38
      %p304 = scmp.eq.s32.totalorder %s303, 0
      %s306 = sadd.s32 %s305, 1
      %s307 = scalar_select %p304, %s305, %s306
      %p310 = pneg %p304
      %p311 = scmp.eq.s32.totalorder %s23, 3
      %p312 = por %p310, %p311
      %p313 = scmp.ne.s32.totalorder %s305, %s308
      %p314 = scmp.eq.s32.totalorder %s23, 0
      %p315 = por %p313, %p314
      %p316 = scmp.ne.s32.totalorder %s305, %s308
      %p317 = scmp.eq.s32.totalorder %s28, 3
      %p318 = por %p316, %p317
      %p319 = scmp.ne.s32.totalorder %s308, %s309
      %p320 = scmp.eq.s32.totalorder %s28, 0
      %p321 = por %p319, %p320
      %p322 = scmp.ne.s32.totalorder %s308, %s309
      %p323 = scmp.eq.s32.totalorder %s29, 3
      %p324 = por %p322, %p323
      %p326 = scmp.ne.s32.totalorder %s309, %s325
      %p327 = scmp.eq.s32.totalorder %s29, 0
      %p328 = por %p326, %p327
      %s329 = ssub.s32 %s31, %s38
      %p330 = scmp.eq.s32.totalorder %s329, 0
      %s332 = sadd.s32 %s331, 1
      %s333 = scalar_select %p330, %s331, %s332
      %p336 = pneg %p330
      %p337 = scmp.eq.s32.totalorder %s23, 3
      %p338 = por %p336, %p337
      %p339 = scmp.ne.s32.totalorder %s331, %s334
      %p340 = scmp.eq.s32.totalorder %s23, 0
      %p341 = por %p339, %p340
      %p342 = scmp.ne.s32.totalorder %s331, %s334
      %p343 = scmp.eq.s32.totalorder %s28, 3
      %p344 = por %p342, %p343
      %p345 = scmp.ne.s32.totalorder %s334, %s335
      %p346 = scmp.eq.s32.totalorder %s28, 0
      %p347 = por %p345, %p346
      %p348 = scmp.ne.s32.totalorder %s334, %s335
      %p349 = scmp.eq.s32.totalorder %s29, 3
      %p350 = por %p348, %p349
      %p352 = scmp.ne.s32.totalorder %s335, %s351
      %p353 = scmp.eq.s32.totalorder %s29, 0
      %p354 = por %p352, %p353
      %s355 = ssub.s32 %s31, %s38
      %p356 = scmp.eq.s32.totalorder %s355, 0
      %s358 = sadd.s32 %s357, 1
      %s359 = scalar_select %p356, %s357, %s358
      %p362 = pneg %p356
      %p363 = scmp.eq.s32.totalorder %s23, 3
      %p364 = por %p362, %p363
      %p365 = scmp.ne.s32.totalorder %s357, %s360
      %p366 = scmp.eq.s32.totalorder %s23, 0
      %p367 = por %p365, %p366
      %p368 = scmp.ne.s32.totalorder %s357, %s360
      %p369 = scmp.eq.s32.totalorder %s28, 3
      %p370 = por %p368, %p369
      %p371 = scmp.ne.s32.totalorder %s360, %s361
      %p372 = scmp.eq.s32.totalorder %s28, 0
      %p373 = por %p371, %p372
      %p374 = scmp.ne.s32.totalorder %s360, %s361
      %p375 = scmp.eq.s32.totalorder %s29, 3
      %p376 = por %p374, %p375
      %p378 = scmp.ne.s32.totalorder %s361, %s377
      %p379 = scmp.eq.s32.totalorder %s29, 0
      %p380 = por %p378, %p379
      %s381 = ssub.s32 %s31, %s38
      %p382 = scmp.eq.s32.totalorder %s381, 0
      %s384 = sadd.s32 %s383, 1
      %s385 = scalar_select %p382, %s383, %s384
      %p388 = pneg %p382
      %p389 = scmp.eq.s32.totalorder %s23, 3
      %p390 = por %p388, %p389
      %p391 = scmp.ne.s32.totalorder %s383, %s386
      %p392 = scmp.eq.s32.totalorder %s23, 0
      %p393 = por %p391, %p392
      %p394 = scmp.ne.s32.totalorder %s383, %s386
      %p395 = scmp.eq.s32.totalorder %s28, 3
      %p396 = por %p394, %p395
      %p397 = scmp.ne.s32.totalorder %s386, %s387
      %p398 = scmp.eq.s32.totalorder %s28, 0
      %p399 = por %p397, %p398
      %p400 = scmp.ne.s32.totalorder %s386, %s387
      %p401 = scmp.eq.s32.totalorder %s29, 3
      %p402 = por %p400, %p401
      %p404 = scmp.ne.s32.totalorder %s387, %s403
      %p405 = scmp.eq.s32.totalorder %s29, 0
      %p406 = por %p404, %p405
      %s407 = ssub.s32 %s30, %s42
      %p408 = scmp.eq.s32.totalorder %s407, 0
      %s410 = sadd.s32 %s409, 1
      %s411 = scalar_select %p408, %s409, %s410
      %p414 = pneg %p408
      %p415 = scmp.eq.s32.totalorder %s23, 3
      %p416 = por %p414, %p415
      %p417 = scmp.ne.s32.totalorder %s409, %s412
      %p418 = scmp.eq.s32.totalorder %s23, 0
      %p419 = por %p417, %p418
      %p420 = scmp.ne.s32.totalorder %s409, %s412
      %p421 = scmp.eq.s32.totalorder %s28, 3
      %p422 = por %p420, %p421
      %p423 = scmp.ne.s32.totalorder %s412, %s413
      %p424 = scmp.eq.s32.totalorder %s28, 0
      %p425 = por %p423, %p424
      %p426 = scmp.ne.s32.totalorder %s412, %s413
      %p427 = scmp.eq.s32.totalorder %s29, 3
      %p428 = por %p426, %p427
      %p430 = scmp.ne.s32.totalorder %s413, %s429
      %p431 = scmp.eq.s32.totalorder %s29, 0
      %p432 = por %p430, %p431
      %p433 = scmp.le.s32.totalorder 1, %s23
      %p434 = scmp.lt.s32.totalorder %s23, 5
      %p435 = pnand %p433, %p434
      %p436 = pneg %p435
      // Predicated region
      $region9: #{tpu_custom_call.1} parent=5 // pred_check
        _
      $region10: #{tpu_custom_call.1} parent=5 // pred_check_branch
        %438 = sbr.rel (%p435) target = $region12
      $region11: #{tpu_custom_call.1} parent=5 // pred_region
        %s439 = ssub.s32 %s23, 1
      $region12: #{tpu_custom_call.1} parent=5 // pred_fallthru
        _
      %p440 = scmp.lt.s32.totalorder %s23, 4
      // Predicated region
      $region13: #{tpu_custom_call.1} parent=5 // pred_check
        %p441 = pneg %p440
      $region14: #{tpu_custom_call.1} parent=5 // pred_check_branch
        %443 = sbr.rel (%p441) target = $region16
      $region15: #{tpu_custom_call.1} parent=5 // pred_region
        // Predicated region
        $region17: #{tpu_custom_call.1} parent=15 // pred_check
          %p444 = pneg %p55
        $region18: #{tpu_custom_call.1} parent=15 // pred_check_branch
          %446 = sbr.rel (%p444) target = $region20
        $region19: #{tpu_custom_call.1} parent=15 // pred_region
          %p447 = scmp.lt.s32.totalorder %s30, 1
          %s448 = scalar_select %p447, %s30, 1
          %s449 = smul.addr %s448, 8
          %s450 = scalar_lea.vmem %s0, %s449
        $region20: #{tpu_custom_call.1} parent=15 // pred_fallthru
          _
        // Predicated region
        $region21: #{tpu_custom_call.1} parent=15 // pred_check
          %p451 = pneg %p81
        $region22: #{tpu_custom_call.1} parent=15 // pred_check_branch
          %453 = sbr.rel (%p451) target = $region24
        $region23: #{tpu_custom_call.1} parent=15 // pred_region
          %p454 = scmp.lt.s32.totalorder %s30, 1
          %s455 = scalar_select %p454, %s30, 1
          %s456 = scalar_lea.vmem %s1, %s455
        $region24: #{tpu_custom_call.1} parent=15 // pred_fallthru
          _
        // Predicated region
        $region25: #{tpu_custom_call.1} parent=15 // pred_check
          %p457 = pneg %p107
        $region26: #{tpu_custom_call.1} parent=15 // pred_check_branch
          %459 = sbr.rel (%p457) target = $region28
        $region27: #{tpu_custom_call.1} parent=15 // pred_region
          %p460 = scmp.lt.s32.totalorder %s31, 1
          %s461 = scalar_select %p460, %s31, 1
          %s462 = scalar_lea.vmem %s2, %s461
        $region28: #{tpu_custom_call.1} parent=15 // pred_fallthru
          _
        // Predicated region
        $region29: #{tpu_custom_call.1} parent=15 // pred_check
          %p463 = pneg %p133
        $region30: #{tpu_custom_call.1} parent=15 // pred_check_branch
          %465 = sbr.rel (%p463) target = $region32
        $region31: #{tpu_custom_call.1} parent=15 // pred_region
          %p466 = scmp.lt.s32.totalorder %s31, 1
          %s467 = scalar_select %p466, %s31, 1
          %s468 = scalar_lea.vmem %s3, %s467
        $region32: #{tpu_custom_call.1} parent=15 // pred_fallthru
          _
        // Predicated region
        $region33: #{tpu_custom_call.1} parent=15 // pred_check
          %p469 = pneg %p159
        $region34: #{tpu_custom_call.1} parent=15 // pred_check_branch
          %471 = sbr.rel (%p469) target = $region36
        $region35: #{tpu_custom_call.1} parent=15 // pred_region
          %p472 = scmp.lt.s32.totalorder %s31, 1
          %s473 = scalar_select %p472, %s31, 1
          %s474 = scalar_lea.vmem %s4, %s473
        $region36: #{tpu_custom_call.1} parent=15 // pred_fallthru
          _
        // Predicated region
        $region37: #{tpu_custom_call.1} parent=15 // pred_check
          %p475 = pneg %p185
        $region38: #{tpu_custom_call.1} parent=15 // pred_check_branch
          %477 = sbr.rel (%p475) target = $region40
        $region39: #{tpu_custom_call.1} parent=15 // pred_region
          %p478 = scmp.lt.s32.totalorder %s31, 1
          %s479 = scalar_select %p478, %s31, 1
          %s480 = scalar_lea.vmem %s5, %s479
        $region40: #{tpu_custom_call.1} parent=15 // pred_fallthru
          _
        // Predicated region
        $region41: #{tpu_custom_call.1} parent=15 // pred_check
          %p481 = pneg %p211
        $region42: #{tpu_custom_call.1} parent=15 // pred_check_branch
          %483 = sbr.rel (%p481) target = $region44
        $region43: #{tpu_custom_call.1} parent=15 // pred_region
          %p484 = scmp.lt.s32.totalorder %s31, 1
          %s485 = scalar_select %p484, %s31, 1
          %s486 = smul.addr %s485, 4
          %s487 = smul.addr %s486, 4
          %s488 = scalar_lea.vmem %s6, %s487
        $region44: #{tpu_custom_call.1} parent=15 // pred_fallthru
          _
        // Predicated region
        $region45: #{tpu_custom_call.1} parent=15 // pred_check
          %p489 = pneg %p237
        $region46: #{tpu_custom_call.1} parent=15 // pred_check_branch
          %491 = sbr.rel (%p489) target = $region48
        $region47: #{tpu_custom_call.1} parent=15 // pred_region
          %p492 = scmp.lt.s32.totalorder %s31, 1
          %s493 = scalar_select %p492, %s31, 1
          %s494 = scalar_lea.vmem %s7, %s493
        $region48: #{tpu_custom_call.1} parent=15 // pred_fallthru
          _
        // Predicated region
        $region49: #{tpu_custom_call.1} parent=15 // pred_check
          %p495 = pneg %p263
        $region50: #{tpu_custom_call.1} parent=15 // pred_check_branch
          %497 = sbr.rel (%p495) target = $region52
        $region51: #{tpu_custom_call.1} parent=15 // pred_region
          %p498 = scmp.lt.s32.totalorder %s31, 1
          %s499 = scalar_select %p498, %s31, 1
          %s500 = smul.addr %s499, 4
          %s501 = smul.addr %s500, 4
          %s502 = scalar_lea.vmem %s8, %s501
        $region52: #{tpu_custom_call.1} parent=15 // pred_fallthru
          _
        // Predicated region
        $region53: #{tpu_custom_call.1} parent=15 // pred_check
          %p503 = pneg %p289
        $region54: #{tpu_custom_call.1} parent=15 // pred_check_branch
          %505 = sbr.rel (%p503) target = $region56
        $region55: #{tpu_custom_call.1} parent=15 // pred_region
          %p506 = scmp.lt.s32.totalorder %s31, 1
          %s507 = scalar_select %p506, %s31, 1
          %s508 = scalar_lea.vmem %s9, %s507
        $region56: #{tpu_custom_call.1} parent=15 // pred_fallthru
          _
        // Predicated region
        $region57: #{tpu_custom_call.1} parent=15 // pred_check
          %p509 = pneg %p315
        $region58: #{tpu_custom_call.1} parent=15 // pred_check_branch
          %511 = sbr.rel (%p509) target = $region60
        $region59: #{tpu_custom_call.1} parent=15 // pred_region
          %p512 = scmp.lt.s32.totalorder %s31, 1
          %s513 = scalar_select %p512, %s31, 1
          %s514 = smul.addr %s513, 64
          %s515 = smul.addr %s514, 4
          %s516 = scalar_lea.vmem %s10, %s515
        $region60: #{tpu_custom_call.1} parent=15 // pred_fallthru
          _
        // Predicated region
        $region61: #{tpu_custom_call.1} parent=15 // pred_check
          %p517 = pneg %p341
        $region62: #{tpu_custom_call.1} parent=15 // pred_check_branch
          %519 = sbr.rel (%p517) target = $region64
        $region63: #{tpu_custom_call.1} parent=15 // pred_region
          %p520 = scmp.lt.s32.totalorder %s31, 1
          %s521 = scalar_select %p520, %s31, 1
          %s522 = smul.addr %s521, 16
          %s523 = scalar_lea.vmem %s11, %s522
        $region64: #{tpu_custom_call.1} parent=15 // pred_fallthru
          _
        // Predicated region
        $region65: #{tpu_custom_call.1} parent=15 // pred_check
          %p524 = pneg %p367
        $region66: #{tpu_custom_call.1} parent=15 // pred_check_branch
          %526 = sbr.rel (%p524) target = $region68
        $region67: #{tpu_custom_call.1} parent=15 // pred_region
          %p527 = scmp.lt.s32.totalorder %s31, 1
          %s528 = scalar_select %p527, %s31, 1
          %s529 = smul.addr %s528, 256
          %s530 = smul.addr %s529, 4
          %s531 = scalar_lea.vmem %s12, %s530
        $region68: #{tpu_custom_call.1} parent=15 // pred_fallthru
          _
        // Predicated region
        $region69: #{tpu_custom_call.1} parent=15 // pred_check
          %p532 = pneg %p393
        $region70: #{tpu_custom_call.1} parent=15 // pred_check_branch
          %534 = sbr.rel (%p532) target = $region72
        $region71: #{tpu_custom_call.1} parent=15 // pred_region
          %p535 = scmp.lt.s32.totalorder %s31, 1
          %s536 = scalar_select %p535, %s31, 1
          %s537 = scalar_lea.vmem %s13, %s536
        $region72: #{tpu_custom_call.1} parent=15 // pred_fallthru
          _
      $region16: #{tpu_custom_call.1} parent=5 // pred_fallthru
        _
      %p538 = scmp.le.s32.totalorder 1, %s23
      %p539 = scmp.lt.s32.totalorder %s23, 5
      %p540 = pnand %p538, %p539
      %p541 = pneg %p540
      // Predicated region
      $region73: #{tpu_custom_call.1} parent=5 // pred_check
        _
      $region74: #{tpu_custom_call.1} parent=5 // pred_check_branch
        %543 = sbr.rel (%p540) target = $region76
      $region75: #{tpu_custom_call.1} parent=5 // pred_region
        %s544 = ssub.s32 %s23, 1
        %p545 = scmp.lt.s32.totalorder %s32, 1
        %s546 = scalar_select %p545, %s32, 1
        %s547 = smul.addr %s546, 8
        %s548 = scalar_lea.vmem %s0, %s547
        %p549 = pneg %p61
        %p550 = pneg %p58
        %p551 = scmp.lt.s32.totalorder %s32, 1
        %s552 = scalar_select %p551, %s32, 1
        %s553 = scalar_lea.vmem %s1, %s552
        %p554 = pneg %p87
        %p555 = pneg %p84
        %p556 = scmp.lt.s32.totalorder %s33, 1
        %s557 = scalar_select %p556, %s33, 1
        %s558 = scalar_lea.vmem %s2, %s557
        %p559 = pneg %p113
        %p560 = pneg %p110
        %p561 = scmp.lt.s32.totalorder %s33, 1
        %s562 = scalar_select %p561, %s33, 1
        %s563 = scalar_lea.vmem %s3, %s562
        %p564 = pneg %p139
        %p565 = pneg %p136
        %p566 = scmp.lt.s32.totalorder %s33, 1
        %s567 = scalar_select %p566, %s33, 1
        %s568 = scalar_lea.vmem %s4, %s567
        %p569 = pneg %p165
        %p570 = pneg %p162
        %p571 = scmp.lt.s32.totalorder %s33, 1
        %s572 = scalar_select %p571, %s33, 1
        %s573 = scalar_lea.vmem %s5, %s572
        %p574 = pneg %p191
        %p575 = pneg %p188
        %p576 = scmp.lt.s32.totalorder %s33, 1
        %s577 = scalar_select %p576, %s33, 1
        %s578 = smul.addr %s577, 4
        %s579 = smul.addr %s578, 4
        %s580 = scalar_lea.vmem %s6, %s579
        %p581 = pneg %p217
        %p582 = pneg %p214
        %p583 = scmp.lt.s32.totalorder %s33, 1
        %s584 = scalar_select %p583, %s33, 1
        %s585 = scalar_lea.vmem %s7, %s584
        %p586 = pneg %p243
        %p587 = pneg %p240
        %p588 = scmp.lt.s32.totalorder %s33, 1
        %s589 = scalar_select %p588, %s33, 1
        %s590 = smul.addr %s589, 4
        %s591 = smul.addr %s590, 4
        %s592 = scalar_lea.vmem %s8, %s591
        %p593 = pneg %p269
        %p594 = pneg %p266
        %p595 = scmp.lt.s32.totalorder %s33, 1
        %s596 = scalar_select %p595, %s33, 1
        %s597 = scalar_lea.vmem %s9, %s596
        %p598 = pneg %p295
        %p599 = pneg %p292
        %p600 = scmp.lt.s32.totalorder %s33, 1
        %s601 = scalar_select %p600, %s33, 1
        %s602 = smul.addr %s601, 64
        %s603 = smul.addr %s602, 4
        %s604 = scalar_lea.vmem %s10, %s603
        %p605 = pneg %p321
        %p606 = pneg %p318
        %p607 = scmp.lt.s32.totalorder %s33, 1
        %s608 = scalar_select %p607, %s33, 1
        %s609 = smul.addr %s608, 16
        %s610 = scalar_lea.vmem %s11, %s609
        %p611 = pneg %p347
        %p612 = pneg %p344
        %p613 = scmp.lt.s32.totalorder %s33, 1
        %s614 = scalar_select %p613, %s33, 1
        %s615 = smul.addr %s614, 256
        %s616 = smul.addr %s615, 4
        %s617 = scalar_lea.vmem %s12, %s616
        %p618 = pneg %p373
        %p619 = pneg %p370
        %p620 = scmp.lt.s32.totalorder %s33, 1
        %s621 = scalar_select %p620, %s33, 1
        %s622 = scalar_lea.vmem %s13, %s621
        %p623 = pneg %p399
        %p624 = pneg %p396
        %p625 = pneg %p425
        %p626 = pneg %p422
        %s627 = sand.u32 %s412, 1
        %s628 = scalar_lea.sflag [#allocation3], %s627
        %s629 = sand.u32 %s412, 1
        %s630 = smul.addr %s629, 8
        %s631 = scalar_lea.vmem [#allocation2], %s630
        %p632 = scmp.lt.s32.totalorder %s32, 1
        %s633 = scalar_select %p632, %s32, 1
        %s634 = smul.addr %s633, 8
        %s635 = scalar_lea.vmem %s0, %s634
        %p636 = scmp.lt.s32.totalorder %s32, 1
        %s637 = scalar_select %p636, %s32, 1
        %s638 = scalar_lea.vmem %s1, %s637
        %p639 = scmp.lt.s32.totalorder %s33, 1
        %s640 = scalar_select %p639, %s33, 1
        %s641 = scalar_lea.vmem %s2, %s640
        %p642 = scmp.lt.s32.totalorder %s33, 1
        %s643 = scalar_select %p642, %s33, 1
        %s644 = scalar_lea.vmem %s3, %s643
        %p645 = scmp.lt.s32.totalorder %s33, 1
        %s646 = scalar_select %p645, %s33, 1
        %s647 = scalar_lea.vmem %s4, %s646
        %p648 = scmp.lt.s32.totalorder %s33, 1
        %s649 = scalar_select %p648, %s33, 1
        %s650 = scalar_lea.vmem %s5, %s649
        %p651 = scmp.lt.s32.totalorder %s33, 1
        %s652 = scalar_select %p651, %s33, 1
        %s653 = smul.addr %s652, 4
        %s654 = smul.addr %s653, 4
        %s655 = scalar_lea.vmem %s6, %s654
        %p656 = scmp.lt.s32.totalorder %s33, 1
        %s657 = scalar_select %p656, %s33, 1
        %s658 = scalar_lea.vmem %s7, %s657
        %p659 = scmp.lt.s32.totalorder %s33, 1
        %s660 = scalar_select %p659, %s33, 1
        %s661 = smul.addr %s660, 4
        %s662 = smul.addr %s661, 4
        %s663 = scalar_lea.vmem %s8, %s662
        %p664 = scmp.lt.s32.totalorder %s33, 1
        %s665 = scalar_select %p664, %s33, 1
        %s666 = scalar_lea.vmem %s9, %s665
        %p667 = scmp.lt.s32.totalorder %s33, 1
        %s668 = scalar_select %p667, %s33, 1
        %s669 = smul.addr %s668, 64
        %s670 = smul.addr %s669, 4
        %s671 = scalar_lea.vmem %s10, %s670
        %p672 = scmp.lt.s32.totalorder %s33, 1
        %s673 = scalar_select %p672, %s33, 1
        %s674 = smul.addr %s673, 16
        %s675 = scalar_lea.vmem %s11, %s674
        %p676 = scmp.lt.s32.totalorder %s33, 1
        %s677 = scalar_select %p676, %s33, 1
        %s678 = smul.addr %s677, 256
        %s679 = smul.addr %s678, 4
        %s680 = scalar_lea.vmem %s12, %s679
        %p681 = scmp.lt.s32.totalorder %s33, 1
        %s682 = scalar_select %p681, %s33, 1
        %s683 = scalar_lea.vmem %s13, %s682
        %p685 = scmp.eq.s32.totalorder %s33, 0
        // Predicated region
        $region77: #{tpu_custom_call.1} parent=75 // pred_check
          %p686 = pneg %p685
        $region78: #{tpu_custom_call.1} parent=75 // pred_check_branch
          %688 = sbr.rel (%p686) target = $region80
        $region79: #{tpu_custom_call.1} parent=75 // pred_region
          %v689 = vld [vmem:[%s635] sm:$0xff]
          %vm690 = vcmask 261120
          %691 = vst.msk [vmem:[%s631] sm:$0xff] %vm690, %v689
        $region80: #{tpu_custom_call.1} parent=75 // pred_fallthru
          _
        %v692 = vld [vmem:[%s631] sm:$0xff]
        %v693 = vld [vmem:[%s641] sm:$0x1]
        %v694 = vld [vmem:[%s644] sm:$0x1]
        %vm695 = vcmask 261120
        %v696 = vsel %vm695, %v692, 0.0
        %697 = vadd.xlane.f32.xlu0 %v696
        %v698 = vpop.xlane.xlu0 %697
        %v699 = vrcp.pop 32.0
        %v700 = vmul.f32 %v698, %v699
        %v701 = vsub.f32 %v692, %v700
        %v702 = vmul.f32 %v701, %v701
        %v703 = vsel %vm695, %v702, 0.0
        %704 = vadd.xlane.f32.xlu0 %v703
        %v705 = vpop.xlane.xlu0 %704
        %v706 = vmul.f32 %v705, 0.032258064
        %v707 = vrsqrt.pop %v706
        %v708 = vmul.f32 %v706, %v707
        %vm709 = vcmp.eq.f32.partialorder %v706, inf
        %v710 = vsel %vm709, %v706, %v708
        %vm711 = vcmp.eq.f32.partialorder %v706, 0.0
        %v712 = vand.u32 %v706, 2147483648
        %v713 = vsel %vm711, %v712, %v710
        %v714 = vadd.f32 %v713, 1e-06
        %v715 = vrcp.pop %v714
        %v716 = vmul.f32 %v701, %v715
        %v718 = vlaneseq
        %v719 = vshrl.u32 %v718, 7
        %v720 = vsub.s32 0, %v719
        %v721 = vrot.slane %v693, %v720
        %v723 = vmul.f32 %v721, %v716
        %v725 = vlaneseq
        %v726 = vshrl.u32 %v725, 7
        %v727 = vsub.s32 0, %v726
        %v728 = vrot.slane %v694, %v727
        %v730 = vadd.f32 %v723, %v728
        %v731 = vpack.c.bf16 %v730, %v730
        %v732 = vld [vmem:[%s655] sm:$0xf]
        %v733 = vld [vmem:[%s655 + $0x4] sm:$0xf]
        %v734 = vld [vmem:[%s655 + $0x8] sm:$0xf]
        %v735 = vld [vmem:[%s655 + $0xc] sm:$0xf]
        %v736 = vld [vmem:[%s658] sm:$0x1]
        %v738 = vlaneseq
        %v739 = vshrl.u32 %v738, 7
        %v740 = vsub.s32 0, %v739
        %v741 = vrot.slane %v736, %v740
        %v747 = vunpack.c.l.b16 %v732
        %v748 = vunpack.c.l.b16 %v733
        %v749 = vunpack.c.l.b16 %v734
        %v750 = vunpack.c.l.b16 %v735
        %v751 = vpack.c.b16 %v748, %v747
        %v752 = vpack.c.b16 %v750, %v749
        %v756 = vsel %vm695, %v731, 0
        %758 = vmatprep.subr.bf16.mxu0 0
        %759 = vmatpush1.bf16.msra.mxu0 %v751
        %760 = vmatprep.subr.bf16.mxu0 0
        %761 = vmatpush1.bf16.msra.mxu0 %v752
        %762 = vmatprep.subr.bf16.mxu0 0
        %763 = vmatpush1.bf16.msra.mxu0 0
        %764 = vmatprep.subr.bf16.mxu0 0
        %765 = vmatpush1.bf16.msra.mxu0 0
        %766 = vmatprep.subr.bf16.mxu0 0
        %767 = vmatpush1.bf16.msra.mxu0 0
        %768 = vmatprep.subr.bf16.mxu0 0
        %769 = vmatpush1.bf16.msra.mxu0 0
        %770 = vmatprep.subr.bf16.mxu0 0
        %771 = vmatpush1.bf16.msra.mxu0 0
        %772 = vmatprep.subr.bf16.mxu0 0
        %773 = vmatpush1.bf16.msra.mxu0 0
        %774 = vmatprep.subr.bf16.mxu0 0
        %775 = vmatpush1.bf16.msra.mxu0 0
        %776 = vmatprep.subr.bf16.mxu0 0
        %777 = vmatpush1.bf16.msra.mxu0 0
        %778 = vmatprep.subr.bf16.mxu0 0
        %779 = vmatpush1.bf16.msra.mxu0 0
        %780 = vmatprep.subr.bf16.mxu0 0
        %781 = vmatpush1.bf16.msra.mxu0 0
        %782 = vmatprep.subr.bf16.mxu0 0
        %783 = vmatpush1.bf16.msra.mxu0 0
        %784 = vmatprep.subr.bf16.mxu0 0
        %785 = vmatpush1.bf16.msra.mxu0 0
        %786 = vmatprep.subr.bf16.mxu0 0
        %787 = vmatpush1.bf16.msra.mxu0 0
        %788 = vmatprep.subr.bf16.mxu0 0
        %789 = vmatpush1.bf16.msra.mxu0 0
        %790 = vmatprep.mubr.bf16.mxu0 0
        %791 = vmatmul.mubr.bf16.gmra.mrb[0].mxu0 %v756
        %v792 = vpop.f32.mrb[0].mxu0
        %v793 = vadd.f32 %v741, %v792
        %v794 = vpop.f32.mrb[0].mxu0
        %v795 = vpop.f32.mrb[0].mxu0
        %v796 = vpop.f32.mrb[0].mxu0
        %797 = vdwg.mxu0
        %v798 = vld [vmem:[%s638] sm:$0x1]
        %v799 = vpack.c.bf16 %v793, %v793
        %v801 = vlaneseq
        %v802 = vshrl.u32 %v801, 7
        %v803 = vsub.s32 0, %v802
        %v804 = vrot.slane %v798, %v803
        %807 = vrot.lane.b32.xlu0 %v799, 96
        %v808 = vpop.permute.xlu0 %807
        %vm809 = vcmask 64512
        %v811 = vsel %vm809, %v799, 0
        %v814 = vsel %vm809, %v808, 0
        %816 = vmatprep.subr.bf16.mxu0 0
        %817 = vmatpush1.bf16.xpose.msra.mxu0 %v814
        %818 = vmatprep.subr.bf16.mxu0 0
        %819 = vmatpush1.bf16.xpose.msra.mxu0 0
        %820 = vmatprep.subr.bf16.mxu0 0
        %821 = vmatpush1.bf16.xpose.msra.mxu0 0
        %822 = vmatprep.subr.bf16.mxu0 0
        %823 = vmatpush1.bf16.xpose.msra.mxu0 0
        %824 = vmatprep.subr.bf16.mxu0 0
        %825 = vmatpush1.bf16.xpose.msra.mxu0 0
        %826 = vmatprep.subr.bf16.mxu0 0
        %827 = vmatpush1.bf16.xpose.msra.mxu0 0
        %828 = vmatprep.subr.bf16.mxu0 0
        %829 = vmatpush1.bf16.xpose.msra.mxu0 0
        %830 = vmatprep.subr.bf16.mxu0 0
        %831 = vmatpush1.bf16.xpose.msra.mxu0 0
        %832 = vmatprep.subr.bf16.mxu0 0
        %833 = vmatpush1.bf16.xpose.msra.mxu0 0
        %834 = vmatprep.subr.bf16.mxu0 0
        %835 = vmatpush1.bf16.xpose.msra.mxu0 0
        %836 = vmatprep.subr.bf16.mxu0 0
        %837 = vmatpush1.bf16.xpose.msra.mxu0 0
        %838 = vmatprep.subr.bf16.mxu0 0
        %839 = vmatpush1.bf16.xpose.msra.mxu0 0
        %840 = vmatprep.subr.bf16.mxu0 0
        %841 = vmatpush1.bf16.xpose.msra.mxu0 0
        %842 = vmatprep.subr.bf16.mxu0 0
        %843 = vmatpush1.bf16.xpose.msra.mxu0 0
        %844 = vmatprep.subr.bf16.mxu0 0
        %845 = vmatpush1.bf16.xpose.msra.mxu0 0
        %846 = vmatprep.subr.bf16.mxu0 0
        %847 = vmatpush1.bf16.xpose.msra.mxu0 0
        %848 = vmatprep.mubr.bf16.mxu0 0
        %849 = vmatmul.mubr.bf16.gmra.mrb[0].mxu0 %v811
        %v850 = vpop.f32.mrb[0].mxu0
        %v851 = vadd.f32 %v804, %v850
        %v852 = vpop.f32.mrb[0].mxu0
        %v853 = vpop.f32.mrb[0].mxu0
        %v854 = vpop.f32.mrb[0].mxu0
        %855 = vdwg.mxu0
        %v856 = vsel %vm809, %v851, -inf
        %857 = vmax.xlane.f32.xlu0 %v856
        %v858 = vpop.xlane.xlu0 %857
        %v859 = vsub.f32 %v851, %v858
        %v860 = vmul.f32 %v859, 1.442695
        %v861 = vpow.pop %v860
        %v862 = vsel %vm809, %v861, 0.0
        %863 = vadd.xlane.f32.xlu0 %v862
        %v864 = vpop.xlane.xlu0 %863
        %v865 = vrcp.pop %v864
        %v866 = vmul.f32 %v861, %v865
        %v867 = vpack.c.bf16 %v866, %v866
        %868 = vrot.lane.b32.xlu0 %v799, 64
        %v869 = vpop.permute.xlu0 %868
        %v871 = vsel %vm809, %v867, 0
        %vm873 = vcmask 1043456
        %v875 = vsel %vm873, %v869, 0
        %877 = vmatprep.subr.bf16.mxu0 0
        %878 = vmatpush1.bf16.msra.mxu0 %v875
        %879 = vmatprep.subr.bf16.mxu0 0
        %880 = vmatpush1.bf16.msra.mxu0 0
        %881 = vmatprep.subr.bf16.mxu0 0
        %882 = vmatpush1.bf16.msra.mxu0 0
        %883 = vmatprep.subr.bf16.mxu0 0
        %884 = vmatpush1.bf16.msra.mxu0 0
        %885 = vmatprep.subr.bf16.mxu0 0
        %886 = vmatpush1.bf16.msra.mxu0 0
        %887 = vmatprep.subr.bf16.mxu0 0
        %888 = vmatpush1.bf16.msra.mxu0 0
        %889 = vmatprep.subr.bf16.mxu0 0
        %890 = vmatpush1.bf16.msra.mxu0 0
        %891 = vmatprep.subr.bf16.mxu0 0
        %892 = vmatpush1.bf16.msra.mxu0 0
        %893 = vmatprep.subr.bf16.mxu0 0
        %894 = vmatpush1.bf16.msra.mxu0 0
        %895 = vmatprep.subr.bf16.mxu0 0
        %896 = vmatpush1.bf16.msra.mxu0 0
        %897 = vmatprep.subr.bf16.mxu0 0
        %898 = vmatpush1.bf16.msra.mxu0 0
        %899 = vmatprep.subr.bf16.mxu0 0
        %900 = vmatpush1.bf16.msra.mxu0 0
        %901 = vmatprep.subr.bf16.mxu0 0
        %902 = vmatpush1.bf16.msra.mxu0 0
        %903 = vmatprep.subr.bf16.mxu0 0
        %904 = vmatpush1.bf16.msra.mxu0 0
        %905 = vmatprep.subr.bf16.mxu0 0
        %906 = vmatpush1.bf16.msra.mxu0 0
        %907 = vmatprep.subr.bf16.mxu0 0
        %908 = vmatpush1.bf16.msra.mxu0 0
        %909 = vmatprep.mubr.bf16.mxu0 0
        %910 = vmatmul.mubr.bf16.gmra.mrb[0].mxu0 %v871
        %v911 = vpop.f32.mrb[0].mxu0
        %v912 = vadd.f32 0.0, %v911
        %v913 = vpop.f32.mrb[0].mxu0
        %v914 = vpop.f32.mrb[0].mxu0
        %v915 = vpop.f32.mrb[0].mxu0
        %916 = vdwg.mxu0
        %v917 = vpack.c.bf16 %v912, %v912
        %v918 = vld [vmem:[%s663] sm:$0xf]
        %919 = vrot.lane.b32.xlu0 %v799, 120
        %v920 = vpop.permute.xlu0 %919
        %921 = vrot.lane.b32.xlu0 %v799, 88
        %v922 = vpop.permute.xlu0 %921
        %v924 = vsel %vm809, %v920, 0
        %v927 = vsel %vm809, %v922, 0
        %929 = vmatprep.subr.bf16.mxu0 0
        %930 = vmatpush1.bf16.xpose.msra.mxu0 %v927
        %931 = vmatprep.subr.bf16.mxu0 0
        %932 = vmatpush1.bf16.xpose.msra.mxu0 0
        %933 = vmatprep.subr.bf16.mxu0 0
        %934 = vmatpush1.bf16.xpose.msra.mxu0 0
        %935 = vmatprep.subr.bf16.mxu0 0
        %936 = vmatpush1.bf16.xpose.msra.mxu0 0
        %937 = vmatprep.subr.bf16.mxu0 0
        %938 = vmatpush1.bf16.xpose.msra.mxu0 0
        %939 = vmatprep.subr.bf16.mxu0 0
        %940 = vmatpush1.bf16.xpose.msra.mxu0 0
        %941 = vmatprep.subr.bf16.mxu0 0
        %942 = vmatpush1.bf16.xpose.msra.mxu0 0
        %943 = vmatprep.subr.bf16.mxu0 0
        %944 = vmatpush1.bf16.xpose.msra.mxu0 0
        %945 = vmatprep.subr.bf16.mxu0 0
        %946 = vmatpush1.bf16.xpose.msra.mxu0 0
        %947 = vmatprep.subr.bf16.mxu0 0
        %948 = vmatpush1.bf16.xpose.msra.mxu0 0
        %949 = vmatprep.subr.bf16.mxu0 0
        %950 = vmatpush1.bf16.xpose.msra.mxu0 0
        %951 = vmatprep.subr.bf16.mxu0 0
        %952 = vmatpush1.bf16.xpose.msra.mxu0 0
        %953 = vmatprep.subr.bf16.mxu0 0
        %954 = vmatpush1.bf16.xpose.msra.mxu0 0
        %955 = vmatprep.subr.bf16.mxu0 0
        %956 = vmatpush1.bf16.xpose.msra.mxu0 0
        %957 = vmatprep.subr.bf16.mxu0 0
        %958 = vmatpush1.bf16.xpose.msra.mxu0 0
        %959 = vmatprep.subr.bf16.mxu0 0
        %960 = vmatpush1.bf16.xpose.msra.mxu0 0
        %961 = vmatprep.mubr.bf16.mxu0 0
        %962 = vmatmul.mubr.bf16.gmra.mrb[0].mxu0 %v924
        %v963 = vpop.f32.mrb[0].mxu0
        %v964 = vadd.f32 %v804, %v963
        %v965 = vpop.f32.mrb[0].mxu0
        %v966 = vpop.f32.mrb[0].mxu0
        %v967 = vpop.f32.mrb[0].mxu0
        %968 = vdwg.mxu0
        %v969 = vsel %vm809, %v964, -inf
        %970 = vmax.xlane.f32.xlu0 %v969
        %v971 = vpop.xlane.xlu0 %970
        %v972 = vsub.f32 %v964, %v971
        %v973 = vmul.f32 %v972, 1.442695
        %v974 = vpow.pop %v973
        %v975 = vsel %vm809, %v974, 0.0
        %976 = vadd.xlane.f32.xlu0 %v975
        %v977 = vpop.xlane.xlu0 %976
        %v978 = vrcp.pop %v977
        %v979 = vmul.f32 %v974, %v978
        %v980 = vpack.c.bf16 %v979, %v979
        %981 = vrot.lane.b32.xlu0 %v799, 56
        %v982 = vpop.permute.xlu0 %981
        %v984 = vsel %vm809, %v980, 0
        %v987 = vsel %vm873, %v982, 0
        %989 = vmatprep.subr.bf16.mxu0 0
        %990 = vmatpush1.bf16.msra.mxu0 %v987
        %991 = vmatprep.subr.bf16.mxu0 0
        %992 = vmatpush1.bf16.msra.mxu0 0
        %993 = vmatprep.subr.bf16.mxu0 0
        %994 = vmatpush1.bf16.msra.mxu0 0
        %995 = vmatprep.subr.bf16.mxu0 0
        %996 = vmatpush1.bf16.msra.mxu0 0
        %997 = vmatprep.subr.bf16.mxu0 0
        %998 = vmatpush1.bf16.msra.mxu0 0
        %999 = vmatprep.subr.bf16.mxu0 0
        %1000 = vmatpush1.bf16.msra.mxu0 0
        %1001 = vmatprep.subr.bf16.mxu0 0
        %1002 = vmatpush1.bf16.msra.mxu0 0
        %1003 = vmatprep.subr.bf16.mxu0 0
        %1004 = vmatpush1.bf16.msra.mxu0 0
        %1005 = vmatprep.subr.bf16.mxu0 0
        %1006 = vmatpush1.bf16.msra.mxu0 0
        %1007 = vmatprep.subr.bf16.mxu0 0
        %1008 = vmatpush1.bf16.msra.mxu0 0
        %1009 = vmatprep.subr.bf16.mxu0 0
        %1010 = vmatpush1.bf16.msra.mxu0 0
        %1011 = vmatprep.subr.bf16.mxu0 0
        %1012 = vmatpush1.bf16.msra.mxu0 0
        %1013 = vmatprep.subr.bf16.mxu0 0
        %1014 = vmatpush1.bf16.msra.mxu0 0
        %1015 = vmatprep.subr.bf16.mxu0 0
        %1016 = vmatpush1.bf16.msra.mxu0 0
        %1017 = vmatprep.subr.bf16.mxu0 0
        %1018 = vmatpush1.bf16.msra.mxu0 0
        %1019 = vmatprep.subr.bf16.mxu0 0
        %1020 = vmatpush1.bf16.msra.mxu0 0
        %1021 = vmatprep.mubr.bf16.mxu0 0
        %1022 = vmatmul.mubr.bf16.gmra.mrb[0].mxu0 %v984
        %v1023 = vpop.f32.mrb[0].mxu0
        %v1024 = vadd.f32 0.0, %v1023
        %v1025 = vpop.f32.mrb[0].mxu0
        %v1026 = vpop.f32.mrb[0].mxu0
        %v1027 = vpop.f32.mrb[0].mxu0
        %1028 = vdwg.mxu0
        %v1029 = vpack.c.bf16 %v1024, %v1024
        %s1030 = scalar_lea.vmem %s663, 4
        %v1031 = vld [vmem:[%s1030] sm:$0xf]
        %v1033 = vsel %vm809, %v1029, 0
        %v1036 = vsel %vm873, %v1031, 0
        %1038 = vmatprep.subr.bf16.mxu0 0
        %1039 = vmatpush1.bf16.msra.mxu0 %v1036
        %1040 = vmatprep.subr.bf16.mxu0 0
        %1041 = vmatpush1.bf16.msra.mxu0 0
        %1042 = vmatprep.subr.bf16.mxu0 0
        %1043 = vmatpush1.bf16.msra.mxu0 0
        %1044 = vmatprep.subr.bf16.mxu0 0
        %1045 = vmatpush1.bf16.msra.mxu0 0
        %1046 = vmatprep.subr.bf16.mxu0 0
        %1047 = vmatpush1.bf16.msra.mxu0 0
        %1048 = vmatprep.subr.bf16.mxu0 0
        %1049 = vmatpush1.bf16.msra.mxu0 0
        %1050 = vmatprep.subr.bf16.mxu0 0
        %1051 = vmatpush1.bf16.msra.mxu0 0
        %1052 = vmatprep.subr.bf16.mxu0 0
        %1053 = vmatpush1.bf16.msra.mxu0 0
        %1054 = vmatprep.subr.bf16.mxu0 0
        %1055 = vmatpush1.bf16.msra.mxu0 0
        %1056 = vmatprep.subr.bf16.mxu0 0
        %1057 = vmatpush1.bf16.msra.mxu0 0
        %1058 = vmatprep.subr.bf16.mxu0 0
        %1059 = vmatpush1.bf16.msra.mxu0 0
        %1060 = vmatprep.subr.bf16.mxu0 0
        %1061 = vmatpush1.bf16.msra.mxu0 0
        %1062 = vmatprep.subr.bf16.mxu0 0
        %1063 = vmatpush1.bf16.msra.mxu0 0
        %1064 = vmatprep.subr.bf16.mxu0 0
        %1065 = vmatpush1.bf16.msra.mxu0 0
        %1066 = vmatprep.subr.bf16.mxu0 0
        %1067 = vmatpush1.bf16.msra.mxu0 0
        %1068 = vmatprep.subr.bf16.mxu0 0
        %1069 = vmatpush1.bf16.msra.mxu0 0
        %1070 = vmatprep.mubr.bf16.mxu0 0
        %1071 = vmatmul.mubr.bf16.gmra.mrb[0].mxu0 %v1033
        %v1072 = vpop.f32.mrb[0].mxu0
        %v1073 = vadd.f32 0.0, %v1072
        %v1074 = vpop.f32.mrb[0].mxu0
        %v1075 = vpop.f32.mrb[0].mxu0
        %v1076 = vpop.f32.mrb[0].mxu0
        %1077 = vdwg.mxu0
        %v1079 = vsel %vm809, %v917, 0
        %v1082 = vsel %vm873, %v918, 0
        %1084 = vmatprep.subr.bf16.mxu0 0
        %1085 = vmatpush1.bf16.msra.mxu0 %v1082
        %1086 = vmatprep.subr.bf16.mxu0 0
        %1087 = vmatpush1.bf16.msra.mxu0 0
        %1088 = vmatprep.subr.bf16.mxu0 0
        %1089 = vmatpush1.bf16.msra.mxu0 0
        %1090 = vmatprep.subr.bf16.mxu0 0
        %1091 = vmatpush1.bf16.msra.mxu0 0
        %1092 = vmatprep.subr.bf16.mxu0 0
        %1093 = vmatpush1.bf16.msra.mxu0 0
        %1094 = vmatprep.subr.bf16.mxu0 0
        %1095 = vmatpush1.bf16.msra.mxu0 0
        %1096 = vmatprep.subr.bf16.mxu0 0
        %1097 = vmatpush1.bf16.msra.mxu0 0
        %1098 = vmatprep.subr.bf16.mxu0 0
        %1099 = vmatpush1.bf16.msra.mxu0 0
        %1100 = vmatprep.subr.bf16.mxu0 0
        %1101 = vmatpush1.bf16.msra.mxu0 0
        %1102 = vmatprep.subr.bf16.mxu0 0
        %1103 = vmatpush1.bf16.msra.mxu0 0
        %1104 = vmatprep.subr.bf16.mxu0 0
        %1105 = vmatpush1.bf16.msra.mxu0 0
        %1106 = vmatprep.subr.bf16.mxu0 0
        %1107 = vmatpush1.bf16.msra.mxu0 0
        %1108 = vmatprep.subr.bf16.mxu0 0
        %1109 = vmatpush1.bf16.msra.mxu0 0
        %1110 = vmatprep.subr.bf16.mxu0 0
        %1111 = vmatpush1.bf16.msra.mxu0 0
        %1112 = vmatprep.subr.bf16.mxu0 0
        %1113 = vmatpush1.bf16.msra.mxu0 0
        %1114 = vmatprep.subr.bf16.mxu0 0
        %1115 = vmatpush1.bf16.msra.mxu0 0
        %1116 = vmatprep.mubr.bf16.mxu0 0
        %1117 = vmatmul.mubr.bf16.gmra.mrb[0].mxu0 %v1079
        %v1118 = vpop.f32.mrb[0].mxu0
        %v1119 = vadd.f32 %v1073, %v1118
        %v1120 = vpop.f32.mrb[0].mxu0
        %v1121 = vpop.f32.mrb[0].mxu0
        %v1122 = vpop.f32.mrb[0].mxu0
        %1123 = vdwg.mxu0
        %1124 = vrot.lane.b32.xlu0 %v799, 112
        %v1125 = vpop.permute.xlu0 %1124
        %1126 = vrot.lane.b32.xlu0 %v799, 80
        %v1127 = vpop.permute.xlu0 %1126
        %v1129 = vsel %vm809, %v1125, 0
        %v1132 = vsel %vm809, %v1127, 0
        %1134 = vmatprep.subr.bf16.mxu0 0
        %1135 = vmatpush1.bf16.xpose.msra.mxu0 %v1132
        %1136 = vmatprep.subr.bf16.mxu0 0
        %1137 = vmatpush1.bf16.xpose.msra.mxu0 0
        %1138 = vmatprep.subr.bf16.mxu0 0
        %1139 = vmatpush1.bf16.xpose.msra.mxu0 0
        %1140 = vmatprep.subr.bf16.mxu0 0
        %1141 = vmatpush1.bf16.xpose.msra.mxu0 0
        %1142 = vmatprep.subr.bf16.mxu0 0
        %1143 = vmatpush1.bf16.xpose.msra.mxu0 0
        %1144 = vmatprep.subr.bf16.mxu0 0
        %1145 = vmatpush1.bf16.xpose.msra.mxu0 0
        %1146 = vmatprep.subr.bf16.mxu0 0
        %1147 = vmatpush1.bf16.xpose.msra.mxu0 0
        %1148 = vmatprep.subr.bf16.mxu0 0
        %1149 = vmatpush1.bf16.xpose.msra.mxu0 0
        %1150 = vmatprep.subr.bf16.mxu0 0
        %1151 = vmatpush1.bf16.xpose.msra.mxu0 0
        %1152 = vmatprep.subr.bf16.mxu0 0
        %1153 = vmatpush1.bf16.xpose.msra.mxu0 0
        %1154 = vmatprep.subr.bf16.mxu0 0
        %1155 = vmatpush1.bf16.xpose.msra.mxu0 0
        %1156 = vmatprep.subr.bf16.mxu0 0
        %1157 = vmatpush1.bf16.xpose.msra.mxu0 0
        %1158 = vmatprep.subr.bf16.mxu0 0
        %1159 = vmatpush1.bf16.xpose.msra.mxu0 0
        %1160 = vmatprep.subr.bf16.mxu0 0
        %1161 = vmatpush1.bf16.xpose.msra.mxu0 0
        %1162 = vmatprep.subr.bf16.mxu0 0
        %1163 = vmatpush1.bf16.xpose.msra.mxu0 0
        %1164 = vmatprep.subr.bf16.mxu0 0
        %1165 = vmatpush1.bf16.xpose.msra.mxu0 0
        %1166 = vmatprep.mubr.bf16.mxu0 0
        %1167 = vmatmul.mubr.bf16.gmra.mrb[0].mxu0 %v1129
        %v1168 = vpop.f32.mrb[0].mxu0
        %v1169 = vadd.f32 %v804, %v1168
        %v1170 = vpop.f32.mrb[0].mxu0
        %v1171 = vpop.f32.mrb[0].mxu0
        %v1172 = vpop.f32.mrb[0].mxu0
        %1173 = vdwg.mxu0
        %v1174 = vsel %vm809, %v1169, -inf
        %1175 = vmax.xlane.f32.xlu0 %v1174
        %v1176 = vpop.xlane.xlu0 %1175
        %v1177 = vsub.f32 %v1169, %v1176
        %v1178 = vmul.f32 %v1177, 1.442695
        %v1179 = vpow.pop %v1178
        %v1180 = vsel %vm809, %v1179, 0.0
        %1181 = vadd.xlane.f32.xlu0 %v1180
        %v1182 = vpop.xlane.xlu0 %1181
        %v1183 = vrcp.pop %v1182
        %v1184 = vmul.f32 %v1179, %v1183
        %v1185 = vpack.c.bf16 %v1184, %v1184
        %1186 = vrot.lane.b32.xlu0 %v799, 48
        %v1187 = vpop.permute.xlu0 %1186
        %v1189 = vsel %vm809, %v1185, 0
        %v1192 = vsel %vm873, %v1187, 0
        %1194 = vmatprep.subr.bf16.mxu0 0
        %1195 = vmatpush1.bf16.msra.mxu0 %v1192
        %1196 = vmatprep.subr.bf16.mxu0 0
        %1197 = vmatpush1.bf16.msra.mxu0 0
        %1198 = vmatprep.subr.bf16.mxu0 0
        %1199 = vmatpush1.bf16.msra.mxu0 0
        %1200 = vmatprep.subr.bf16.mxu0 0
        %1201 = vmatpush1.bf16.msra.mxu0 0
        %1202 = vmatprep.subr.bf16.mxu0 0
        %1203 = vmatpush1.bf16.msra.mxu0 0
        %1204 = vmatprep.subr.bf16.mxu0 0
        %1205 = vmatpush1.bf16.msra.mxu0 0
        %1206 = vmatprep.subr.bf16.mxu0 0
        %1207 = vmatpush1.bf16.msra.mxu0 0
        %1208 = vmatprep.subr.bf16.mxu0 0
        %1209 = vmatpush1.bf16.msra.mxu0 0
        %1210 = vmatprep.subr.bf16.mxu0 0
        %1211 = vmatpush1.bf16.msra.mxu0 0
        %1212 = vmatprep.subr.bf16.mxu0 0
        %1213 = vmatpush1.bf16.msra.mxu0 0
        %1214 = vmatprep.subr.bf16.mxu0 0
        %1215 = vmatpush1.bf16.msra.mxu0 0
        %1216 = vmatprep.subr.bf16.mxu0 0
        %1217 = vmatpush1.bf16.msra.mxu0 0
        %1218 = vmatprep.subr.bf16.mxu0 0
        %1219 = vmatpush1.bf16.msra.mxu0 0
        %1220 = vmatprep.subr.bf16.mxu0 0
        %1221 = vmatpush1.bf16.msra.mxu0 0
        %1222 = vmatprep.subr.bf16.mxu0 0
        %1223 = vmatpush1.bf16.msra.mxu0 0
        %1224 = vmatprep.subr.bf16.mxu0 0
        %1225 = vmatpush1.bf16.msra.mxu0 0
        %1226 = vmatprep.mubr.bf16.mxu0 0
        %1227 = vmatmul.mubr.bf16.gmra.mrb[0].mxu0 %v1189
        %v1228 = vpop.f32.mrb[0].mxu0
        %v1229 = vadd.f32 0.0, %v1228
        %v1230 = vpop.f32.mrb[0].mxu0
        %v1231 = vpop.f32.mrb[0].mxu0
        %v1232 = vpop.f32.mrb[0].mxu0
        %1233 = vdwg.mxu0
        %v1234 = vpack.c.bf16 %v1229, %v1229
        %s1235 = scalar_lea.vmem %s663, 8
        %v1236 = vld [vmem:[%s1235] sm:$0xf]
        %v1238 = vsel %vm809, %v1234, 0
        %v1241 = vsel %vm873, %v1236, 0
        %1243 = vmatprep.subr.bf16.mxu0 0
        %1244 = vmatpush1.bf16.msra.mxu0 %v1241
        %1245 = vmatprep.subr.bf16.mxu0 0
        %1246 = vmatpush1.bf16.msra.mxu0 0
        %1247 = vmatprep.subr.bf16.mxu0 0
        %1248 = vmatpush1.bf16.msra.mxu0 0
        %1249 = vmatprep.subr.bf16.mxu0 0
        %1250 = vmatpush1.bf16.msra.mxu0 0
        %1251 = vmatprep.subr.bf16.mxu0 0
        %1252 = vmatpush1.bf16.msra.mxu0 0
        %1253 = vmatprep.subr.bf16.mxu0 0
        %1254 = vmatpush1.bf16.msra.mxu0 0
        %1255 = vmatprep.subr.bf16.mxu0 0
        %1256 = vmatpush1.bf16.msra.mxu0 0
        %1257 = vmatprep.subr.bf16.mxu0 0
        %1258 = vmatpush1.bf16.msra.mxu0 0
        %1259 = vmatprep.subr.bf16.mxu0 0
        %1260 = vmatpush1.bf16.msra.mxu0 0
        %1261 = vmatprep.subr.bf16.mxu0 0
        %1262 = vmatpush1.bf16.msra.mxu0 0
        %1263 = vmatprep.subr.bf16.mxu0 0
        %1264 = vmatpush1.bf16.msra.mxu0 0
        %1265 = vmatprep.subr.bf16.mxu0 0
        %1266 = vmatpush1.bf16.msra.mxu0 0
        %1267 = vmatprep.subr.bf16.mxu0 0
        %1268 = vmatpush1.bf16.msra.mxu0 0
        %1269 = vmatprep.subr.bf16.mxu0 0
        %1270 = vmatpush1.bf16.msra.mxu0 0
        %1271 = vmatprep.subr.bf16.mxu0 0
        %1272 = vmatpush1.bf16.msra.mxu0 0
        %1273 = vmatprep.subr.bf16.mxu0 0
        %1274 = vmatpush1.bf16.msra.mxu0 0
        %1275 = vmatprep.mubr.bf16.mxu0 0
        %1276 = vmatmul.mubr.bf16.gmra.mrb[0].mxu0 %v1238
        %v1277 = vpop.f32.mrb[0].mxu0
        %v1278 = vadd.f32 0.0, %v1277
        %v1279 = vpop.f32.mrb[0].mxu0
        %v1280 = vpop.f32.mrb[0].mxu0
        %v1281 = vpop.f32.mrb[0].mxu0
        %1282 = vdwg.mxu0
        %v1283 = vadd.f32 %v1119, %v1278
        %1284 = vrot.lane.b32.xlu0 %v799, 104
        %v1285 = vpop.permute.xlu0 %1284
        %1286 = vrot.lane.b32.xlu0 %v799, 72
        %v1287 = vpop.permute.xlu0 %1286
        %v1289 = vsel %vm809, %v1285, 0
        %v1292 = vsel %vm809, %v1287, 0
        %1294 = vmatprep.subr.bf16.mxu0 0
        %1295 = vmatpush1.bf16.xpose.msra.mxu0 %v1292
        %1296 = vmatprep.subr.bf16.mxu0 0
        %1297 = vmatpush1.bf16.xpose.msra.mxu0 0
        %1298 = vmatprep.subr.bf16.mxu0 0
        %1299 = vmatpush1.bf16.xpose.msra.mxu0 0
        %1300 = vmatprep.subr.bf16.mxu0 0
        %1301 = vmatpush1.bf16.xpose.msra.mxu0 0
        %1302 = vmatprep.subr.bf16.mxu0 0
        %1303 = vmatpush1.bf16.xpose.msra.mxu0 0
        %1304 = vmatprep.subr.bf16.mxu0 0
        %1305 = vmatpush1.bf16.xpose.msra.mxu0 0
        %1306 = vmatprep.subr.bf16.mxu0 0
        %1307 = vmatpush1.bf16.xpose.msra.mxu0 0
        %1308 = vmatprep.subr.bf16.mxu0 0
        %1309 = vmatpush1.bf16.xpose.msra.mxu0 0
        %1310 = vmatprep.subr.bf16.mxu0 0
        %1311 = vmatpush1.bf16.xpose.msra.mxu0 0
        %1312 = vmatprep.subr.bf16.mxu0 0
        %1313 = vmatpush1.bf16.xpose.msra.mxu0 0
        %1314 = vmatprep.subr.bf16.mxu0 0
        %1315 = vmatpush1.bf16.xpose.msra.mxu0 0
        %1316 = vmatprep.subr.bf16.mxu0 0
        %1317 = vmatpush1.bf16.xpose.msra.mxu0 0
        %1318 = vmatprep.subr.bf16.mxu0 0
        %1319 = vmatpush1.bf16.xpose.msra.mxu0 0
        %1320 = vmatprep.subr.bf16.mxu0 0
        %1321 = vmatpush1.bf16.xpose.msra.mxu0 0
        %1322 = vmatprep.subr.bf16.mxu0 0
        %1323 = vmatpush1.bf16.xpose.msra.mxu0 0
        %1324 = vmatprep.subr.bf16.mxu0 0
        %1325 = vmatpush1.bf16.xpose.msra.mxu0 0
        %1326 = vmatprep.mubr.bf16.mxu0 0
        %1327 = vmatmul.mubr.bf16.gmra.mrb[0].mxu0 %v1289
        %v1328 = vpop.f32.mrb[0].mxu0
        %v1329 = vadd.f32 %v804, %v1328
        %v1330 = vpop.f32.mrb[0].mxu0
        %v1331 = vpop.f32.mrb[0].mxu0
        %v1332 = vpop.f32.mrb[0].mxu0
        %1333 = vdwg.mxu0
        %v1334 = vsel %vm809, %v1329, -inf
        %1335 = vmax.xlane.f32.xlu0 %v1334
        %v1336 = vpop.xlane.xlu0 %1335
        %v1337 = vsub.f32 %v1329, %v1336
        %v1338 = vmul.f32 %v1337, 1.442695
        %v1339 = vpow.pop %v1338
        %v1340 = vsel %vm809, %v1339, 0.0
        %1341 = vadd.xlane.f32.xlu0 %v1340
        %v1342 = vpop.xlane.xlu0 %1341
        %v1343 = vrcp.pop %v1342
        %v1344 = vmul.f32 %v1339, %v1343
        %v1345 = vpack.c.bf16 %v1344, %v1344
        %1346 = vrot.lane.b32.xlu0 %v799, 40
        %v1347 = vpop.permute.xlu0 %1346
        %v1349 = vsel %vm809, %v1345, 0
        %v1352 = vsel %vm873, %v1347, 0
        %1354 = vmatprep.subr.bf16.mxu0 0
        %1355 = vmatpush1.bf16.msra.mxu0 %v1352
        %1356 = vmatprep.subr.bf16.mxu0 0
        %1357 = vmatpush1.bf16.msra.mxu0 0
        %1358 = vmatprep.subr.bf16.mxu0 0
        %1359 = vmatpush1.bf16.msra.mxu0 0
        %1360 = vmatprep.subr.bf16.mxu0 0
        %1361 = vmatpush1.bf16.msra.mxu0 0
        %1362 = vmatprep.subr.bf16.mxu0 0
        %1363 = vmatpush1.bf16.msra.mxu0 0
        %1364 = vmatprep.subr.bf16.mxu0 0
        %1365 = vmatpush1.bf16.msra.mxu0 0
        %1366 = vmatprep.subr.bf16.mxu0 0
        %1367 = vmatpush1.bf16.msra.mxu0 0
        %1368 = vmatprep.subr.bf16.mxu0 0
        %1369 = vmatpush1.bf16.msra.mxu0 0
        %1370 = vmatprep.subr.bf16.mxu0 0
        %1371 = vmatpush1.bf16.msra.mxu0 0
        %1372 = vmatprep.subr.bf16.mxu0 0
        %1373 = vmatpush1.bf16.msra.mxu0 0
        %1374 = vmatprep.subr.bf16.mxu0 0
        %1375 = vmatpush1.bf16.msra.mxu0 0
        %1376 = vmatprep.subr.bf16.mxu0 0
        %1377 = vmatpush1.bf16.msra.mxu0 0
        %1378 = vmatprep.subr.bf16.mxu0 0
        %1379 = vmatpush1.bf16.msra.mxu0 0
        %1380 = vmatprep.subr.bf16.mxu0 0
        %1381 = vmatpush1.bf16.msra.mxu0 0
        %1382 = vmatprep.subr.bf16.mxu0 0
        %1383 = vmatpush1.bf16.msra.mxu0 0
        %1384 = vmatprep.subr.bf16.mxu0 0
        %1385 = vmatpush1.bf16.msra.mxu0 0
        %1386 = vmatprep.mubr.bf16.mxu0 0
        %1387 = vmatmul.mubr.bf16.gmra.mrb[0].mxu0 %v1349
        %v1388 = vpop.f32.mrb[0].mxu0
        %v1389 = vadd.f32 0.0, %v1388
        %v1390 = vpop.f32.mrb[0].mxu0
        %v1391 = vpop.f32.mrb[0].mxu0
        %v1392 = vpop.f32.mrb[0].mxu0
        %1393 = vdwg.mxu0
        %v1394 = vpack.c.bf16 %v1389, %v1389
        %s1395 = scalar_lea.vmem %s663, 12
        %v1396 = vld [vmem:[%s1395] sm:$0xf]
        %v1398 = vsel %vm809, %v1394, 0
        %v1401 = vsel %vm873, %v1396, 0
        %1403 = vmatprep.subr.bf16.mxu0 0
        %1404 = vmatpush1.bf16.msra.mxu0 %v1401
        %1405 = vmatprep.subr.bf16.mxu0 0
        %1406 = vmatpush1.bf16.msra.mxu0 0
        %1407 = vmatprep.subr.bf16.mxu0 0
        %1408 = vmatpush1.bf16.msra.mxu0 0
        %1409 = vmatprep.subr.bf16.mxu0 0
        %1410 = vmatpush1.bf16.msra.mxu0 0
        %1411 = vmatprep.subr.bf16.mxu0 0
        %1412 = vmatpush1.bf16.msra.mxu0 0
        %1413 = vmatprep.subr.bf16.mxu0 0
        %1414 = vmatpush1.bf16.msra.mxu0 0
        %1415 = vmatprep.subr.bf16.mxu0 0
        %1416 = vmatpush1.bf16.msra.mxu0 0
        %1417 = vmatprep.subr.bf16.mxu0 0
        %1418 = vmatpush1.bf16.msra.mxu0 0
        %1419 = vmatprep.subr.bf16.mxu0 0
        %1420 = vmatpush1.bf16.msra.mxu0 0
        %1421 = vmatprep.subr.bf16.mxu0 0
        %1422 = vmatpush1.bf16.msra.mxu0 0
        %1423 = vmatprep.subr.bf16.mxu0 0
        %1424 = vmatpush1.bf16.msra.mxu0 0
        %1425 = vmatprep.subr.bf16.mxu0 0
        %1426 = vmatpush1.bf16.msra.mxu0 0
        %1427 = vmatprep.subr.bf16.mxu0 0
        %1428 = vmatpush1.bf16.msra.mxu0 0
        %1429 = vmatprep.subr.bf16.mxu0 0
        %1430 = vmatpush1.bf16.msra.mxu0 0
        %1431 = vmatprep.subr.bf16.mxu0 0
        %1432 = vmatpush1.bf16.msra.mxu0 0
        %1433 = vmatprep.subr.bf16.mxu0 0
        %1434 = vmatpush1.bf16.msra.mxu0 0
        %1435 = vmatprep.mubr.bf16.mxu0 0
        %1436 = vmatmul.mubr.bf16.gmra.mrb[0].mxu0 %v1398
        %v1437 = vpop.f32.mrb[0].mxu0
        %v1438 = vadd.f32 0.0, %v1437
        %v1439 = vpop.f32.mrb[0].mxu0
        %v1440 = vpop.f32.mrb[0].mxu0
        %v1441 = vpop.f32.mrb[0].mxu0
        %1442 = vdwg.mxu0
        %v1443 = vadd.f32 %v1283, %v1438
        %v1444 = vld [vmem:[%s666] sm:$0x1]
        %v1446 = vlaneseq
        %v1447 = vshrl.u32 %v1446, 7
        %v1448 = vsub.s32 0, %v1447
        %v1449 = vrot.slane %v1444, %v1448
        %v1451 = vadd.f32 %v1443, %v1449
        %v1452 = vadd.f32 %v730, %v1451
        %v1453 = vld [vmem:[%s647] sm:$0x1]
        %v1454 = vld [vmem:[%s650] sm:$0x1]
        %v1455 = vsel %vm695, %v1452, 0.0
        %1456 = vadd.xlane.f32.xlu0 %v1455
        %v1457 = vpop.xlane.xlu0 %1456
        %v1458 = vmul.f32 %v1457, %v699
        %v1459 = vsub.f32 %v1452, %v1458
        %v1460 = vmul.f32 %v1459, %v1459
        %v1461 = vsel %vm695, %v1460, 0.0
        %1462 = vadd.xlane.f32.xlu0 %v1461
        %v1463 = vpop.xlane.xlu0 %1462
        %v1464 = vmul.f32 %v1463, 0.032258064
        %v1465 = vrsqrt.pop %v1464
        %v1466 = vmul.f32 %v1464, %v1465
        %vm1467 = vcmp.eq.f32.partialorder %v1464, inf
        %v1468 = vsel %vm1467, %v1464, %v1466
        %vm1469 = vcmp.eq.f32.partialorder %v1464, 0.0
        %v1470 = vand.u32 %v1464, 2147483648
        %v1471 = vsel %vm1469, %v1470, %v1468
        %v1472 = vadd.f32 %v1471, 1e-06
        %v1473 = vrcp.pop %v1472
        %v1474 = vmul.f32 %v1459, %v1473
        %v1476 = vlaneseq
        %v1477 = vshrl.u32 %v1476, 7
        %v1478 = vsub.s32 0, %v1477
        %v1479 = vrot.slane %v1453, %v1478
        %v1481 = vmul.f32 %v1479, %v1474
        %v1483 = vlaneseq
        %v1484 = vshrl.u32 %v1483, 7
        %v1485 = vsub.s32 0, %v1484
        %v1486 = vrot.slane %v1454, %v1485
        %v1488 = vadd.f32 %v1481, %v1486
        %v1489 = vpack.c.bf16 %v1488, %v1488
        %v1490 = vld [vmem:[%s671] sm:$0xff]
        %v1491 = vld [vmem:[%s671 + $0x8] sm:$0xff]
        %v1492 = vld [vmem:[%s671 + $0x10] sm:$0xff]
        %v1493 = vld [vmem:[%s671 + $0x18] sm:$0xff]
        %v1494 = vld [vmem:[%s671 + $0x20] sm:$0xff]
        %v1495 = vld [vmem:[%s671 + $0x28] sm:$0xff]
        %v1496 = vld [vmem:[%s671 + $0x30] sm:$0xff]
        %v1497 = vld [vmem:[%s671 + $0x38] sm:$0xff]
        %v1498 = vld [vmem:[%s671 + $0x40] sm:$0xff]
        %v1499 = vld [vmem:[%s671 + $0x48] sm:$0xff]
        %v1500 = vld [vmem:[%s671 + $0x50] sm:$0xff]
        %v1501 = vld [vmem:[%s671 + $0x58] sm:$0xff]
        %v1502 = vld [vmem:[%s671 + $0x60] sm:$0xff]
        %v1503 = vld [vmem:[%s671 + $0x68] sm:$0xff]
        %v1504 = vld [vmem:[%s671 + $0x70] sm:$0xff]
        %v1505 = vld [vmem:[%s671 + $0x78] sm:$0xff]
        %v1506 = vld [vmem:[%s671 + $0x80] sm:$0xff]
        %v1507 = vld [vmem:[%s671 + $0x88] sm:$0xff]
        %v1508 = vld [vmem:[%s671 + $0x90] sm:$0xff]
        %v1509 = vld [vmem:[%s671 + $0x98] sm:$0xff]
        %v1510 = vld [vmem:[%s671 + $0xa0] sm:$0xff]
        %v1511 = vld [vmem:[%s671 + $0xa8] sm:$0xff]
        %v1512 = vld [vmem:[%s671 + $0xb0] sm:$0xff]
        %v1513 = vld [vmem:[%s671 + $0xb8] sm:$0xff]
        %v1514 = vld [vmem:[%s671 + $0xc0] sm:$0xff]
        %v1515 = vld [vmem:[%s671 + $0xc8] sm:$0xff]
        %v1516 = vld [vmem:[%s671 + $0xd0] sm:$0xff]
        %v1517 = vld [vmem:[%s671 + $0xd8] sm:$0xff]
        %v1518 = vld [vmem:[%s671 + $0xe0] sm:$0xff]
        %v1519 = vld [vmem:[%s671 + $0xe8] sm:$0xff]
        %v1520 = vld [vmem:[%s671 + $0xf0] sm:$0xff]
        %v1521 = vld [vmem:[%s671 + $0xf8] sm:$0xff]
        %v1522 = vld [vmem:[%s675] sm:$0xff]
        %v1523 = vld [vmem:[%s675 + $0x8] sm:$0xff]
        %v1526 = vlaneseq
        %v1527 = vshrl.u32 %v1526, 7
        %v1528 = vsub.s32 0, %v1527
        %v1529 = vrot.slane %v1522, %v1528
        %v1530 = vlaneseq
        %v1531 = vshrl.u32 %v1530, 7
        %v1532 = vsub.s32 1, %v1531
        %v1533 = vrot.slane %v1522, %v1532
        %v1534 = vlaneseq
        %v1535 = vshrl.u32 %v1534, 7
        %v1536 = vsub.s32 2, %v1535
        %v1537 = vrot.slane %v1522, %v1536
        %v1538 = vlaneseq
        %v1539 = vshrl.u32 %v1538, 7
        %v1540 = vsub.s32 3, %v1539
        %v1541 = vrot.slane %v1522, %v1540
        %v1542 = vlaneseq
        %v1543 = vshrl.u32 %v1542, 7
        %v1544 = vsub.s32 4, %v1543
        %v1545 = vrot.slane %v1522, %v1544
        %v1546 = vlaneseq
        %v1547 = vshrl.u32 %v1546, 7
        %v1548 = vsub.s32 5, %v1547
        %v1549 = vrot.slane %v1522, %v1548
        %v1550 = vlaneseq
        %v1551 = vshrl.u32 %v1550, 7
        %v1552 = vsub.s32 6, %v1551
        %v1553 = vrot.slane %v1522, %v1552
        %v1554 = vlaneseq
        %v1555 = vshrl.u32 %v1554, 7
        %v1556 = vsub.s32 7, %v1555
        %v1557 = vrot.slane %v1522, %v1556
        %v1558 = vlaneseq
        %v1559 = vshrl.u32 %v1558, 7
        %v1560 = vsub.s32 0, %v1559
        %v1561 = vrot.slane %v1523, %v1560
        %v1562 = vlaneseq
        %v1563 = vshrl.u32 %v1562, 7
        %v1564 = vsub.s32 1, %v1563
        %v1565 = vrot.slane %v1523, %v1564
        %v1566 = vlaneseq
        %v1567 = vshrl.u32 %v1566, 7
        %v1568 = vsub.s32 2, %v1567
        %v1569 = vrot.slane %v1523, %v1568
        %v1570 = vlaneseq
        %v1571 = vshrl.u32 %v1570, 7
        %v1572 = vsub.s32 3, %v1571
        %v1573 = vrot.slane %v1523, %v1572
        %v1574 = vlaneseq
        %v1575 = vshrl.u32 %v1574, 7
        %v1576 = vsub.s32 4, %v1575
        %v1577 = vrot.slane %v1523, %v1576
        %v1578 = vlaneseq
        %v1579 = vshrl.u32 %v1578, 7
        %v1580 = vsub.s32 5, %v1579
        %v1581 = vrot.slane %v1523, %v1580
        %v1582 = vlaneseq
        %v1583 = vshrl.u32 %v1582, 7
        %v1584 = vsub.s32 6, %v1583
        %v1585 = vrot.slane %v1523, %v1584
        %v1586 = vlaneseq
        %v1587 = vshrl.u32 %v1586, 7
        %v1588 = vsub.s32 7, %v1587
        %v1589 = vrot.slane %v1523, %v1588
        %v1638 = vunpack.c.l.b16 %v1490
        %v1639 = vunpack.c.h.b16 %v1490
        %v1640 = vunpack.c.l.b16 %v1491
        %v1641 = vunpack.c.h.b16 %v1491
        %v1642 = vunpack.c.l.b16 %v1492
        %v1643 = vunpack.c.h.b16 %v1492
        %v1644 = vunpack.c.l.b16 %v1493
        %v1645 = vunpack.c.h.b16 %v1493
        %v1646 = vunpack.c.l.b16 %v1494
        %v1647 = vunpack.c.h.b16 %v1494
        %v1648 = vunpack.c.l.b16 %v1495
        %v1649 = vunpack.c.h.b16 %v1495
        %v1650 = vunpack.c.l.b16 %v1496
        %v1651 = vunpack.c.h.b16 %v1496
        %v1652 = vunpack.c.l.b16 %v1497
        %v1653 = vunpack.c.h.b16 %v1497
        %v1654 = vunpack.c.l.b16 %v1498
        %v1655 = vunpack.c.h.b16 %v1498
        %v1656 = vunpack.c.l.b16 %v1499
        %v1657 = vunpack.c.h.b16 %v1499
        %v1658 = vunpack.c.l.b16 %v1500
        %v1659 = vunpack.c.h.b16 %v1500
        %v1660 = vunpack.c.l.b16 %v1501
        %v1661 = vunpack.c.h.b16 %v1501
        %v1662 = vunpack.c.l.b16 %v1502
        %v1663 = vunpack.c.h.b16 %v1502
        %v1664 = vunpack.c.l.b16 %v1503
        %v1665 = vunpack.c.h.b16 %v1503
        %v1666 = vunpack.c.l.b16 %v1504
        %v1667 = vunpack.c.h.b16 %v1504
        %v1668 = vunpack.c.l.b16 %v1505
        %v1669 = vunpack.c.h.b16 %v1505
        %v1670 = vunpack.c.l.b16 %v1506
        %v1671 = vunpack.c.h.b16 %v1506
        %v1672 = vunpack.c.l.b16 %v1507
        %v1673 = vunpack.c.h.b16 %v1507
        %v1674 = vunpack.c.l.b16 %v1508
        %v1675 = vunpack.c.h.b16 %v1508
        %v1676 = vunpack.c.l.b16 %v1509
        %v1677 = vunpack.c.h.b16 %v1509
        %v1678 = vunpack.c.l.b16 %v1510
        %v1679 = vunpack.c.h.b16 %v1510
        %v1680 = vunpack.c.l.b16 %v1511
        %v1681 = vunpack.c.h.b16 %v1511
        %v1682 = vunpack.c.l.b16 %v1512
        %v1683 = vunpack.c.h.b16 %v1512
        %v1684 = vunpack.c.l.b16 %v1513
        %v1685 = vunpack.c.h.b16 %v1513
        %v1686 = vunpack.c.l.b16 %v1514
        %v1687 = vunpack.c.h.b16 %v1514
        %v1688 = vunpack.c.l.b16 %v1515
        %v1689 = vunpack.c.h.b16 %v1515
        %v1690 = vunpack.c.l.b16 %v1516
        %v1691 = vunpack.c.h.b16 %v1516
        %v1692 = vunpack.c.l.b16 %v1517
        %v1693 = vunpack.c.h.b16 %v1517
        %v1694 = vunpack.c.l.b16 %v1518
        %v1695 = vunpack.c.h.b16 %v1518
        %v1696 = vunpack.c.l.b16 %v1519
        %v1697 = vunpack.c.h.b16 %v1519
        %v1698 = vunpack.c.l.b16 %v1520
        %v1699 = vunpack.c.h.b16 %v1520
        %v1700 = vunpack.c.l.b16 %v1521
        %v1701 = vunpack.c.h.b16 %v1521
        %v1702 = vpack.c.b16 %v1654, %v1638
        %v1703 = vpack.c.b16 %v1655, %v1639
        %v1704 = vpack.c.b16 %v1656, %v1640
        %v1705 = vpack.c.b16 %v1657, %v1641
        %v1706 = vpack.c.b16 %v1658, %v1642
        %v1707 = vpack.c.b16 %v1659, %v1643
        %v1708 = vpack.c.b16 %v1660, %v1644
        %v1709 = vpack.c.b16 %v1661, %v1645
        %v1710 = vpack.c.b16 %v1662, %v1646
        %v1711 = vpack.c.b16 %v1663, %v1647
        %v1712 = vpack.c.b16 %v1664, %v1648
        %v1713 = vpack.c.b16 %v1665, %v1649
        %v1714 = vpack.c.b16 %v1666, %v1650
        %v1715 = vpack.c.b16 %v1667, %v1651
        %v1716 = vpack.c.b16 %v1668, %v1652
        %v1717 = vpack.c.b16 %v1669, %v1653
        %v1718 = vpack.c.b16 %v1686, %v1670
        %v1719 = vpack.c.b16 %v1687, %v1671
        %v1720 = vpack.c.b16 %v1688, %v1672
        %v1721 = vpack.c.b16 %v1689, %v1673
        %v1722 = vpack.c.b16 %v1690, %v1674
        %v1723 = vpack.c.b16 %v1691, %v1675
        %v1724 = vpack.c.b16 %v1692, %v1676
        %v1725 = vpack.c.b16 %v1693, %v1677
        %v1726 = vpack.c.b16 %v1694, %v1678
        %v1727 = vpack.c.b16 %v1695, %v1679
        %v1728 = vpack.c.b16 %v1696, %v1680
        %v1729 = vpack.c.b16 %v1697, %v1681
        %v1730 = vpack.c.b16 %v1698, %v1682
        %v1731 = vpack.c.b16 %v1699, %v1683
        %v1732 = vpack.c.b16 %v1700, %v1684
        %v1733 = vpack.c.b16 %v1701, %v1685
        %v1767 = vsel %vm695, %v1489, 0
        %1769 = vmatprep.subr.bf16.mxu0 %v1703
        %1770 = vmatpush1.bf16.msra.mxu0 %v1702
        %1771 = vmatprep.subr.bf16.mxu0 %v1719
        %1772 = vmatpush1.bf16.msra.mxu0 %v1718
        %1773 = vmatprep.subr.bf16.mxu0 0
        %1774 = vmatpush1.bf16.msra.mxu0 0
        %1775 = vmatprep.subr.bf16.mxu0 0
        %1776 = vmatpush1.bf16.msra.mxu0 0
        %1777 = vmatprep.subr.bf16.mxu0 0
        %1778 = vmatpush1.bf16.msra.mxu0 0
        %1779 = vmatprep.subr.bf16.mxu0 0
        %1780 = vmatpush1.bf16.msra.mxu0 0
        %1781 = vmatprep.subr.bf16.mxu0 0
        %1782 = vmatpush1.bf16.msra.mxu0 0
        %1783 = vmatprep.subr.bf16.mxu0 0
        %1784 = vmatpush1.bf16.msra.mxu0 0
        %1785 = vmatprep.subr.bf16.mxu0 0
        %1786 = vmatpush1.bf16.msra.mxu0 0
        %1787 = vmatprep.subr.bf16.mxu0 0
        %1788 = vmatpush1.bf16.msra.mxu0 0
        %1789 = vmatprep.subr.bf16.mxu0 0
        %1790 = vmatpush1.bf16.msra.mxu0 0
        %1791 = vmatprep.subr.bf16.mxu0 0
        %1792 = vmatpush1.bf16.msra.mxu0 0
        %1793 = vmatprep.subr.bf16.mxu0 0
        %1794 = vmatpush1.bf16.msra.mxu0 0
        %1795 = vmatprep.subr.bf16.mxu0 0
        %1796 = vmatpush1.bf16.msra.mxu0 0
        %1797 = vmatprep.subr.bf16.mxu0 0
        %1798 = vmatpush1.bf16.msra.mxu0 0
        %1799 = vmatprep.subr.bf16.mxu0 0
        %1800 = vmatpush1.bf16.msra.mxu0 0
        %1801 = vmatprep.mubr.bf16.mxu0 0
        %1802 = vmatmul.mubr.bf16.gmra.mrb[0].mxu0 %v1767
        %v1803 = vpop.f32.mrb[0].mxu0
        %v1804 = vadd.f32 %v1529, %v1803
        %v1805 = vpop.f32.mrb[0].mxu0
        %v1806 = vadd.f32 %v1533, %v1805
        %v1807 = vpop.f32.mrb[0].mxu0
        %v1808 = vpop.f32.mrb[0].mxu0
        %1809 = vdwg.mxu0
        %1810 = vmatprep.subr.bf16.mxu0 %v1705
        %1811 = vmatpush1.bf16.msra.mxu0 %v1704
        %1812 = vmatprep.subr.bf16.mxu0 %v1721
        %1813 = vmatpush1.bf16.msra.mxu0 %v1720
        %1814 = vmatprep.subr.bf16.mxu0 0
        %1815 = vmatpush1.bf16.msra.mxu0 0
        %1816 = vmatprep.subr.bf16.mxu0 0
        %1817 = vmatpush1.bf16.msra.mxu0 0
        %1818 = vmatprep.subr.bf16.mxu0 0
        %1819 = vmatpush1.bf16.msra.mxu0 0
        %1820 = vmatprep.subr.bf16.mxu0 0
        %1821 = vmatpush1.bf16.msra.mxu0 0
        %1822 = vmatprep.subr.bf16.mxu0 0
        %1823 = vmatpush1.bf16.msra.mxu0 0
        %1824 = vmatprep.subr.bf16.mxu0 0
        %1825 = vmatpush1.bf16.msra.mxu0 0
        %1826 = vmatprep.subr.bf16.mxu0 0
        %1827 = vmatpush1.bf16.msra.mxu0 0
        %1828 = vmatprep.subr.bf16.mxu0 0
        %1829 = vmatpush1.bf16.msra.mxu0 0
        %1830 = vmatprep.subr.bf16.mxu0 0
        %1831 = vmatpush1.bf16.msra.mxu0 0
        %1832 = vmatprep.subr.bf16.mxu0 0
        %1833 = vmatpush1.bf16.msra.mxu0 0
        %1834 = vmatprep.subr.bf16.mxu0 0
        %1835 = vmatpush1.bf16.msra.mxu0 0
        %1836 = vmatprep.subr.bf16.mxu0 0
        %1837 = vmatpush1.bf16.msra.mxu0 0
        %1838 = vmatprep.subr.bf16.mxu0 0
        %1839 = vmatpush1.bf16.msra.mxu0 0
        %1840 = vmatprep.subr.bf16.mxu0 0
        %1841 = vmatpush1.bf16.msra.mxu0 0
        %1842 = vmatprep.mubr.bf16.mxu0 0
        %1843 = vmatmul.mubr.bf16.gmra.mrb[0].mxu0 %v1767
        %v1844 = vpop.f32.mrb[0].mxu0
        %v1845 = vadd.f32 %v1537, %v1844
        %v1846 = vpop.f32.mrb[0].mxu0
        %v1847 = vadd.f32 %v1541, %v1846
        %v1848 = vpop.f32.mrb[0].mxu0
        %v1849 = vpop.f32.mrb[0].mxu0
        %1850 = vdwg.mxu0
        %1851 = vmatprep.subr.bf16.mxu0 %v1707
        %1852 = vmatpush1.bf16.msra.mxu0 %v1706
        %1853 = vmatprep.subr.bf16.mxu0 %v1723
        %1854 = vmatpush1.bf16.msra.mxu0 %v1722
        %1855 = vmatprep.subr.bf16.mxu0 0
        %1856 = vmatpush1.bf16.msra.mxu0 0
        %1857 = vmatprep.subr.bf16.mxu0 0
        %1858 = vmatpush1.bf16.msra.mxu0 0
        %1859 = vmatprep.subr.bf16.mxu0 0
        %1860 = vmatpush1.bf16.msra.mxu0 0
        %1861 = vmatprep.subr.bf16.mxu0 0
        %1862 = vmatpush1.bf16.msra.mxu0 0
        %1863 = vmatprep.subr.bf16.mxu0 0
        %1864 = vmatpush1.bf16.msra.mxu0 0
        %1865 = vmatprep.subr.bf16.mxu0 0
        %1866 = vmatpush1.bf16.msra.mxu0 0
        %1867 = vmatprep.subr.bf16.mxu0 0
        %1868 = vmatpush1.bf16.msra.mxu0 0
        %1869 = vmatprep.subr.bf16.mxu0 0
        %1870 = vmatpush1.bf16.msra.mxu0 0
        %1871 = vmatprep.subr.bf16.mxu0 0
        %1872 = vmatpush1.bf16.msra.mxu0 0
        %1873 = vmatprep.subr.bf16.mxu0 0
        %1874 = vmatpush1.bf16.msra.mxu0 0
        %1875 = vmatprep.subr.bf16.mxu0 0
        %1876 = vmatpush1.bf16.msra.mxu0 0
        %1877 = vmatprep.subr.bf16.mxu0 0
        %1878 = vmatpush1.bf16.msra.mxu0 0
        %1879 = vmatprep.subr.bf16.mxu0 0
        %1880 = vmatpush1.bf16.msra.mxu0 0
        %1881 = vmatprep.subr.bf16.mxu0 0
        %1882 = vmatpush1.bf16.msra.mxu0 0
        %1883 = vmatprep.mubr.bf16.mxu0 0
        %1884 = vmatmul.mubr.bf16.gmra.mrb[0].mxu0 %v1767
        %v1885 = vpop.f32.mrb[0].mxu0
        %v1886 = vadd.f32 %v1545, %v1885
        %v1887 = vpop.f32.mrb[0].mxu0
        %v1888 = vadd.f32 %v1549, %v1887
        %v1889 = vpop.f32.mrb[0].mxu0
        %v1890 = vpop.f32.mrb[0].mxu0
        %1891 = vdwg.mxu0
        %1892 = vmatprep.subr.bf16.mxu0 %v1709
        %1893 = vmatpush1.bf16.msra.mxu0 %v1708
        %1894 = vmatprep.subr.bf16.mxu0 %v1725
        %1895 = vmatpush1.bf16.msra.mxu0 %v1724
        %1896 = vmatprep.subr.bf16.mxu0 0
        %1897 = vmatpush1.bf16.msra.mxu0 0
        %1898 = vmatprep.subr.bf16.mxu0 0
        %1899 = vmatpush1.bf16.msra.mxu0 0
        %1900 = vmatprep.subr.bf16.mxu0 0
        %1901 = vmatpush1.bf16.msra.mxu0 0
        %1902 = vmatprep.subr.bf16.mxu0 0
        %1903 = vmatpush1.bf16.msra.mxu0 0
        %1904 = vmatprep.subr.bf16.mxu0 0
        %1905 = vmatpush1.bf16.msra.mxu0 0
        %1906 = vmatprep.subr.bf16.mxu0 0
        %1907 = vmatpush1.bf16.msra.mxu0 0
        %1908 = vmatprep.subr.bf16.mxu0 0
        %1909 = vmatpush1.bf16.msra.mxu0 0
        %1910 = vmatprep.subr.bf16.mxu0 0
        %1911 = vmatpush1.bf16.msra.mxu0 0
        %1912 = vmatprep.subr.bf16.mxu0 0
        %1913 = vmatpush1.bf16.msra.mxu0 0
        %1914 = vmatprep.subr.bf16.mxu0 0
        %1915 = vmatpush1.bf16.msra.mxu0 0
        %1916 = vmatprep.subr.bf16.mxu0 0
        %1917 = vmatpush1.bf16.msra.mxu0 0
        %1918 = vmatprep.subr.bf16.mxu0 0
        %1919 = vmatpush1.bf16.msra.mxu0 0
        %1920 = vmatprep.subr.bf16.mxu0 0
        %1921 = vmatpush1.bf16.msra.mxu0 0
        %1922 = vmatprep.subr.bf16.mxu0 0
        %1923 = vmatpush1.bf16.msra.mxu0 0
        %1924 = vmatprep.mubr.bf16.mxu0 0
        %1925 = vmatmul.mubr.bf16.gmra.mrb[0].mxu0 %v1767
        %v1926 = vpop.f32.mrb[0].mxu0
        %v1927 = vadd.f32 %v1553, %v1926
        %v1928 = vpop.f32.mrb[0].mxu0
        %v1929 = vadd.f32 %v1557, %v1928
        %v1930 = vpop.f32.mrb[0].mxu0
        %v1931 = vpop.f32.mrb[0].mxu0
        %1932 = vdwg.mxu0
        %1933 = vmatprep.subr.bf16.mxu0 %v1711
        %1934 = vmatpush1.bf16.msra.mxu0 %v1710
        %1935 = vmatprep.subr.bf16.mxu0 %v1727
        %1936 = vmatpush1.bf16.msra.mxu0 %v1726
        %1937 = vmatprep.subr.bf16.mxu0 0
        %1938 = vmatpush1.bf16.msra.mxu0 0
        %1939 = vmatprep.subr.bf16.mxu0 0
        %1940 = vmatpush1.bf16.msra.mxu0 0
        %1941 = vmatprep.subr.bf16.mxu0 0
        %1942 = vmatpush1.bf16.msra.mxu0 0
        %1943 = vmatprep.subr.bf16.mxu0 0
        %1944 = vmatpush1.bf16.msra.mxu0 0
        %1945 = vmatprep.subr.bf16.mxu0 0
        %1946 = vmatpush1.bf16.msra.mxu0 0
        %1947 = vmatprep.subr.bf16.mxu0 0
        %1948 = vmatpush1.bf16.msra.mxu0 0
        %1949 = vmatprep.subr.bf16.mxu0 0
        %1950 = vmatpush1.bf16.msra.mxu0 0
        %1951 = vmatprep.subr.bf16.mxu0 0
        %1952 = vmatpush1.bf16.msra.mxu0 0
        %1953 = vmatprep.subr.bf16.mxu0 0
        %1954 = vmatpush1.bf16.msra.mxu0 0
        %1955 = vmatprep.subr.bf16.mxu0 0
        %1956 = vmatpush1.bf16.msra.mxu0 0
        %1957 = vmatprep.subr.bf16.mxu0 0
        %1958 = vmatpush1.bf16.msra.mxu0 0
        %1959 = vmatprep.subr.bf16.mxu0 0
        %1960 = vmatpush1.bf16.msra.mxu0 0
        %1961 = vmatprep.subr.bf16.mxu0 0
        %1962 = vmatpush1.bf16.msra.mxu0 0
        %1963 = vmatprep.subr.bf16.mxu0 0
        %1964 = vmatpush1.bf16.msra.mxu0 0
        %1965 = vmatprep.mubr.bf16.mxu0 0
        %1966 = vmatmul.mubr.bf16.gmra.mrb[0].mxu0 %v1767
        %v1967 = vpop.f32.mrb[0].mxu0
        %v1968 = vadd.f32 %v1561, %v1967
        %v1969 = vpop.f32.mrb[0].mxu0
        %v1970 = vadd.f32 %v1565, %v1969
        %v1971 = vpop.f32.mrb[0].mxu0
        %v1972 = vpop.f32.mrb[0].mxu0
        %1973 = vdwg.mxu0
        %1974 = vmatprep.subr.bf16.mxu0 %v1713
        %1975 = vmatpush1.bf16.msra.mxu0 %v1712
        %1976 = vmatprep.subr.bf16.mxu0 %v1729
        %1977 = vmatpush1.bf16.msra.mxu0 %v1728
        %1978 = vmatprep.subr.bf16.mxu0 0
        %1979 = vmatpush1.bf16.msra.mxu0 0
        %1980 = vmatprep.subr.bf16.mxu0 0
        %1981 = vmatpush1.bf16.msra.mxu0 0
        %1982 = vmatprep.subr.bf16.mxu0 0
        %1983 = vmatpush1.bf16.msra.mxu0 0
        %1984 = vmatprep.subr.bf16.mxu0 0
        %1985 = vmatpush1.bf16.msra.mxu0 0
        %1986 = vmatprep.subr.bf16.mxu0 0
        %1987 = vmatpush1.bf16.msra.mxu0 0
        %1988 = vmatprep.subr.bf16.mxu0 0
        %1989 = vmatpush1.bf16.msra.mxu0 0
        %1990 = vmatprep.subr.bf16.mxu0 0
        %1991 = vmatpush1.bf16.msra.mxu0 0
        %1992 = vmatprep.subr.bf16.mxu0 0
        %1993 = vmatpush1.bf16.msra.mxu0 0
        %1994 = vmatprep.subr.bf16.mxu0 0
        %1995 = vmatpush1.bf16.msra.mxu0 0
        %1996 = vmatprep.subr.bf16.mxu0 0
        %1997 = vmatpush1.bf16.msra.mxu0 0
        %1998 = vmatprep.subr.bf16.mxu0 0
        %1999 = vmatpush1.bf16.msra.mxu0 0
        %2000 = vmatprep.subr.bf16.mxu0 0
        %2001 = vmatpush1.bf16.msra.mxu0 0
        %2002 = vmatprep.subr.bf16.mxu0 0
        %2003 = vmatpush1.bf16.msra.mxu0 0
        %2004 = vmatprep.subr.bf16.mxu0 0
        %2005 = vmatpush1.bf16.msra.mxu0 0
        %2006 = vmatprep.mubr.bf16.mxu0 0
        %2007 = vmatmul.mubr.bf16.gmra.mrb[0].mxu0 %v1767
        %v2008 = vpop.f32.mrb[0].mxu0
        %v2009 = vadd.f32 %v1569, %v2008
        %v2010 = vpop.f32.mrb[0].mxu0
        %v2011 = vadd.f32 %v1573, %v2010
        %v2012 = vpop.f32.mrb[0].mxu0
        %v2013 = vpop.f32.mrb[0].mxu0
        %2014 = vdwg.mxu0
        %2015 = vmatprep.subr.bf16.mxu0 %v1715
        %2016 = vmatpush1.bf16.msra.mxu0 %v1714
        %2017 = vmatprep.subr.bf16.mxu0 %v1731
        %2018 = vmatpush1.bf16.msra.mxu0 %v1730
        %2019 = vmatprep.subr.bf16.mxu0 0
        %2020 = vmatpush1.bf16.msra.mxu0 0
        %2021 = vmatprep.subr.bf16.mxu0 0
        %2022 = vmatpush1.bf16.msra.mxu0 0
        %2023 = vmatprep.subr.bf16.mxu0 0
        %2024 = vmatpush1.bf16.msra.mxu0 0
        %2025 = vmatprep.subr.bf16.mxu0 0
        %2026 = vmatpush1.bf16.msra.mxu0 0
        %2027 = vmatprep.subr.bf16.mxu0 0
        %2028 = vmatpush1.bf16.msra.mxu0 0
        %2029 = vmatprep.subr.bf16.mxu0 0
        %2030 = vmatpush1.bf16.msra.mxu0 0
        %2031 = vmatprep.subr.bf16.mxu0 0
        %2032 = vmatpush1.bf16.msra.mxu0 0
        %2033 = vmatprep.subr.bf16.mxu0 0
        %2034 = vmatpush1.bf16.msra.mxu0 0
        %2035 = vmatprep.subr.bf16.mxu0 0
        %2036 = vmatpush1.bf16.msra.mxu0 0
        %2037 = vmatprep.subr.bf16.mxu0 0
        %2038 = vmatpush1.bf16.msra.mxu0 0
        %2039 = vmatprep.subr.bf16.mxu0 0
        %2040 = vmatpush1.bf16.msra.mxu0 0
        %2041 = vmatprep.subr.bf16.mxu0 0
        %2042 = vmatpush1.bf16.msra.mxu0 0
        %2043 = vmatprep.subr.bf16.mxu0 0
        %2044 = vmatpush1.bf16.msra.mxu0 0
        %2045 = vmatprep.subr.bf16.mxu0 0
        %2046 = vmatpush1.bf16.msra.mxu0 0
        %2047 = vmatprep.mubr.bf16.mxu0 0
        %2048 = vmatmul.mubr.bf16.gmra.mrb[0].mxu0 %v1767
        %v2049 = vpop.f32.mrb[0].mxu0
        %v2050 = vadd.f32 %v1577, %v2049
        %v2051 = vpop.f32.mrb[0].mxu0
        %v2052 = vadd.f32 %v1581, %v2051
        %v2053 = vpop.f32.mrb[0].mxu0
        %v2054 = vpop.f32.mrb[0].mxu0
        %2055 = vdwg.mxu0
        %2056 = vmatprep.subr.bf16.mxu0 %v1717
        %2057 = vmatpush1.bf16.msra.mxu0 %v1716
        %2058 = vmatprep.subr.bf16.mxu0 %v1733
        %2059 = vmatpush1.bf16.msra.mxu0 %v1732
        %2060 = vmatprep.subr.bf16.mxu0 0
        %2061 = vmatpush1.bf16.msra.mxu0 0
        %2062 = vmatprep.subr.bf16.mxu0 0
        %2063 = vmatpush1.bf16.msra.mxu0 0
        %2064 = vmatprep.subr.bf16.mxu0 0
        %2065 = vmatpush1.bf16.msra.mxu0 0
        %2066 = vmatprep.subr.bf16.mxu0 0
        %2067 = vmatpush1.bf16.msra.mxu0 0
        %2068 = vmatprep.subr.bf16.mxu0 0
        %2069 = vmatpush1.bf16.msra.mxu0 0
        %2070 = vmatprep.subr.bf16.mxu0 0
        %2071 = vmatpush1.bf16.msra.mxu0 0
        %2072 = vmatprep.subr.bf16.mxu0 0
        %2073 = vmatpush1.bf16.msra.mxu0 0
        %2074 = vmatprep.subr.bf16.mxu0 0
        %2075 = vmatpush1.bf16.msra.mxu0 0
        %2076 = vmatprep.subr.bf16.mxu0 0
        %2077 = vmatpush1.bf16.msra.mxu0 0
        %2078 = vmatprep.subr.bf16.mxu0 0
        %2079 = vmatpush1.bf16.msra.mxu0 0
        %2080 = vmatprep.subr.bf16.mxu0 0
        %2081 = vmatpush1.bf16.msra.mxu0 0
        %2082 = vmatprep.subr.bf16.mxu0 0
        %2083 = vmatpush1.bf16.msra.mxu0 0
        %2084 = vmatprep.subr.bf16.mxu0 0
        %2085 = vmatpush1.bf16.msra.mxu0 0
        %2086 = vmatprep.subr.bf16.mxu0 0
        %2087 = vmatpush1.bf16.msra.mxu0 0
        %2088 = vmatprep.mubr.bf16.mxu0 0
        %2089 = vmatmul.mubr.bf16.gmra.mrb[0].mxu0 %v1767
        %v2090 = vpop.f32.mrb[0].mxu0
        %v2091 = vadd.f32 %v1585, %v2090
        %v2092 = vpop.f32.mrb[0].mxu0
        %v2093 = vadd.f32 %v1589, %v2092
        %v2094 = vpop.f32.mrb[0].mxu0
        %v2095 = vpop.f32.mrb[0].mxu0
        %2096 = vdwg.mxu0
        %v2097 = vmax.f32 %v1804, 0.0
        %v2098 = vmax.f32 %v1806, 0.0
        %v2099 = vmax.f32 %v1845, 0.0
        %v2100 = vmax.f32 %v1847, 0.0
        %v2101 = vmax.f32 %v1886, 0.0
        %v2102 = vmax.f32 %v1888, 0.0
        %v2103 = vmax.f32 %v1927, 0.0
        %v2104 = vmax.f32 %v1929, 0.0
        %v2105 = vmax.f32 %v1968, 0.0
        %v2106 = vmax.f32 %v1970, 0.0
        %v2107 = vmax.f32 %v2009, 0.0
        %v2108 = vmax.f32 %v2011, 0.0
        %v2109 = vmax.f32 %v2050, 0.0
        %v2110 = vmax.f32 %v2052, 0.0
        %v2111 = vmax.f32 %v2091, 0.0
        %v2112 = vmax.f32 %v2093, 0.0
        %v2113 = vpack.c.bf16 %v2097, %v2097
        %v2114 = vpack.c.bf16 %v2098, %v2098
        %v2115 = vpack.c.bf16 %v2099, %v2099
        %v2116 = vpack.c.bf16 %v2100, %v2100
        %v2117 = vpack.c.bf16 %v2101, %v2101
        %v2118 = vpack.c.bf16 %v2102, %v2102
        %v2119 = vpack.c.bf16 %v2103, %v2103
        %v2120 = vpack.c.bf16 %v2104, %v2104
        %v2121 = vpack.c.bf16 %v2105, %v2105
        %v2122 = vpack.c.bf16 %v2106, %v2106
        %v2123 = vpack.c.bf16 %v2107, %v2107
        %v2124 = vpack.c.bf16 %v2108, %v2108
        %v2125 = vpack.c.bf16 %v2109, %v2109
        %v2126 = vpack.c.bf16 %v2110, %v2110
        %v2127 = vpack.c.bf16 %v2111, %v2111
        %v2128 = vpack.c.bf16 %v2112, %v2112
        %v2129 = vld [vmem:[%s680] sm:$0xf]
        %v2130 = vld [vmem:[%s680 + $0x4] sm:$0xf]
        %v2131 = vld [vmem:[%s680 + $0x8] sm:$0xf]
        %v2132 = vld [vmem:[%s680 + $0xc] sm:$0xf]
        %v2133 = vld [vmem:[%s680 + $0x10] sm:$0xf]
        %v2134 = vld [vmem:[%s680 + $0x14] sm:$0xf]
        %v2135 = vld [vmem:[%s680 + $0x18] sm:$0xf]
        %v2136 = vld [vmem:[%s680 + $0x1c] sm:$0xf]
        %v2137 = vld [vmem:[%s680 + $0x20] sm:$0xf]
        %v2138 = vld [vmem:[%s680 + $0x24] sm:$0xf]
        %v2139 = vld [vmem:[%s680 + $0x28] sm:$0xf]
        %v2140 = vld [vmem:[%s680 + $0x2c] sm:$0xf]
        %v2141 = vld [vmem:[%s680 + $0x30] sm:$0xf]
        %v2142 = vld [vmem:[%s680 + $0x34] sm:$0xf]
        %v2143 = vld [vmem:[%s680 + $0x38] sm:$0xf]
        %v2144 = vld [vmem:[%s680 + $0x3c] sm:$0xf]
        %v2145 = vld [vmem:[%s680 + $0x40] sm:$0xf]
        %v2146 = vld [vmem:[%s680 + $0x44] sm:$0xf]
        %v2147 = vld [vmem:[%s680 + $0x48] sm:$0xf]
        %v2148 = vld [vmem:[%s680 + $0x4c] sm:$0xf]
        %v2149 = vld [vmem:[%s680 + $0x50] sm:$0xf]
        %v2150 = vld [vmem:[%s680 + $0x54] sm:$0xf]
        %v2151 = vld [vmem:[%s680 + $0x58] sm:$0xf]
        %v2152 = vld [vmem:[%s680 + $0x5c] sm:$0xf]
        %v2153 = vld [vmem:[%s680 + $0x60] sm:$0xf]
        %v2154 = vld [vmem:[%s680 + $0x64] sm:$0xf]
        %v2155 = vld [vmem:[%s680 + $0x68] sm:$0xf]
        %v2156 = vld [vmem:[%s680 + $0x6c] sm:$0xf]
        %v2157 = vld [vmem:[%s680 + $0x70] sm:$0xf]
        %v2158 = vld [vmem:[%s680 + $0x74] sm:$0xf]
        %v2159 = vld [vmem:[%s680 + $0x78] sm:$0xf]
        %v2160 = vld [vmem:[%s680 + $0x7c] sm:$0xf]
        %v2161 = vld [vmem:[%s680 + $0x80] sm:$0xf]
        %v2162 = vld [vmem:[%s680 + $0x84] sm:$0xf]
        %v2163 = vld [vmem:[%s680 + $0x88] sm:$0xf]
        %v2164 = vld [vmem:[%s680 + $0x8c] sm:$0xf]
        %v2165 = vld [vmem:[%s680 + $0x90] sm:$0xf]
        %v2166 = vld [vmem:[%s680 + $0x94] sm:$0xf]
        %v2167 = vld [vmem:[%s680 + $0x98] sm:$0xf]
        %v2168 = vld [vmem:[%s680 + $0x9c] sm:$0xf]
        %v2169 = vld [vmem:[%s680 + $0xa0] sm:$0xf]
        %v2170 = vld [vmem:[%s680 + $0xa4] sm:$0xf]
        %v2171 = vld [vmem:[%s680 + $0xa8] sm:$0xf]
        %v2172 = vld [vmem:[%s680 + $0xac] sm:$0xf]
        %v2173 = vld [vmem:[%s680 + $0xb0] sm:$0xf]
        %v2174 = vld [vmem:[%s680 + $0xb4] sm:$0xf]
        %v2175 = vld [vmem:[%s680 + $0xb8] sm:$0xf]
        %v2176 = vld [vmem:[%s680 + $0xbc] sm:$0xf]
        %v2177 = vld [vmem:[%s680 + $0xc0] sm:$0xf]
        %v2178 = vld [vmem:[%s680 + $0xc4] sm:$0xf]
        %v2179 = vld [vmem:[%s680 + $0xc8] sm:$0xf]
        %v2180 = vld [vmem:[%s680 + $0xcc] sm:$0xf]
        %v2181 = vld [vmem:[%s680 + $0xd0] sm:$0xf]
        %v2182 = vld [vmem:[%s680 + $0xd4] sm:$0xf]
        %v2183 = vld [vmem:[%s680 + $0xd8] sm:$0xf]
        %v2184 = vld [vmem:[%s680 + $0xdc] sm:$0xf]
        %v2185 = vld [vmem:[%s680 + $0xe0] sm:$0xf]
        %v2186 = vld [vmem:[%s680 + $0xe4] sm:$0xf]
        %v2187 = vld [vmem:[%s680 + $0xe8] sm:$0xf]
        %v2188 = vld [vmem:[%s680 + $0xec] sm:$0xf]
        %v2189 = vld [vmem:[%s680 + $0xf0] sm:$0xf]
        %v2190 = vld [vmem:[%s680 + $0xf4] sm:$0xf]
        %v2191 = vld [vmem:[%s680 + $0xf8] sm:$0xf]
        %v2192 = vld [vmem:[%s680 + $0xfc] sm:$0xf]
        %v2193 = vld [vmem:[%s680 + $0x100] sm:$0xf]
        %v2194 = vld [vmem:[%s680 + $0x104] sm:$0xf]
        %v2195 = vld [vmem:[%s680 + $0x108] sm:$0xf]
        %v2196 = vld [vmem:[%s680 + $0x10c] sm:$0xf]
        %v2197 = vld [vmem:[%s680 + $0x110] sm:$0xf]
        %v2198 = vld [vmem:[%s680 + $0x114] sm:$0xf]
        %v2199 = vld [vmem:[%s680 + $0x118] sm:$0xf]
        %v2200 = vld [vmem:[%s680 + $0x11c] sm:$0xf]
        %v2201 = vld [vmem:[%s680 + $0x120] sm:$0xf]
        %v2202 = vld [vmem:[%s680 + $0x124] sm:$0xf]
        %v2203 = vld [vmem:[%s680 + $0x128] sm:$0xf]
        %v2204 = vld [vmem:[%s680 + $0x12c] sm:$0xf]
        %v2205 = vld [vmem:[%s680 + $0x130] sm:$0xf]
        %v2206 = vld [vmem:[%s680 + $0x134] sm:$0xf]
        %v2207 = vld [vmem:[%s680 + $0x138] sm:$0xf]
        %v2208 = vld [vmem:[%s680 + $0x13c] sm:$0xf]
        %v2209 = vld [vmem:[%s680 + $0x140] sm:$0xf]
        %v2210 = vld [vmem:[%s680 + $0x144] sm:$0xf]
        %v2211 = vld [vmem:[%s680 + $0x148] sm:$0xf]
        %v2212 = vld [vmem:[%s680 + $0x14c] sm:$0xf]
        %v2213 = vld [vmem:[%s680 + $0x150] sm:$0xf]
        %v2214 = vld [vmem:[%s680 + $0x154] sm:$0xf]
        %v2215 = vld [vmem:[%s680 + $0x158] sm:$0xf]
        %v2216 = vld [vmem:[%s680 + $0x15c] sm:$0xf]
        %v2217 = vld [vmem:[%s680 + $0x160] sm:$0xf]
        %v2218 = vld [vmem:[%s680 + $0x164] sm:$0xf]
        %v2219 = vld [vmem:[%s680 + $0x168] sm:$0xf]
        %v2220 = vld [vmem:[%s680 + $0x16c] sm:$0xf]
        %v2221 = vld [vmem:[%s680 + $0x170] sm:$0xf]
        %v2222 = vld [vmem:[%s680 + $0x174] sm:$0xf]
        %v2223 = vld [vmem:[%s680 + $0x178] sm:$0xf]
        %v2224 = vld [vmem:[%s680 + $0x17c] sm:$0xf]
        %v2225 = vld [vmem:[%s680 + $0x180] sm:$0xf]
        %v2226 = vld [vmem:[%s680 + $0x184] sm:$0xf]
        %v2227 = vld [vmem:[%s680 + $0x188] sm:$0xf]
        %v2228 = vld [vmem:[%s680 + $0x18c] sm:$0xf]
        %v2229 = vld [vmem:[%s680 + $0x190] sm:$0xf]
        %v2230 = vld [vmem:[%s680 + $0x194] sm:$0xf]
        %v2231 = vld [vmem:[%s680 + $0x198] sm:$0xf]
        %v2232 = vld [vmem:[%s680 + $0x19c] sm:$0xf]
        %v2233 = vld [vmem:[%s680 + $0x1a0] sm:$0xf]
        %v2234 = vld [vmem:[%s680 + $0x1a4] sm:$0xf]
        %v2235 = vld [vmem:[%s680 + $0x1a8] sm:$0xf]
        %v2236 = vld [vmem:[%s680 + $0x1ac] sm:$0xf]
        %v2237 = vld [vmem:[%s680 + $0x1b0] sm:$0xf]
        %v2238 = vld [vmem:[%s680 + $0x1b4] sm:$0xf]
        %v2239 = vld [vmem:[%s680 + $0x1b8] sm:$0xf]
        %v2240 = vld [vmem:[%s680 + $0x1bc] sm:$0xf]
        %v2241 = vld [vmem:[%s680 + $0x1c0] sm:$0xf]
        %v2242 = vld [vmem:[%s680 + $0x1c4] sm:$0xf]
        %v2243 = vld [vmem:[%s680 + $0x1c8] sm:$0xf]
        %v2244 = vld [vmem:[%s680 + $0x1cc] sm:$0xf]
        %v2245 = vld [vmem:[%s680 + $0x1d0] sm:$0xf]
        %v2246 = vld [vmem:[%s680 + $0x1d4] sm:$0xf]
        %v2247 = vld [vmem:[%s680 + $0x1d8] sm:$0xf]
        %v2248 = vld [vmem:[%s680 + $0x1dc] sm:$0xf]
        %v2249 = vld [vmem:[%s680 + $0x1e0] sm:$0xf]
        %v2250 = vld [vmem:[%s680 + $0x1e4] sm:$0xf]
        %v2251 = vld [vmem:[%s680 + $0x1e8] sm:$0xf]
        %v2252 = vld [vmem:[%s680 + $0x1ec] sm:$0xf]
        %v2253 = vld [vmem:[%s680 + $0x1f0] sm:$0xf]
        %v2254 = vld [vmem:[%s680 + $0x1f4] sm:$0xf]
        %v2255 = vld [vmem:[%s680 + $0x1f8] sm:$0xf]
        %v2256 = vld [vmem:[%s680 + $0x1fc] sm:$0xf]
        %v2257 = vld [vmem:[%s680 + $0x200] sm:$0xf]
        %v2258 = vld [vmem:[%s680 + $0x204] sm:$0xf]
        %v2259 = vld [vmem:[%s680 + $0x208] sm:$0xf]
        %v2260 = vld [vmem:[%s680 + $0x20c] sm:$0xf]
        %v2261 = vld [vmem:[%s680 + $0x210] sm:$0xf]
        %v2262 = vld [vmem:[%s680 + $0x214] sm:$0xf]
        %v2263 = vld [vmem:[%s680 + $0x218] sm:$0xf]
        %v2264 = vld [vmem:[%s680 + $0x21c] sm:$0xf]
        %v2265 = vld [vmem:[%s680 + $0x220] sm:$0xf]
        %v2266 = vld [vmem:[%s680 + $0x224] sm:$0xf]
        %v2267 = vld [vmem:[%s680 + $0x228] sm:$0xf]
        %v2268 = vld [vmem:[%s680 + $0x22c] sm:$0xf]
        %v2269 = vld [vmem:[%s680 + $0x230] sm:$0xf]
        %v2270 = vld [vmem:[%s680 + $0x234] sm:$0xf]
        %v2271 = vld [vmem:[%s680 + $0x238] sm:$0xf]
        %v2272 = vld [vmem:[%s680 + $0x23c] sm:$0xf]
        %v2273 = vld [vmem:[%s680 + $0x240] sm:$0xf]
        %v2274 = vld [vmem:[%s680 + $0x244] sm:$0xf]
        %v2275 = vld [vmem:[%s680 + $0x248] sm:$0xf]
        %v2276 = vld [vmem:[%s680 + $0x24c] sm:$0xf]
        %v2277 = vld [vmem:[%s680 + $0x250] sm:$0xf]
        %v2278 = vld [vmem:[%s680 + $0x254] sm:$0xf]
        %v2279 = vld [vmem:[%s680 + $0x258] sm:$0xf]
        %v2280 = vld [vmem:[%s680 + $0x25c] sm:$0xf]
        %v2281 = vld [vmem:[%s680 + $0x260] sm:$0xf]
        %v2282 = vld [vmem:[%s680 + $0x264] sm:$0xf]
        %v2283 = vld [vmem:[%s680 + $0x268] sm:$0xf]
        %v2284 = vld [vmem:[%s680 + $0x26c] sm:$0xf]
        %v2285 = vld [vmem:[%s680 + $0x270] sm:$0xf]
        %v2286 = vld [vmem:[%s680 + $0x274] sm:$0xf]
        %v2287 = vld [vmem:[%s680 + $0x278] sm:$0xf]
        %v2288 = vld [vmem:[%s680 + $0x27c] sm:$0xf]
        %v2289 = vld [vmem:[%s680 + $0x280] sm:$0xf]
        %v2290 = vld [vmem:[%s680 + $0x284] sm:$0xf]
        %v2291 = vld [vmem:[%s680 + $0x288] sm:$0xf]
        %v2292 = vld [vmem:[%s680 + $0x28c] sm:$0xf]
        %v2293 = vld [vmem:[%s680 + $0x290] sm:$0xf]
        %v2294 = vld [vmem:[%s680 + $0x294] sm:$0xf]
        %v2295 = vld [vmem:[%s680 + $0x298] sm:$0xf]
        %v2296 = vld [vmem:[%s680 + $0x29c] sm:$0xf]
        %v2297 = vld [vmem:[%s680 + $0x2a0] sm:$0xf]
        %v2298 = vld [vmem:[%s680 + $0x2a4] sm:$0xf]
        %v2299 = vld [vmem:[%s680 + $0x2a8] sm:$0xf]
        %v2300 = vld [vmem:[%s680 + $0x2ac] sm:$0xf]
        %v2301 = vld [vmem:[%s680 + $0x2b0] sm:$0xf]
        %v2302 = vld [vmem:[%s680 + $0x2b4] sm:$0xf]
        %v2303 = vld [vmem:[%s680 + $0x2b8] sm:$0xf]
        %v2304 = vld [vmem:[%s680 + $0x2bc] sm:$0xf]
        %v2305 = vld [vmem:[%s680 + $0x2c0] sm:$0xf]
        %v2306 = vld [vmem:[%s680 + $0x2c4] sm:$0xf]
        %v2307 = vld [vmem:[%s680 + $0x2c8] sm:$0xf]
        %v2308 = vld [vmem:[%s680 + $0x2cc] sm:$0xf]
        %v2309 = vld [vmem:[%s680 + $0x2d0] sm:$0xf]
        %v2310 = vld [vmem:[%s680 + $0x2d4] sm:$0xf]
        %v2311 = vld [vmem:[%s680 + $0x2d8] sm:$0xf]
        %v2312 = vld [vmem:[%s680 + $0x2dc] sm:$0xf]
        %v2313 = vld [vmem:[%s680 + $0x2e0] sm:$0xf]
        %v2314 = vld [vmem:[%s680 + $0x2e4] sm:$0xf]
        %v2315 = vld [vmem:[%s680 + $0x2e8] sm:$0xf]
        %v2316 = vld [vmem:[%s680 + $0x2ec] sm:$0xf]
        %v2317 = vld [vmem:[%s680 + $0x2f0] sm:$0xf]
        %v2318 = vld [vmem:[%s680 + $0x2f4] sm:$0xf]
        %v2319 = vld [vmem:[%s680 + $0x2f8] sm:$0xf]
        %v2320 = vld [vmem:[%s680 + $0x2fc] sm:$0xf]
        %v2321 = vld [vmem:[%s680 + $0x300] sm:$0xf]
        %v2322 = vld [vmem:[%s680 + $0x304] sm:$0xf]
        %v2323 = vld [vmem:[%s680 + $0x308] sm:$0xf]
        %v2324 = vld [vmem:[%s680 + $0x30c] sm:$0xf]
        %v2325 = vld [vmem:[%s680 + $0x310] sm:$0xf]
        %v2326 = vld [vmem:[%s680 + $0x314] sm:$0xf]
        %v2327 = vld [vmem:[%s680 + $0x318] sm:$0xf]
        %v2328 = vld [vmem:[%s680 + $0x31c] sm:$0xf]
        %v2329 = vld [vmem:[%s680 + $0x320] sm:$0xf]
        %v2330 = vld [vmem:[%s680 + $0x324] sm:$0xf]
        %v2331 = vld [vmem:[%s680 + $0x328] sm:$0xf]
        %v2332 = vld [vmem:[%s680 + $0x32c] sm:$0xf]
        %v2333 = vld [vmem:[%s680 + $0x330] sm:$0xf]
        %v2334 = vld [vmem:[%s680 + $0x334] sm:$0xf]
        %v2335 = vld [vmem:[%s680 + $0x338] sm:$0xf]
        %v2336 = vld [vmem:[%s680 + $0x33c] sm:$0xf]
        %v2337 = vld [vmem:[%s680 + $0x340] sm:$0xf]
        %v2338 = vld [vmem:[%s680 + $0x344] sm:$0xf]
        %v2339 = vld [vmem:[%s680 + $0x348] sm:$0xf]
        %v2340 = vld [vmem:[%s680 + $0x34c] sm:$0xf]
        %v2341 = vld [vmem:[%s680 + $0x350] sm:$0xf]
        %v2342 = vld [vmem:[%s680 + $0x354] sm:$0xf]
        %v2343 = vld [vmem:[%s680 + $0x358] sm:$0xf]
        %v2344 = vld [vmem:[%s680 + $0x35c] sm:$0xf]
        %v2345 = vld [vmem:[%s680 + $0x360] sm:$0xf]
        %v2346 = vld [vmem:[%s680 + $0x364] sm:$0xf]
        %v2347 = vld [vmem:[%s680 + $0x368] sm:$0xf]
        %v2348 = vld [vmem:[%s680 + $0x36c] sm:$0xf]
        %v2349 = vld [vmem:[%s680 + $0x370] sm:$0xf]
        %v2350 = vld [vmem:[%s680 + $0x374] sm:$0xf]
        %v2351 = vld [vmem:[%s680 + $0x378] sm:$0xf]
        %v2352 = vld [vmem:[%s680 + $0x37c] sm:$0xf]
        %v2353 = vld [vmem:[%s680 + $0x380] sm:$0xf]
        %v2354 = vld [vmem:[%s680 + $0x384] sm:$0xf]
        %v2355 = vld [vmem:[%s680 + $0x388] sm:$0xf]
        %v2356 = vld [vmem:[%s680 + $0x38c] sm:$0xf]
        %v2357 = vld [vmem:[%s680 + $0x390] sm:$0xf]
        %v2358 = vld [vmem:[%s680 + $0x394] sm:$0xf]
        %v2359 = vld [vmem:[%s680 + $0x398] sm:$0xf]
        %v2360 = vld [vmem:[%s680 + $0x39c] sm:$0xf]
        %v2361 = vld [vmem:[%s680 + $0x3a0] sm:$0xf]
        %v2362 = vld [vmem:[%s680 + $0x3a4] sm:$0xf]
        %v2363 = vld [vmem:[%s680 + $0x3a8] sm:$0xf]
        %v2364 = vld [vmem:[%s680 + $0x3ac] sm:$0xf]
        %v2365 = vld [vmem:[%s680 + $0x3b0] sm:$0xf]
        %v2366 = vld [vmem:[%s680 + $0x3b4] sm:$0xf]
        %v2367 = vld [vmem:[%s680 + $0x3b8] sm:$0xf]
        %v2368 = vld [vmem:[%s680 + $0x3bc] sm:$0xf]
        %v2369 = vld [vmem:[%s680 + $0x3c0] sm:$0xf]
        %v2370 = vld [vmem:[%s680 + $0x3c4] sm:$0xf]
        %v2371 = vld [vmem:[%s680 + $0x3c8] sm:$0xf]
        %v2372 = vld [vmem:[%s680 + $0x3cc] sm:$0xf]
        %v2373 = vld [vmem:[%s680 + $0x3d0] sm:$0xf]
        %v2374 = vld [vmem:[%s680 + $0x3d4] sm:$0xf]
        %v2375 = vld [vmem:[%s680 + $0x3d8] sm:$0xf]
        %v2376 = vld [vmem:[%s680 + $0x3dc] sm:$0xf]
        %v2377 = vld [vmem:[%s680 + $0x3e0] sm:$0xf]
        %v2378 = vld [vmem:[%s680 + $0x3e4] sm:$0xf]
        %v2379 = vld [vmem:[%s680 + $0x3e8] sm:$0xf]
        %v2380 = vld [vmem:[%s680 + $0x3ec] sm:$0xf]
        %v2381 = vld [vmem:[%s680 + $0x3f0] sm:$0xf]
        %v2382 = vld [vmem:[%s680 + $0x3f4] sm:$0xf]
        %v2383 = vld [vmem:[%s680 + $0x3f8] sm:$0xf]
        %v2384 = vld [vmem:[%s680 + $0x3fc] sm:$0xf]
        %v2385 = vld [vmem:[%s683] sm:$0x1]
        %v2387 = vlaneseq
        %v2388 = vshrl.u32 %v2387, 7
        %v2389 = vsub.s32 0, %v2388
        %v2390 = vrot.slane %v2385, %v2389
        %v2648 = vunpack.c.l.b16 %v2129
        %v2649 = vunpack.c.l.b16 %v2130
        %v2650 = vunpack.c.l.b16 %v2131
        %v2651 = vunpack.c.l.b16 %v2132
        %v2652 = vunpack.c.l.b16 %v2133
        %v2653 = vunpack.c.l.b16 %v2134
        %v2654 = vunpack.c.l.b16 %v2135
        %v2655 = vunpack.c.l.b16 %v2136
        %v2656 = vunpack.c.l.b16 %v2137
        %v2657 = vunpack.c.l.b16 %v2138
        %v2658 = vunpack.c.l.b16 %v2139
        %v2659 = vunpack.c.l.b16 %v2140
        %v2660 = vunpack.c.l.b16 %v2141
        %v2661 = vunpack.c.l.b16 %v2142
        %v2662 = vunpack.c.l.b16 %v2143
        %v2663 = vunpack.c.l.b16 %v2144
        %v2664 = vunpack.c.l.b16 %v2145
        %v2665 = vunpack.c.l.b16 %v2146
        %v2666 = vunpack.c.l.b16 %v2147
        %v2667 = vunpack.c.l.b16 %v2148
        %v2668 = vunpack.c.l.b16 %v2149
        %v2669 = vunpack.c.l.b16 %v2150
        %v2670 = vunpack.c.l.b16 %v2151
        %v2671 = vunpack.c.l.b16 %v2152
        %v2672 = vunpack.c.l.b16 %v2153
        %v2673 = vunpack.c.l.b16 %v2154
        %v2674 = vunpack.c.l.b16 %v2155
        %v2675 = vunpack.c.l.b16 %v2156
        %v2676 = vunpack.c.l.b16 %v2157
        %v2677 = vunpack.c.l.b16 %v2158
        %v2678 = vunpack.c.l.b16 %v2159
        %v2679 = vunpack.c.l.b16 %v2160
        %v2680 = vunpack.c.l.b16 %v2161
        %v2681 = vunpack.c.l.b16 %v2162
        %v2682 = vunpack.c.l.b16 %v2163
        %v2683 = vunpack.c.l.b16 %v2164
        %v2684 = vunpack.c.l.b16 %v2165
        %v2685 = vunpack.c.l.b16 %v2166
        %v2686 = vunpack.c.l.b16 %v2167
        %v2687 = vunpack.c.l.b16 %v2168
        %v2688 = vunpack.c.l.b16 %v2169
        %v2689 = vunpack.c.l.b16 %v2170
        %v2690 = vunpack.c.l.b16 %v2171
        %v2691 = vunpack.c.l.b16 %v2172
        %v2692 = vunpack.c.l.b16 %v2173
        %v2693 = vunpack.c.l.b16 %v2174
        %v2694 = vunpack.c.l.b16 %v2175
        %v2695 = vunpack.c.l.b16 %v2176
        %v2696 = vunpack.c.l.b16 %v2177
        %v2697 = vunpack.c.l.b16 %v2178
        %v2698 = vunpack.c.l.b16 %v2179
        %v2699 = vunpack.c.l.b16 %v2180
        %v2700 = vunpack.c.l.b16 %v2181
        %v2701 = vunpack.c.l.b16 %v2182
        %v2702 = vunpack.c.l.b16 %v2183
        %v2703 = vunpack.c.l.b16 %v2184
        %v2704 = vunpack.c.l.b16 %v2185
        %v2705 = vunpack.c.l.b16 %v2186
        %v2706 = vunpack.c.l.b16 %v2187
        %v2707 = vunpack.c.l.b16 %v2188
        %v2708 = vunpack.c.l.b16 %v2189
        %v2709 = vunpack.c.l.b16 %v2190
        %v2710 = vunpack.c.l.b16 %v2191
        %v2711 = vunpack.c.l.b16 %v2192
        %v2712 = vunpack.c.l.b16 %v2193
        %v2713 = vunpack.c.l.b16 %v2194
        %v2714 = vunpack.c.l.b16 %v2195
        %v2715 = vunpack.c.l.b16 %v2196
        %v2716 = vunpack.c.l.b16 %v2197
        %v2717 = vunpack.c.l.b16 %v2198
        %v2718 = vunpack.c.l.b16 %v2199
        %v2719 = vunpack.c.l.b16 %v2200
        %v2720 = vunpack.c.l.b16 %v2201
        %v2721 = vunpack.c.l.b16 %v2202
        %v2722 = vunpack.c.l.b16 %v2203
        %v2723 = vunpack.c.l.b16 %v2204
        %v2724 = vunpack.c.l.b16 %v2205
        %v2725 = vunpack.c.l.b16 %v2206
        %v2726 = vunpack.c.l.b16 %v2207
        %v2727 = vunpack.c.l.b16 %v2208
        %v2728 = vunpack.c.l.b16 %v2209
        %v2729 = vunpack.c.l.b16 %v2210
        %v2730 = vunpack.c.l.b16 %v2211
        %v2731 = vunpack.c.l.b16 %v2212
        %v2732 = vunpack.c.l.b16 %v2213
        %v2733 = vunpack.c.l.b16 %v2214
        %v2734 = vunpack.c.l.b16 %v2215
        %v2735 = vunpack.c.l.b16 %v2216
        %v2736 = vunpack.c.l.b16 %v2217
        %v2737 = vunpack.c.l.b16 %v2218
        %v2738 = vunpack.c.l.b16 %v2219
        %v2739 = vunpack.c.l.b16 %v2220
        %v2740 = vunpack.c.l.b16 %v2221
        %v2741 = vunpack.c.l.b16 %v2222
        %v2742 = vunpack.c.l.b16 %v2223
        %v2743 = vunpack.c.l.b16 %v2224
        %v2744 = vunpack.c.l.b16 %v2225
        %v2745 = vunpack.c.l.b16 %v2226
        %v2746 = vunpack.c.l.b16 %v2227
        %v2747 = vunpack.c.l.b16 %v2228
        %v2748 = vunpack.c.l.b16 %v2229
        %v2749 = vunpack.c.l.b16 %v2230
        %v2750 = vunpack.c.l.b16 %v2231
        %v2751 = vunpack.c.l.b16 %v2232
        %v2752 = vunpack.c.l.b16 %v2233
        %v2753 = vunpack.c.l.b16 %v2234
        %v2754 = vunpack.c.l.b16 %v2235
        %v2755 = vunpack.c.l.b16 %v2236
        %v2756 = vunpack.c.l.b16 %v2237
        %v2757 = vunpack.c.l.b16 %v2238
        %v2758 = vunpack.c.l.b16 %v2239
        %v2759 = vunpack.c.l.b16 %v2240
        %v2760 = vunpack.c.l.b16 %v2241
        %v2761 = vunpack.c.l.b16 %v2242
        %v2762 = vunpack.c.l.b16 %v2243
        %v2763 = vunpack.c.l.b16 %v2244
        %v2764 = vunpack.c.l.b16 %v2245
        %v2765 = vunpack.c.l.b16 %v2246
        %v2766 = vunpack.c.l.b16 %v2247
        %v2767 = vunpack.c.l.b16 %v2248
        %v2768 = vunpack.c.l.b16 %v2249
        %v2769 = vunpack.c.l.b16 %v2250
        %v2770 = vunpack.c.l.b16 %v2251
        %v2771 = vunpack.c.l.b16 %v2252
        %v2772 = vunpack.c.l.b16 %v2253
        %v2773 = vunpack.c.l.b16 %v2254
        %v2774 = vunpack.c.l.b16 %v2255
        %v2775 = vunpack.c.l.b16 %v2256
        %v2776 = vunpack.c.l.b16 %v2257
        %v2777 = vunpack.c.l.b16 %v2258
        %v2778 = vunpack.c.l.b16 %v2259
        %v2779 = vunpack.c.l.b16 %v2260
        %v2780 = vunpack.c.l.b16 %v2261
        %v2781 = vunpack.c.l.b16 %v2262
        %v2782 = vunpack.c.l.b16 %v2263
        %v2783 = vunpack.c.l.b16 %v2264
        %v2784 = vunpack.c.l.b16 %v2265
        %v2785 = vunpack.c.l.b16 %v2266
        %v2786 = vunpack.c.l.b16 %v2267
        %v2787 = vunpack.c.l.b16 %v2268
        %v2788 = vunpack.c.l.b16 %v2269
        %v2789 = vunpack.c.l.b16 %v2270
        %v2790 = vunpack.c.l.b16 %v2271
        %v2791 = vunpack.c.l.b16 %v2272
        %v2792 = vunpack.c.l.b16 %v2273
        %v2793 = vunpack.c.l.b16 %v2274
        %v2794 = vunpack.c.l.b16 %v2275
        %v2795 = vunpack.c.l.b16 %v2276
        %v2796 = vunpack.c.l.b16 %v2277
        %v2797 = vunpack.c.l.b16 %v2278
        %v2798 = vunpack.c.l.b16 %v2279
        %v2799 = vunpack.c.l.b16 %v2280
        %v2800 = vunpack.c.l.b16 %v2281
        %v2801 = vunpack.c.l.b16 %v2282
        %v2802 = vunpack.c.l.b16 %v2283
        %v2803 = vunpack.c.l.b16 %v2284
        %v2804 = vunpack.c.l.b16 %v2285
        %v2805 = vunpack.c.l.b16 %v2286
        %v2806 = vunpack.c.l.b16 %v2287
        %v2807 = vunpack.c.l.b16 %v2288
        %v2808 = vunpack.c.l.b16 %v2289
        %v2809 = vunpack.c.l.b16 %v2290
        %v2810 = vunpack.c.l.b16 %v2291
        %v2811 = vunpack.c.l.b16 %v2292
        %v2812 = vunpack.c.l.b16 %v2293
        %v2813 = vunpack.c.l.b16 %v2294
        %v2814 = vunpack.c.l.b16 %v2295
        %v2815 = vunpack.c.l.b16 %v2296
        %v2816 = vunpack.c.l.b16 %v2297
        %v2817 = vunpack.c.l.b16 %v2298
        %v2818 = vunpack.c.l.b16 %v2299
        %v2819 = vunpack.c.l.b16 %v2300
        %v2820 = vunpack.c.l.b16 %v2301
        %v2821 = vunpack.c.l.b16 %v2302
        %v2822 = vunpack.c.l.b16 %v2303
        %v2823 = vunpack.c.l.b16 %v2304
        %v2824 = vunpack.c.l.b16 %v2305
        %v2825 = vunpack.c.l.b16 %v2306
        %v2826 = vunpack.c.l.b16 %v2307
        %v2827 = vunpack.c.l.b16 %v2308
        %v2828 = vunpack.c.l.b16 %v2309
        %v2829 = vunpack.c.l.b16 %v2310
        %v2830 = vunpack.c.l.b16 %v2311
        %v2831 = vunpack.c.l.b16 %v2312
        %v2832 = vunpack.c.l.b16 %v2313
        %v2833 = vunpack.c.l.b16 %v2314
        %v2834 = vunpack.c.l.b16 %v2315
        %v2835 = vunpack.c.l.b16 %v2316
        %v2836 = vunpack.c.l.b16 %v2317
        %v2837 = vunpack.c.l.b16 %v2318
        %v2838 = vunpack.c.l.b16 %v2319
        %v2839 = vunpack.c.l.b16 %v2320
        %v2840 = vunpack.c.l.b16 %v2321
        %v2841 = vunpack.c.l.b16 %v2322
        %v2842 = vunpack.c.l.b16 %v2323
        %v2843 = vunpack.c.l.b16 %v2324
        %v2844 = vunpack.c.l.b16 %v2325
        %v2845 = vunpack.c.l.b16 %v2326
        %v2846 = vunpack.c.l.b16 %v2327
        %v2847 = vunpack.c.l.b16 %v2328
        %v2848 = vunpack.c.l.b16 %v2329
        %v2849 = vunpack.c.l.b16 %v2330
        %v2850 = vunpack.c.l.b16 %v2331
        %v2851 = vunpack.c.l.b16 %v2332
        %v2852 = vunpack.c.l.b16 %v2333
        %v2853 = vunpack.c.l.b16 %v2334
        %v2854 = vunpack.c.l.b16 %v2335
        %v2855 = vunpack.c.l.b16 %v2336
        %v2856 = vunpack.c.l.b16 %v2337
        %v2857 = vunpack.c.l.b16 %v2338
        %v2858 = vunpack.c.l.b16 %v2339
        %v2859 = vunpack.c.l.b16 %v2340
        %v2860 = vunpack.c.l.b16 %v2341
        %v2861 = vunpack.c.l.b16 %v2342
        %v2862 = vunpack.c.l.b16 %v2343
        %v2863 = vunpack.c.l.b16 %v2344
        %v2864 = vunpack.c.l.b16 %v2345
        %v2865 = vunpack.c.l.b16 %v2346
        %v2866 = vunpack.c.l.b16 %v2347
        %v2867 = vunpack.c.l.b16 %v2348
        %v2868 = vunpack.c.l.b16 %v2349
        %v2869 = vunpack.c.l.b16 %v2350
        %v2870 = vunpack.c.l.b16 %v2351
        %v2871 = vunpack.c.l.b16 %v2352
        %v2872 = vunpack.c.l.b16 %v2353
        %v2873 = vunpack.c.l.b16 %v2354
        %v2874 = vunpack.c.l.b16 %v2355
        %v2875 = vunpack.c.l.b16 %v2356
        %v2876 = vunpack.c.l.b16 %v2357
        %v2877 = vunpack.c.l.b16 %v2358
        %v2878 = vunpack.c.l.b16 %v2359
        %v2879 = vunpack.c.l.b16 %v2360
        %v2880 = vunpack.c.l.b16 %v2361
        %v2881 = vunpack.c.l.b16 %v2362
        %v2882 = vunpack.c.l.b16 %v2363
        %v2883 = vunpack.c.l.b16 %v2364
        %v2884 = vunpack.c.l.b16 %v2365
        %v2885 = vunpack.c.l.b16 %v2366
        %v2886 = vunpack.c.l.b16 %v2367
        %v2887 = vunpack.c.l.b16 %v2368
        %v2888 = vunpack.c.l.b16 %v2369
        %v2889 = vunpack.c.l.b16 %v2370
        %v2890 = vunpack.c.l.b16 %v2371
        %v2891 = vunpack.c.l.b16 %v2372
        %v2892 = vunpack.c.l.b16 %v2373
        %v2893 = vunpack.c.l.b16 %v2374
        %v2894 = vunpack.c.l.b16 %v2375
        %v2895 = vunpack.c.l.b16 %v2376
        %v2896 = vunpack.c.l.b16 %v2377
        %v2897 = vunpack.c.l.b16 %v2378
        %v2898 = vunpack.c.l.b16 %v2379
        %v2899 = vunpack.c.l.b16 %v2380
        %v2900 = vunpack.c.l.b16 %v2381
        %v2901 = vunpack.c.l.b16 %v2382
        %v2902 = vunpack.c.l.b16 %v2383
        %v2903 = vunpack.c.l.b16 %v2384
        %v2904 = vpack.c.b16 %v2649, %v2648
        %v2905 = vpack.c.b16 %v2651, %v2650
        %v2906 = vpack.c.b16 %v2653, %v2652
        %v2907 = vpack.c.b16 %v2655, %v2654
        %v2908 = vpack.c.b16 %v2657, %v2656
        %v2909 = vpack.c.b16 %v2659, %v2658
        %v2910 = vpack.c.b16 %v2661, %v2660
        %v2911 = vpack.c.b16 %v2663, %v2662
        %v2912 = vpack.c.b16 %v2665, %v2664
        %v2913 = vpack.c.b16 %v2667, %v2666
        %v2914 = vpack.c.b16 %v2669, %v2668
        %v2915 = vpack.c.b16 %v2671, %v2670
        %v2916 = vpack.c.b16 %v2673, %v2672
        %v2917 = vpack.c.b16 %v2675, %v2674
        %v2918 = vpack.c.b16 %v2677, %v2676
        %v2919 = vpack.c.b16 %v2679, %v2678
        %v2920 = vpack.c.b16 %v2681, %v2680
        %v2921 = vpack.c.b16 %v2683, %v2682
        %v2922 = vpack.c.b16 %v2685, %v2684
        %v2923 = vpack.c.b16 %v2687, %v2686
        %v2924 = vpack.c.b16 %v2689, %v2688
        %v2925 = vpack.c.b16 %v2691, %v2690
        %v2926 = vpack.c.b16 %v2693, %v2692
        %v2927 = vpack.c.b16 %v2695, %v2694
        %v2928 = vpack.c.b16 %v2697, %v2696
        %v2929 = vpack.c.b16 %v2699, %v2698
        %v2930 = vpack.c.b16 %v2701, %v2700
        %v2931 = vpack.c.b16 %v2703, %v2702
        %v2932 = vpack.c.b16 %v2705, %v2704
        %v2933 = vpack.c.b16 %v2707, %v2706
        %v2934 = vpack.c.b16 %v2709, %v2708
        %v2935 = vpack.c.b16 %v2711, %v2710
        %v2936 = vpack.c.b16 %v2713, %v2712
        %v2937 = vpack.c.b16 %v2715, %v2714
        %v2938 = vpack.c.b16 %v2717, %v2716
        %v2939 = vpack.c.b16 %v2719, %v2718
        %v2940 = vpack.c.b16 %v2721, %v2720
        %v2941 = vpack.c.b16 %v2723, %v2722
        %v2942 = vpack.c.b16 %v2725, %v2724
        %v2943 = vpack.c.b16 %v2727, %v2726
        %v2944 = vpack.c.b16 %v2729, %v2728
        %v2945 = vpack.c.b16 %v2731, %v2730
        %v2946 = vpack.c.b16 %v2733, %v2732
        %v2947 = vpack.c.b16 %v2735, %v2734
        %v2948 = vpack.c.b16 %v2737, %v2736
        %v2949 = vpack.c.b16 %v2739, %v2738
        %v2950 = vpack.c.b16 %v2741, %v2740
        %v2951 = vpack.c.b16 %v2743, %v2742
        %v2952 = vpack.c.b16 %v2745, %v2744
        %v2953 = vpack.c.b16 %v2747, %v2746
        %v2954 = vpack.c.b16 %v2749, %v2748
        %v2955 = vpack.c.b16 %v2751, %v2750
        %v2956 = vpack.c.b16 %v2753, %v2752
        %v2957 = vpack.c.b16 %v2755, %v2754
        %v2958 = vpack.c.b16 %v2757, %v2756
        %v2959 = vpack.c.b16 %v2759, %v2758
        %v2960 = vpack.c.b16 %v2761, %v2760
        %v2961 = vpack.c.b16 %v2763, %v2762
        %v2962 = vpack.c.b16 %v2765, %v2764
        %v2963 = vpack.c.b16 %v2767, %v2766
        %v2964 = vpack.c.b16 %v2769, %v2768
        %v2965 = vpack.c.b16 %v2771, %v2770
        %v2966 = vpack.c.b16 %v2773, %v2772
        %v2967 = vpack.c.b16 %v2775, %v2774
        %v2968 = vpack.c.b16 %v2777, %v2776
        %v2969 = vpack.c.b16 %v2779, %v2778
        %v2970 = vpack.c.b16 %v2781, %v2780
        %v2971 = vpack.c.b16 %v2783, %v2782
        %v2972 = vpack.c.b16 %v2785, %v2784
        %v2973 = vpack.c.b16 %v2787, %v2786
        %v2974 = vpack.c.b16 %v2789, %v2788
        %v2975 = vpack.c.b16 %v2791, %v2790
        %v2976 = vpack.c.b16 %v2793, %v2792
        %v2977 = vpack.c.b16 %v2795, %v2794
        %v2978 = vpack.c.b16 %v2797, %v2796
        %v2979 = vpack.c.b16 %v2799, %v2798
        %v2980 = vpack.c.b16 %v2801, %v2800
        %v2981 = vpack.c.b16 %v2803, %v2802
        %v2982 = vpack.c.b16 %v2805, %v2804
        %v2983 = vpack.c.b16 %v2807, %v2806
        %v2984 = vpack.c.b16 %v2809, %v2808
        %v2985 = vpack.c.b16 %v2811, %v2810
        %v2986 = vpack.c.b16 %v2813, %v2812
        %v2987 = vpack.c.b16 %v2815, %v2814
        %v2988 = vpack.c.b16 %v2817, %v2816
        %v2989 = vpack.c.b16 %v2819, %v2818
        %v2990 = vpack.c.b16 %v2821, %v2820
        %v2991 = vpack.c.b16 %v2823, %v2822
        %v2992 = vpack.c.b16 %v2825, %v2824
        %v2993 = vpack.c.b16 %v2827, %v2826
        %v2994 = vpack.c.b16 %v2829, %v2828
        %v2995 = vpack.c.b16 %v2831, %v2830
        %v2996 = vpack.c.b16 %v2833, %v2832
        %v2997 = vpack.c.b16 %v2835, %v2834
        %v2998 = vpack.c.b16 %v2837, %v2836
        %v2999 = vpack.c.b16 %v2839, %v2838
        %v3000 = vpack.c.b16 %v2841, %v2840
        %v3001 = vpack.c.b16 %v2843, %v2842
        %v3002 = vpack.c.b16 %v2845, %v2844
        %v3003 = vpack.c.b16 %v2847, %v2846
        %v3004 = vpack.c.b16 %v2849, %v2848
        %v3005 = vpack.c.b16 %v2851, %v2850
        %v3006 = vpack.c.b16 %v2853, %v2852
        %v3007 = vpack.c.b16 %v2855, %v2854
        %v3008 = vpack.c.b16 %v2857, %v2856
        %v3009 = vpack.c.b16 %v2859, %v2858
        %v3010 = vpack.c.b16 %v2861, %v2860
        %v3011 = vpack.c.b16 %v2863, %v2862
        %v3012 = vpack.c.b16 %v2865, %v2864
        %v3013 = vpack.c.b16 %v2867, %v2866
        %v3014 = vpack.c.b16 %v2869, %v2868
        %v3015 = vpack.c.b16 %v2871, %v2870
        %v3016 = vpack.c.b16 %v2873, %v2872
        %v3017 = vpack.c.b16 %v2875, %v2874
        %v3018 = vpack.c.b16 %v2877, %v2876
        %v3019 = vpack.c.b16 %v2879, %v2878
        %v3020 = vpack.c.b16 %v2881, %v2880
        %v3021 = vpack.c.b16 %v2883, %v2882
        %v3022 = vpack.c.b16 %v2885, %v2884
        %v3023 = vpack.c.b16 %v2887, %v2886
        %v3024 = vpack.c.b16 %v2889, %v2888
        %v3025 = vpack.c.b16 %v2891, %v2890
        %v3026 = vpack.c.b16 %v2893, %v2892
        %v3027 = vpack.c.b16 %v2895, %v2894
        %v3028 = vpack.c.b16 %v2897, %v2896
        %v3029 = vpack.c.b16 %v2899, %v2898
        %v3030 = vpack.c.b16 %v2901, %v2900
        %v3031 = vpack.c.b16 %v2903, %v2902
        %3160 = vmatprep.subr.bf16.mxu0 0
        %3161 = vmatpush1.bf16.msra.mxu0 %v2904
        %3162 = vmatprep.subr.bf16.mxu0 0
        %3163 = vmatpush1.bf16.msra.mxu0 %v2905
        %3164 = vmatprep.subr.bf16.mxu0 0
        %3165 = vmatpush1.bf16.msra.mxu0 %v2906
        %3166 = vmatprep.subr.bf16.mxu0 0
        %3167 = vmatpush1.bf16.msra.mxu0 %v2907
        %3168 = vmatprep.subr.bf16.mxu0 0
        %3169 = vmatpush1.bf16.msra.mxu0 %v2908
        %3170 = vmatprep.subr.bf16.mxu0 0
        %3171 = vmatpush1.bf16.msra.mxu0 %v2909
        %3172 = vmatprep.subr.bf16.mxu0 0
        %3173 = vmatpush1.bf16.msra.mxu0 %v2910
        %3174 = vmatprep.subr.bf16.mxu0 0
        %3175 = vmatpush1.bf16.msra.mxu0 %v2911
        %3176 = vmatprep.subr.bf16.mxu0 0
        %3177 = vmatpush1.bf16.msra.mxu0 %v2912
        %3178 = vmatprep.subr.bf16.mxu0 0
        %3179 = vmatpush1.bf16.msra.mxu0 %v2913
        %3180 = vmatprep.subr.bf16.mxu0 0
        %3181 = vmatpush1.bf16.msra.mxu0 %v2914
        %3182 = vmatprep.subr.bf16.mxu0 0
        %3183 = vmatpush1.bf16.msra.mxu0 %v2915
        %3184 = vmatprep.subr.bf16.mxu0 0
        %3185 = vmatpush1.bf16.msra.mxu0 %v2916
        %3186 = vmatprep.subr.bf16.mxu0 0
        %3187 = vmatpush1.bf16.msra.mxu0 %v2917
        %3188 = vmatprep.subr.bf16.mxu0 0
        %3189 = vmatpush1.bf16.msra.mxu0 %v2918
        %3190 = vmatprep.subr.bf16.mxu0 0
        %3191 = vmatpush1.bf16.msra.mxu0 %v2919
        %3192 = vmatprep.mubr.bf16.mxu0 %v2114
        %3193 = vmatmul.mubr.bf16.gmra.mrb[0].mxu0 %v2113
        %v3194 = vpop.f32.mrb[0].mxu0
        %v3195 = vadd.f32 %v2390, %v3194
        %v3196 = vpop.f32.mrb[0].mxu0
        %v3197 = vpop.f32.mrb[0].mxu0
        %v3198 = vpop.f32.mrb[0].mxu0
        %3199 = vdwg.mxu0
        %3200 = vmatprep.subr.bf16.mxu0 0
        %3201 = vmatpush1.bf16.msra.mxu0 %v2920
        %3202 = vmatprep.subr.bf16.mxu0 0
        %3203 = vmatpush1.bf16.msra.mxu0 %v2921
        %3204 = vmatprep.subr.bf16.mxu0 0
        %3205 = vmatpush1.bf16.msra.mxu0 %v2922
        %3206 = vmatprep.subr.bf16.mxu0 0
        %3207 = vmatpush1.bf16.msra.mxu0 %v2923
        %3208 = vmatprep.subr.bf16.mxu0 0
        %3209 = vmatpush1.bf16.msra.mxu0 %v2924
        %3210 = vmatprep.subr.bf16.mxu0 0
        %3211 = vmatpush1.bf16.msra.mxu0 %v2925
        %3212 = vmatprep.subr.bf16.mxu0 0
        %3213 = vmatpush1.bf16.msra.mxu0 %v2926
        %3214 = vmatprep.subr.bf16.mxu0 0
        %3215 = vmatpush1.bf16.msra.mxu0 %v2927
        %3216 = vmatprep.subr.bf16.mxu0 0
        %3217 = vmatpush1.bf16.msra.mxu0 %v2928
        %3218 = vmatprep.subr.bf16.mxu0 0
        %3219 = vmatpush1.bf16.msra.mxu0 %v2929
        %3220 = vmatprep.subr.bf16.mxu0 0
        %3221 = vmatpush1.bf16.msra.mxu0 %v2930
        %3222 = vmatprep.subr.bf16.mxu0 0
        %3223 = vmatpush1.bf16.msra.mxu0 %v2931
        %3224 = vmatprep.subr.bf16.mxu0 0
        %3225 = vmatpush1.bf16.msra.mxu0 %v2932
        %3226 = vmatprep.subr.bf16.mxu0 0
        %3227 = vmatpush1.bf16.msra.mxu0 %v2933
        %3228 = vmatprep.subr.bf16.mxu0 0
        %3229 = vmatpush1.bf16.msra.mxu0 %v2934
        %3230 = vmatprep.subr.bf16.mxu0 0
        %3231 = vmatpush1.bf16.msra.mxu0 %v2935
        %3232 = vmatprep.mubr.bf16.mxu0 %v2116
        %3233 = vmatmul.mubr.bf16.gmra.mrb[0].mxu0 %v2115
        %v3234 = vpop.f32.mrb[0].mxu0
        %v3235 = vadd.f32 %v3195, %v3234
        %v3236 = vpop.f32.mrb[0].mxu0
        %v3237 = vpop.f32.mrb[0].mxu0
        %v3238 = vpop.f32.mrb[0].mxu0
        %3239 = vdwg.mxu0
        %3240 = vmatprep.subr.bf16.mxu0 0
        %3241 = vmatpush1.bf16.msra.mxu0 %v2936
        %3242 = vmatprep.subr.bf16.mxu0 0
        %3243 = vmatpush1.bf16.msra.mxu0 %v2937
        %3244 = vmatprep.subr.bf16.mxu0 0
        %3245 = vmatpush1.bf16.msra.mxu0 %v2938
        %3246 = vmatprep.subr.bf16.mxu0 0
        %3247 = vmatpush1.bf16.msra.mxu0 %v2939
        %3248 = vmatprep.subr.bf16.mxu0 0
        %3249 = vmatpush1.bf16.msra.mxu0 %v2940
        %3250 = vmatprep.subr.bf16.mxu0 0
        %3251 = vmatpush1.bf16.msra.mxu0 %v2941
        %3252 = vmatprep.subr.bf16.mxu0 0
        %3253 = vmatpush1.bf16.msra.mxu0 %v2942
        %3254 = vmatprep.subr.bf16.mxu0 0
        %3255 = vmatpush1.bf16.msra.mxu0 %v2943
        %3256 = vmatprep.subr.bf16.mxu0 0
        %3257 = vmatpush1.bf16.msra.mxu0 %v2944
        %3258 = vmatprep.subr.bf16.mxu0 0
        %3259 = vmatpush1.bf16.msra.mxu0 %v2945
        %3260 = vmatprep.subr.bf16.mxu0 0
        %3261 = vmatpush1.bf16.msra.mxu0 %v2946
        %3262 = vmatprep.subr.bf16.mxu0 0
        %3263 = vmatpush1.bf16.msra.mxu0 %v2947
        %3264 = vmatprep.subr.bf16.mxu0 0
        %3265 = vmatpush1.bf16.msra.mxu0 %v2948
        %3266 = vmatprep.subr.bf16.mxu0 0
        %3267 = vmatpush1.bf16.msra.mxu0 %v2949
        %3268 = vmatprep.subr.bf16.mxu0 0
        %3269 = vmatpush1.bf16.msra.mxu0 %v2950
        %3270 = vmatprep.subr.bf16.mxu0 0
        %3271 = vmatpush1.bf16.msra.mxu0 %v2951
        %3272 = vmatprep.mubr.bf16.mxu0 %v2118
        %3273 = vmatmul.mubr.bf16.gmra.mrb[0].mxu0 %v2117
        %v3274 = vpop.f32.mrb[0].mxu0
        %v3275 = vadd.f32 %v3235, %v3274
        %v3276 = vpop.f32.mrb[0].mxu0
        %v3277 = vpop.f32.mrb[0].mxu0
        %v3278 = vpop.f32.mrb[0].mxu0
        %3279 = vdwg.mxu0
        %3280 = vmatprep.subr.bf16.mxu0 0
        %3281 = vmatpush1.bf16.msra.mxu0 %v2952
        %3282 = vmatprep.subr.bf16.mxu0 0
        %3283 = vmatpush1.bf16.msra.mxu0 %v2953
        %3284 = vmatprep.subr.bf16.mxu0 0
        %3285 = vmatpush1.bf16.msra.mxu0 %v2954
        %3286 = vmatprep.subr.bf16.mxu0 0
        %3287 = vmatpush1.bf16.msra.mxu0 %v2955
        %3288 = vmatprep.subr.bf16.mxu0 0
        %3289 = vmatpush1.bf16.msra.mxu0 %v2956
        %3290 = vmatprep.subr.bf16.mxu0 0
        %3291 = vmatpush1.bf16.msra.mxu0 %v2957
        %3292 = vmatprep.subr.bf16.mxu0 0
        %3293 = vmatpush1.bf16.msra.mxu0 %v2958
        %3294 = vmatprep.subr.bf16.mxu0 0
        %3295 = vmatpush1.bf16.msra.mxu0 %v2959
        %3296 = vmatprep.subr.bf16.mxu0 0
        %3297 = vmatpush1.bf16.msra.mxu0 %v2960
        %3298 = vmatprep.subr.bf16.mxu0 0
        %3299 = vmatpush1.bf16.msra.mxu0 %v2961
        %3300 = vmatprep.subr.bf16.mxu0 0
        %3301 = vmatpush1.bf16.msra.mxu0 %v2962
        %3302 = vmatprep.subr.bf16.mxu0 0
        %3303 = vmatpush1.bf16.msra.mxu0 %v2963
        %3304 = vmatprep.subr.bf16.mxu0 0
        %3305 = vmatpush1.bf16.msra.mxu0 %v2964
        %3306 = vmatprep.subr.bf16.mxu0 0
        %3307 = vmatpush1.bf16.msra.mxu0 %v2965
        %3308 = vmatprep.subr.bf16.mxu0 0
        %3309 = vmatpush1.bf16.msra.mxu0 %v2966
        %3310 = vmatprep.subr.bf16.mxu0 0
        %3311 = vmatpush1.bf16.msra.mxu0 %v2967
        %3312 = vmatprep.mubr.bf16.mxu0 %v2120
        %3313 = vmatmul.mubr.bf16.gmra.mrb[0].mxu0 %v2119
        %v3314 = vpop.f32.mrb[0].mxu0
        %v3315 = vadd.f32 %v3275, %v3314
        %v3316 = vpop.f32.mrb[0].mxu0
        %v3317 = vpop.f32.mrb[0].mxu0
        %v3318 = vpop.f32.mrb[0].mxu0
        %3319 = vdwg.mxu0
        %3320 = vmatprep.subr.bf16.mxu0 0
        %3321 = vmatpush1.bf16.msra.mxu0 %v2968
        %3322 = vmatprep.subr.bf16.mxu0 0
        %3323 = vmatpush1.bf16.msra.mxu0 %v2969
        %3324 = vmatprep.subr.bf16.mxu0 0
        %3325 = vmatpush1.bf16.msra.mxu0 %v2970
        %3326 = vmatprep.subr.bf16.mxu0 0
        %3327 = vmatpush1.bf16.msra.mxu0 %v2971
        %3328 = vmatprep.subr.bf16.mxu0 0
        %3329 = vmatpush1.bf16.msra.mxu0 %v2972
        %3330 = vmatprep.subr.bf16.mxu0 0
        %3331 = vmatpush1.bf16.msra.mxu0 %v2973
        %3332 = vmatprep.subr.bf16.mxu0 0
        %3333 = vmatpush1.bf16.msra.mxu0 %v2974
        %3334 = vmatprep.subr.bf16.mxu0 0
        %3335 = vmatpush1.bf16.msra.mxu0 %v2975
        %3336 = vmatprep.subr.bf16.mxu0 0
        %3337 = vmatpush1.bf16.msra.mxu0 %v2976
        %3338 = vmatprep.subr.bf16.mxu0 0
        %3339 = vmatpush1.bf16.msra.mxu0 %v2977
        %3340 = vmatprep.subr.bf16.mxu0 0
        %3341 = vmatpush1.bf16.msra.mxu0 %v2978
        %3342 = vmatprep.subr.bf16.mxu0 0
        %3343 = vmatpush1.bf16.msra.mxu0 %v2979
        %3344 = vmatprep.subr.bf16.mxu0 0
        %3345 = vmatpush1.bf16.msra.mxu0 %v2980
        %3346 = vmatprep.subr.bf16.mxu0 0
        %3347 = vmatpush1.bf16.msra.mxu0 %v2981
        %3348 = vmatprep.subr.bf16.mxu0 0
        %3349 = vmatpush1.bf16.msra.mxu0 %v2982
        %3350 = vmatprep.subr.bf16.mxu0 0
        %3351 = vmatpush1.bf16.msra.mxu0 %v2983
        %3352 = vmatprep.mubr.bf16.mxu0 %v2122
        %3353 = vmatmul.mubr.bf16.gmra.mrb[0].mxu0 %v2121
        %v3354 = vpop.f32.mrb[0].mxu0
        %v3355 = vadd.f32 %v3315, %v3354
        %v3356 = vpop.f32.mrb[0].mxu0
        %v3357 = vpop.f32.mrb[0].mxu0
        %v3358 = vpop.f32.mrb[0].mxu0
        %3359 = vdwg.mxu0
        %3360 = vmatprep.subr.bf16.mxu0 0
        %3361 = vmatpush1.bf16.msra.mxu0 %v2984
        %3362 = vmatprep.subr.bf16.mxu0 0
        %3363 = vmatpush1.bf16.msra.mxu0 %v2985
        %3364 = vmatprep.subr.bf16.mxu0 0
        %3365 = vmatpush1.bf16.msra.mxu0 %v2986
        %3366 = vmatprep.subr.bf16.mxu0 0
        %3367 = vmatpush1.bf16.msra.mxu0 %v2987
        %3368 = vmatprep.subr.bf16.mxu0 0
        %3369 = vmatpush1.bf16.msra.mxu0 %v2988
        %3370 = vmatprep.subr.bf16.mxu0 0
        %3371 = vmatpush1.bf16.msra.mxu0 %v2989
        %3372 = vmatprep.subr.bf16.mxu0 0
        %3373 = vmatpush1.bf16.msra.mxu0 %v2990
        %3374 = vmatprep.subr.bf16.mxu0 0
        %3375 = vmatpush1.bf16.msra.mxu0 %v2991
        %3376 = vmatprep.subr.bf16.mxu0 0
        %3377 = vmatpush1.bf16.msra.mxu0 %v2992
        %3378 = vmatprep.subr.bf16.mxu0 0
        %3379 = vmatpush1.bf16.msra.mxu0 %v2993
        %3380 = vmatprep.subr.bf16.mxu0 0
        %3381 = vmatpush1.bf16.msra.mxu0 %v2994
        %3382 = vmatprep.subr.bf16.mxu0 0
        %3383 = vmatpush1.bf16.msra.mxu0 %v2995
        %3384 = vmatprep.subr.bf16.mxu0 0
        %3385 = vmatpush1.bf16.msra.mxu0 %v2996
        %3386 = vmatprep.subr.bf16.mxu0 0
        %3387 = vmatpush1.bf16.msra.mxu0 %v2997
        %3388 = vmatprep.subr.bf16.mxu0 0
        %3389 = vmatpush1.bf16.msra.mxu0 %v2998
        %3390 = vmatprep.subr.bf16.mxu0 0
        %3391 = vmatpush1.bf16.msra.mxu0 %v2999
        %3392 = vmatprep.mubr.bf16.mxu0 %v2124
        %3393 = vmatmul.mubr.bf16.gmra.mrb[0].mxu0 %v2123
        %v3394 = vpop.f32.mrb[0].mxu0
        %v3395 = vadd.f32 %v3355, %v3394
        %v3396 = vpop.f32.mrb[0].mxu0
        %v3397 = vpop.f32.mrb[0].mxu0
        %v3398 = vpop.f32.mrb[0].mxu0
        %3399 = vdwg.mxu0
        %3400 = vmatprep.subr.bf16.mxu0 0
        %3401 = vmatpush1.bf16.msra.mxu0 %v3000
        %3402 = vmatprep.subr.bf16.mxu0 0
        %3403 = vmatpush1.bf16.msra.mxu0 %v3001
        %3404 = vmatprep.subr.bf16.mxu0 0
        %3405 = vmatpush1.bf16.msra.mxu0 %v3002
        %3406 = vmatprep.subr.bf16.mxu0 0
        %3407 = vmatpush1.bf16.msra.mxu0 %v3003
        %3408 = vmatprep.subr.bf16.mxu0 0
        %3409 = vmatpush1.bf16.msra.mxu0 %v3004
        %3410 = vmatprep.subr.bf16.mxu0 0
        %3411 = vmatpush1.bf16.msra.mxu0 %v3005
        %3412 = vmatprep.subr.bf16.mxu0 0
        %3413 = vmatpush1.bf16.msra.mxu0 %v3006
        %3414 = vmatprep.subr.bf16.mxu0 0
        %3415 = vmatpush1.bf16.msra.mxu0 %v3007
        %3416 = vmatprep.subr.bf16.mxu0 0
        %3417 = vmatpush1.bf16.msra.mxu0 %v3008
        %3418 = vmatprep.subr.bf16.mxu0 0
        %3419 = vmatpush1.bf16.msra.mxu0 %v3009
        %3420 = vmatprep.subr.bf16.mxu0 0
        %3421 = vmatpush1.bf16.msra.mxu0 %v3010
        %3422 = vmatprep.subr.bf16.mxu0 0
        %3423 = vmatpush1.bf16.msra.mxu0 %v3011
        %3424 = vmatprep.subr.bf16.mxu0 0
        %3425 = vmatpush1.bf16.msra.mxu0 %v3012
        %3426 = vmatprep.subr.bf16.mxu0 0
        %3427 = vmatpush1.bf16.msra.mxu0 %v3013
        %3428 = vmatprep.subr.bf16.mxu0 0
        %3429 = vmatpush1.bf16.msra.mxu0 %v3014
        %3430 = vmatprep.subr.bf16.mxu0 0
        %3431 = vmatpush1.bf16.msra.mxu0 %v3015
        %3432 = vmatprep.mubr.bf16.mxu0 %v2126
        %3433 = vmatmul.mubr.bf16.gmra.mrb[0].mxu0 %v2125
        %v3434 = vpop.f32.mrb[0].mxu0
        %v3435 = vadd.f32 %v3395, %v3434
        %v3436 = vpop.f32.mrb[0].mxu0
        %v3437 = vpop.f32.mrb[0].mxu0
        %v3438 = vpop.f32.mrb[0].mxu0
        %3439 = vdwg.mxu0
        %3440 = vmatprep.subr.bf16.mxu0 0
        %3441 = vmatpush1.bf16.msra.mxu0 %v3016
        %3442 = vmatprep.subr.bf16.mxu0 0
        %3443 = vmatpush1.bf16.msra.mxu0 %v3017
        %3444 = vmatprep.subr.bf16.mxu0 0
        %3445 = vmatpush1.bf16.msra.mxu0 %v3018
        %3446 = vmatprep.subr.bf16.mxu0 0
        %3447 = vmatpush1.bf16.msra.mxu0 %v3019
        %3448 = vmatprep.subr.bf16.mxu0 0
        %3449 = vmatpush1.bf16.msra.mxu0 %v3020
        %3450 = vmatprep.subr.bf16.mxu0 0
        %3451 = vmatpush1.bf16.msra.mxu0 %v3021
        %3452 = vmatprep.subr.bf16.mxu0 0
        %3453 = vmatpush1.bf16.msra.mxu0 %v3022
        %3454 = vmatprep.subr.bf16.mxu0 0
        %3455 = vmatpush1.bf16.msra.mxu0 %v3023
        %3456 = vmatprep.subr.bf16.mxu0 0
        %3457 = vmatpush1.bf16.msra.mxu0 %v3024
        %3458 = vmatprep.subr.bf16.mxu0 0
        %3459 = vmatpush1.bf16.msra.mxu0 %v3025
        %3460 = vmatprep.subr.bf16.mxu0 0
        %3461 = vmatpush1.bf16.msra.mxu0 %v3026
        %3462 = vmatprep.subr.bf16.mxu0 0
        %3463 = vmatpush1.bf16.msra.mxu0 %v3027
        %3464 = vmatprep.subr.bf16.mxu0 0
        %3465 = vmatpush1.bf16.msra.mxu0 %v3028
        %3466 = vmatprep.subr.bf16.mxu0 0
        %3467 = vmatpush1.bf16.msra.mxu0 %v3029
        %3468 = vmatprep.subr.bf16.mxu0 0
        %3469 = vmatpush1.bf16.msra.mxu0 %v3030
        %3470 = vmatprep.subr.bf16.mxu0 0
        %3471 = vmatpush1.bf16.msra.mxu0 %v3031
        %3472 = vmatprep.mubr.bf16.mxu0 %v2128
        %3473 = vmatmul.mubr.bf16.gmra.mrb[0].mxu0 %v2127
        %v3474 = vpop.f32.mrb[0].mxu0
        %v3475 = vadd.f32 %v3435, %v3474
        %v3476 = vpop.f32.mrb[0].mxu0
        %v3477 = vpop.f32.mrb[0].mxu0
        %v3478 = vpop.f32.mrb[0].mxu0
        %3479 = vdwg.mxu0
        %v3480 = vadd.f32 %v1452, %v3475
        %3481 = vst.msk [vmem:[%s631] sm:$0xff] %vm695, %v3480
        %s3482 = sand.u32 %s412, 1
        %s3483 = scalar_lea.sflag [#allocation3], %s3482
        %s3484 = sand.u32 %s412, 1
        %s3485 = smul.addr %s3484, 8
        %s3486 = scalar_lea.vmem [#allocation2], %s3485
        // Predicated region
        $region81: #{tpu_custom_call.1} parent=75 // pred_check
          %p3487 = pneg %p422
        $region82: #{tpu_custom_call.1} parent=75 // pred_check_branch
          %3489 = sbr.rel (%p3487) target = $region84
        $region83: #{tpu_custom_call.1} parent=75 // pred_region
          %s3491 = ssub.s32 128, 128
          %3492 = vsyncadd %s3483, %s3491
          %s3493 = smul.addr %s32, 128
          %s3494 = scalar_lea.hbm %s14, %s3493
          %s3496 = sshll.u32 %s3486, 4
          %s3497 = int_to_ptr.vmem [resolvable:$true] %s3496
          %3499 = dma.vmem_to_hbm [thread:$0]  %s3497, 128, %s3494, %s3483
        $region84: #{tpu_custom_call.1} parent=75 // pred_fallthru
          _
      $region76: #{tpu_custom_call.1} parent=5 // pred_fallthru
        _
      %p3500 = scmp.le.s32.totalorder 2, %s23
      // Predicated region
      $region85: #{tpu_custom_call.1} parent=5 // pred_check
        %p3501 = pneg %p3500
      $region86: #{tpu_custom_call.1} parent=5 // pred_check_branch
        %3503 = sbr.rel (%p3501) target = $region88
      $region87: #{tpu_custom_call.1} parent=5 // pred_region
        %s3504 = ssub.s32 %s23, 2
        // Predicated region
        $region89: #{tpu_custom_call.1} parent=87 // pred_check
          %p3505 = pneg %p428
        $region90: #{tpu_custom_call.1} parent=87 // pred_check_branch
          %3507 = sbr.rel (%p3505) target = $region92
        $region91: #{tpu_custom_call.1} parent=87 // pred_region
          %s3508 = sand.u32 %s413, 1
          %s3509 = scalar_lea.sflag [#allocation3], %s3508
          %s3510 = sand.u32 %s413, 1
          %s3511 = smul.addr %s3510, 8
          %s3512 = scalar_lea.vmem [#allocation2], %s3511
          %3513 = dma.done %s3509, 128
        $region92: #{tpu_custom_call.1} parent=87 // pred_fallthru
          _
      $region88: #{tpu_custom_call.1} parent=5 // pred_fallthru
        _
    $region6: #{tpu_custom_call.1} parent=1 // loop_footer
      %s27 = sadd.s32 1, %s23
    $region7: #{tpu_custom_call.1} parent=1 // loop_footer_branch
      %22 = sbr.rel target = $region3
    $region8: #{tpu_custom_call.1} parent=1 // loop_exit
      _
    %3514 = vsyncpa [#allocation3], 1
    %s3515 = scalar_lea.sflag [#allocation3], 1
    %3516 = vsyncpa %s3515, 1

</llo_original>
